<compile_context>
chip_gen: v6e
topology: v6e:2x2x1
jax: 0.10.0
libtpu: 0.0.40
codegen_flags: <defaults>
</compile_context>

<pallas_src>
import functools

import jax
import jax.numpy as jnp
from jax.experimental import pallas as pl
from jax.experimental.pallas import tpu as pltpu

_LANE = 128


def _round_up(x, m):
    return ((x + m - 1) // m) * m


# ---------------------------------------------------------------------------
# Kernel
# ---------------------------------------------------------------------------
def drgn_kernel(x_ref, mask_ref, h0_ref, enc_w_ref, w_ref, b_ref, out_ref,
                *, num_head, hidden_dim, action_dim, n_agents, batch_block,
                w_off, b_off, out_width, compute_dtype):
    H = hidden_dim
    A = action_dim
    N = n_agents
    bb = batch_block
    hd = H // num_head
    rows = bb * N
    scale = 1.0 / float(hd) ** 0.5
    cdt = compute_dtype

    def mm(a, w):
        # Matmul with optional low-precision operands, f32 accumulation.
        return jnp.dot(a.astype(cdt), w.astype(cdt),
                       preferred_element_type=jnp.float32)

    x = x_ref[...]        # (bb*N, in_dim)
    h0 = h0_ref[...]      # (bb*N, H)
    # Exact reference semantics: where(mask > 0, scores, -1e9).  Computed once.
    mask_pos = mask_ref[...] > 0          # (bb, N, N)

    # ---- Encoder + ReLU on the whole (bb*N, in_dim) slab --------------------
    xe = jnp.maximum(
        mm(x, enc_w_ref[...]) + b_ref[:, b_off["enc"]:b_off["enc"] + H], 0.0)

    # ---- Masked multi-head attention (fused QKV, fused output proj) ---------
    def mha(inp, wq_o, bq_o, wo_o, bo_o):
        # Fused QKV projection: one (bb*N, H) @ (H, 3H) matmul.
        qkv = mm(inp, w_ref[:, wq_o:wq_o + 3 * H]) + b_ref[:, bq_o:bq_o + 3 * H]
        qkv3 = qkv.reshape(bb, N, 3 * H)

        heads = []
        for h in range(num_head):   # static, tiny (num_head); batch handled by
            q = qkv3[:, :, h * hd:(h + 1) * hd]              # the 3-D batched dots
            k = qkv3[:, :, H + h * hd:H + (h + 1) * hd]
            v = qkv3[:, :, 2 * H + h * hd:2 * H + (h + 1) * hd]
            # Batched scores over the whole batch block: (bb, N, N).
            s = jnp.einsum("bnd,bmd->bnm", q.astype(cdt), k.astype(cdt),
                           preferred_element_type=jnp.float32) * scale
            s = jnp.where(mask_pos, s, -1e9)
            # Row-max subtraction: even an all-(-1e9) row gives a uniform
            # softmax (denominator >= 1), so approx reciprocal is NaN-free.
            s = s - jnp.max(s, axis=-1, keepdims=True)
            p = jnp.exp(s)
            p = p * pl.reciprocal(jnp.sum(p, axis=-1, keepdims=True),
                                  approx=True)
            heads.append(jnp.einsum("bnm,bmd->bnd", p.astype(cdt),
                                    v.astype(cdt),
                                    preferred_element_type=jnp.float32))

        # Merge heads in registers (no VMEM round trip) and run ONE fused
        # output projection over the whole slab + ReLU (DGN-style).
        ho = jnp.concatenate(heads, axis=-1).reshape(rows, H)
        o = mm(ho, w_ref[:, wo_o:wo_o + H]) + b_ref[:, bo_o:bo_o + H]
        return jnp.maximum(o, 0.0)

    h1 = mha(xe, w_off["a1_qkv"], b_off["a1_qkv"], w_off["a1_o"], b_off["a1_o"])
    h2 = mha(h1, w_off["a2_qkv"], b_off["a2_qkv"], w_off["a2_o"], b_off["a2_o"])

    # ---- GRUCell (PyTorch semantics, gate order r | z | n), f32 gate math ---
    gi = mm(h2, w_ref[:, w_off["gru_ih"]:w_off["gru_ih"] + 3 * H]) \
        + b_ref[:, b_off["gru_ih"]:b_off["gru_ih"] + 3 * H]
    gh = mm(h0, w_ref[:, w_off["gru_hh"]:w_off["gru_hh"] + 3 * H]) \
        + b_ref[:, b_off["gru_hh"]:b_off["gru_hh"] + 3 * H]
    r = jax.nn.sigmoid(gi[:, 0:H] + gh[:, 0:H])
    z = jax.nn.sigmoid(gi[:, H:2 * H] + gh[:, H:2 * H])
    n_gate = jnp.tanh(gi[:, 2 * H:3 * H] + r * gh[:, 2 * H:3 * H])
    hn = (1.0 - z) * n_gate + z * h0

    # ---- Output head (with_non_linearity=False -> plain Linear) -------------
    qs = mm(hn, w_ref[:, w_off["lin"]:w_off["lin"] + A]) \
        + b_ref[:, b_off["lin"]:b_off["lin"] + A]

    # Single lane-dense store: (qs | hn | zero pad) -> (rows, out_width=128k).
    pad = out_width - (A + H)
    pieces = [qs, hn]
    if pad > 0:
        pieces.append(jnp.zeros((rows, pad), jnp.float32))
    out_ref[...] = jnp.concatenate(pieces, axis=-1)


# ---------------------------------------------------------------------------
# Parameter packing: 26 small arrays -> 3 slabs, 128-lane-aligned segments
# ---------------------------------------------------------------------------
def _pack_aligned(named_arrays):
    """Concatenate 2-D arrays along axis=1, padding each segment up to a
    128-lane multiple so every segment starts on a lane-tile boundary."""
    pieces, offsets, col = [], {}, 0
    for name, a in named_arrays:
        offsets[name] = col
        w = a.shape[1]
        wp = _round_up(w, _LANE)
        if wp != w:
            a = jnp.pad(a, ((0, 0), (0, wp - w)))
        pieces.append(a)
        col += wp
    return jnp.concatenate(pieces, axis=1), offsets


def _pack_params(p):
    a1_wqkv = jnp.concatenate([p["a1_wq"], p["a1_wk"], p["a1_wv"]], axis=1)
    a2_wqkv = jnp.concatenate([p["a2_wq"], p["a2_wk"], p["a2_wv"]], axis=1)
    w_slab, w_off = _pack_aligned([
        ("a1_qkv", a1_wqkv), ("a1_o", p["a1_wo"]),
        ("a2_qkv", a2_wqkv), ("a2_o", p["a2_wo"]),
        ("gru_ih", p["gru_wih"]), ("gru_hh", p["gru_whh"]),
        ("lin", p["lin_w"]),
    ])
    a1_bqkv = jnp.concatenate([p["a1_bq"], p["a1_bk"], p["a1_bv"]], axis=1)
    a2_bqkv = jnp.concatenate([p["a2_bq"], p["a2_bk"], p["a2_bv"]], axis=1)
    b_slab, b_off = _pack_aligned([
        ("enc", p["enc_b"]),
        ("a1_qkv", a1_bqkv), ("a1_o", p["a1_bo"]),
        ("a2_qkv", a2_bqkv), ("a2_o", p["a2_bo"]),
        ("gru_ih", p["gru_bih"]), ("gru_hh", p["gru_bhh"]),
        ("lin", p["lin_b"]),
    ])
    return p["enc_w"], w_slab, w_off, b_slab, b_off


# ---------------------------------------------------------------------------
# Wrapper
# ---------------------------------------------------------------------------
def drgn_forward(x, mask, hidden_state, params, num_head,
                 num_batch_blocks=None, compute_dtype=jnp.float32):
    B, N, in_dim = x.shape
    H = hidden_state.shape[-1]
    A = params["lin_w"].shape[1]

    if num_batch_blocks is None:
        # One fat step for small problems; for large B, grid the batch so each
        # step carries >=512 rows -> the BlockSpec pipeline overlaps the
        # x/h0/mask DMA of step i+1 with compute of step i (v5e/v6e advice;
        # weight slabs stay resident via constant index_maps).  On v7x, also
        # keep bb small enough for the 32 MiB scoped / 64 MiB physical VMEM.
        num_batch_blocks = 1
        for cand in range(B, 1, -1):
            if B % cand == 0 and (B // cand) * N >= 512:
                num_batch_blocks = cand
                break
    assert B % num_batch_blocks == 0
    bb = B // num_batch_blocks  # batch elements folded into each grid step

    enc_w, w_slab, w_off, b_slab, b_off = _pack_params(params)
    if compute_dtype != jnp.float32:
        # bf16 matmul operands (f32 accumulate): recommended on v6e/v7x at
        # production batch sizes; default stays f32 for strict tolerance.
        enc_w = enc_w.astype(compute_dtype)
        w_slab = w_slab.astype(compute_dtype)

    out_width = _round_up(A + H, _LANE)   # lane-dense, unmasked output stores

    # Fold batch into the matmul M dimension.
    x2 = x.reshape(B * N, in_dim)
    h02 = hidden_state.reshape(B * N, H)

    kernel = functools.partial(
        drgn_kernel, num_head=num_head, hidden_dim=H, action_dim=A,
        n_agents=N, batch_block=bb, w_off=w_off, b_off=b_off,
        out_width=out_width, compute_dtype=compute_dtype)

    out = pl.pallas_call(
        kernel,
        out_shape=jax.ShapeDtypeStruct((B * N, out_width), jnp.float32),
        grid_spec=pltpu.PrefetchScalarGridSpec(
            num_scalar_prefetch=0,
            grid=(num_batch_blocks,),
            in_specs=[
                pl.BlockSpec((bb * N, in_dim), lambda i: (i, 0)),
                pl.BlockSpec((bb, N, N), lambda i: (i, 0, 0)),
                pl.BlockSpec((bb * N, H), lambda i: (i, 0)),
                pl.BlockSpec(enc_w.shape, lambda i: (0, 0)),
                pl.BlockSpec(w_slab.shape, lambda i: (0, 0)),
                pl.BlockSpec(b_slab.shape, lambda i: (0, 0)),
            ],
            out_specs=pl.BlockSpec((bb * N, out_width), lambda i: (i, 0)),
        ),
        # "parallel" lets multi-TC chips shard batch chunks when the grid has
        # more than one step; it is a no-op on single-TC v5e/v6e.
        compiler_params=pltpu.CompilerParams(
            dimension_semantics=("parallel",)),
    )(x2, mask, h02, enc_w, w_slab, b_slab)

    qs = out[:, :A].reshape(B, N, A)
    next_h = out[:, A:A + H].reshape(B, N, H)
    return qs, next_h


# ---------------------------------------------------------------------------
# Synthetic parameters + pure-JAX reference
# ---------------------------------------------------------------------------
def make_params(key, in_dim, hidden_dim, action_dim):
    """Deterministic synthetic parameters. Weights stored (in, out); biases (1, out)."""
    def dense(k, fan_in, fan_out):
        kw, kb = jax.random.split(k)
        w = jax.random.normal(kw, (fan_in, fan_out), jnp.float32) * 0.1
        b = jax.random.normal(kb, (1, fan_out), jnp.float32) * 0.1
        return w, b

    keys = jax.random.split(key, 12)
    p = {}
    p["enc_w"], p["enc_b"] = dense(keys[0], in_dim, hidden_dim)
    for i, pre in enumerate(["a1", "a2"]):
        p[f"{pre}_wq"], p[f"{pre}_bq"] = dense(keys[1 + 4 * i], hidden_dim, hidden_dim)
        p[f"{pre}_wk"], p[f"{pre}_bk"] = dense(keys[2 + 4 * i], hidden_dim, hidden_dim)
        p[f"{pre}_wv"], p[f"{pre}_bv"] = dense(keys[3 + 4 * i], hidden_dim, hidden_dim)
        p[f"{pre}_wo"], p[f"{pre}_bo"] = dense(keys[4 + 4 * i], hidden_dim, hidden_dim)
    p["gru_wih"], p["gru_bih"] = dense(keys[9], hidden_dim, 3 * hidden_dim)
    p["gru_whh"], p["gru_bhh"] = dense(keys[10], hidden_dim, 3 * hidden_dim)
    p["lin_w"], p["lin_b"] = dense(keys[11], hidden_dim, action_dim)
    return p


def reference_forward(x, mask, h0, params, num_head):
    """Pure-JAX reference mirroring the PyTorch module semantics."""
    def mha(xx, pre):
        B, N, _ = xx.shape
        wq, bq = params[f"{pre}_wq"], params[f"{pre}_bq"]
        wk, bk = params[f"{pre}_wk"], params[f"{pre}_bk"]
        wv, bv = params[f"{pre}_wv"], params[f"{pre}_bv"]
        wo, bo = params[f"{pre}_wo"], params[f"{pre}_bo"]
        Hd = wq.shape[1]
        hd = Hd // num_head
        q = (xx @ wq + bq).reshape(B, N, num_head, hd).transpose(0, 2, 1, 3)
        k = (xx @ wk + bk).reshape(B, N, num_head, hd).transpose(0, 2, 1, 3)
        v = (xx @ wv + bv).reshape(B, N, num_head, hd).transpose(0, 2, 1, 3)
        s = jnp.einsum("bhnd,bhmd->bhnm", q, k) / float(hd) ** 0.5
        s = jnp.where(mask[:, None, :, :] > 0, s, -1e9)
        p = jax.nn.softmax(s, axis=-1)
        o = jnp.einsum("bhnm,bhmd->bhnd", p, v).transpose(0, 2, 1, 3).reshape(B, N, Hd)
        return jax.nn.relu(o @ wo + bo)

    xe = jax.nn.relu(x @ params["enc_w"] + params["enc_b"])
    h1 = mha(xe, "a1")
    h2 = mha(h1, "a2")
    H = h0.shape[-1]
    gi = h2 @ params["gru_wih"] + params["gru_bih"]
    gh = h0 @ params["gru_whh"] + params["gru_bhh"]
    r = jax.nn.sigmoid(gi[..., :H] + gh[..., :H])
    z = jax.nn.sigmoid(gi[..., H:2 * H] + gh[..., H:2 * H])
    n = jnp.tanh(gi[..., 2 * H:] + r * gh[..., 2 * H:])
    hn = (1.0 - z) * n + z * h0
    qs = hn @ params["lin_w"] + params["lin_b"]
    return qs, hn


if __name__ == "__main__":
    B, N, IN_DIM, HIDDEN, ACTION, NUM_HEAD = 2, 8, 16, 32, 8, 4

    key = jax.random.PRNGKey(0)
    k1, k2, k3, k4 = jax.random.split(key, 4)

    x = jax.random.normal(k1, (B, N, IN_DIM), jnp.float32)
    mask = (jax.random.uniform(k2, (B, N, N)) > 0.3).astype(jnp.float32)
    mask = jnp.maximum(mask, jnp.eye(N, dtype=jnp.float32)[None])  # keep self-edges
    h0 = jax.random.normal(k3, (B, N, HIDDEN), jnp.float32)
    params = make_params(k4, IN_DIM, HIDDEN, ACTION)

    qs, next_h = drgn_forward(x, mask, h0, params, NUM_HEAD)
    jax.block_until_ready((qs, next_h))

    with jax.default_matmul_precision("highest"):
        qs_ref, next_h_ref = reference_forward(x, mask, h0, params, NUM_HEAD)

    assert qs.shape == (B, N, ACTION) and next_h.shape == (B, N, HIDDEN)
    # Tolerance covers the EUP approximate-reciprocal softmax normalization.
    assert jnp.allclose(qs, qs_ref, atol=2e-3, rtol=2e-3), \
        float(jnp.max(jnp.abs(qs - qs_ref)))
    assert jnp.allclose(next_h, next_h_ref, atol=2e-3, rtol=2e-3), \
        float(jnp.max(jnp.abs(next_h - next_h_ref)))

    print("KERNEL_OK")
</pallas_src>

<mosaic_0001>
module attributes {stable_mosaic.version = 11 : i64} {
  func.func @drgn_kernel(%arg0: i32, %arg1: memref<16x16xf32, #tpu.memory_space<vmem>>, %arg2: memref<2x8x8xf32, #tpu.memory_space<vmem>>, %arg3: memref<16x32xf32, #tpu.memory_space<vmem>>, %arg4: memref<16x32xf32, #tpu.memory_space<vmem>>, %arg5: memref<32x896xf32, #tpu.memory_space<vmem>>, %arg6: memref<1x1024xf32, #tpu.memory_space<vmem>>, %arg7: memref<16x128xf32, #tpu.memory_space<vmem>>) attributes {dimension_semantics = [#tpu.dimension_semantics<parallel>], iteration_bounds = array<i64: 1>, scalar_prefetch = 0 : i64, scratch_operands = 0 : i64, tpu.core_type = #tpu.core_type<tc>, window_params = [{transform_indices = @transform_0, window_bounds = array<i64: 16, 16>}, {transform_indices = @transform_1, window_bounds = array<i64: 2, 8, 8>}, {transform_indices = @transform_2, window_bounds = array<i64: 16, 32>}, {pipeline_mode = #tpu.pipeline_mode<synchronous>, transform_indices = @transform_3, window_bounds = array<i64: 16, 32>}, {pipeline_mode = #tpu.pipeline_mode<synchronous>, transform_indices = @transform_4, window_bounds = array<i64: 32, 896>}, {pipeline_mode = #tpu.pipeline_mode<synchronous>, transform_indices = @transform_5, window_bounds = array<i64: 1, 1024>}, {transform_indices = @transform_6, window_bounds = array<i64: 16, 128>}]} {
    %c0 = arith.constant 0 : index
    %c0_0 = arith.constant 0 : index
    %0 = vector.load %arg1[%c0, %c0_0] : memref<16x16xf32, #tpu.memory_space<vmem>>, vector<16x16xf32>
    %c0_1 = arith.constant 0 : index
    %c0_2 = arith.constant 0 : index
    %1 = vector.load %arg3[%c0_1, %c0_2] : memref<16x32xf32, #tpu.memory_space<vmem>>, vector<16x32xf32>
    %c0_3 = arith.constant 0 : index
    %c0_4 = arith.constant 0 : index
    %c0_5 = arith.constant 0 : index
    %2 = vector.load %arg2[%c0_3, %c0_4, %c0_5] : memref<2x8x8xf32, #tpu.memory_space<vmem>>, vector<2x8x8xf32>
    %cst = arith.constant 0.000000e+00 : f32
    %3 = vector.broadcast %cst : f32 to vector<2x8x8xf32>
    %4 = arith.cmpf ogt, %2, %3 : vector<2x8x8xf32>
    %c0_6 = arith.constant 0 : index
    %c0_7 = arith.constant 0 : index
    %5 = vector.load %arg4[%c0_6, %c0_7] : memref<16x32xf32, #tpu.memory_space<vmem>>, vector<16x32xf32>
    %cst_8 = arith.constant dense<0.000000e+00> : vector<16x32xf32>
    %6 = tpu.matmul %0, %5, %cst_8 {dimension_numbers = #tpu.dot_dimension_numbers<[1], [0], [0], [1], [0, 0, 1, 1], [], []>} : vector<16x16xf32>, vector<16x32xf32>, vector<16x32xf32> -> vector<16x32xf32>
    %c0_9 = arith.constant 0 : index
    %c0_10 = arith.constant 0 : index
    %7 = vector.load %arg6[%c0_9, %c0_10] : memref<1x1024xf32, #tpu.memory_space<vmem>>, vector<1x32xf32>
    %8 = vector.broadcast %7 : vector<1x32xf32> to vector<16x32xf32>
    %9 = arith.addf %6, %8 : vector<16x32xf32>
    %cst_11 = arith.constant 0.000000e+00 : f32
    %10 = vector.broadcast %cst_11 : f32 to vector<16x32xf32>
    %11 = arith.maximumf %9, %10 : vector<16x32xf32>
    %c0_12 = arith.constant 0 : index
    %c0_13 = arith.constant 0 : index
    %12 = vector.load %arg5[%c0_12, %c0_13] : memref<32x896xf32, #tpu.memory_space<vmem>>, vector<32x96xf32>
    %cst_14 = arith.constant dense<0.000000e+00> : vector<16x96xf32>
    %13 = tpu.matmul %11, %12, %cst_14 {dimension_numbers = #tpu.dot_dimension_numbers<[1], [0], [0], [1], [0, 0, 1, 1], [], []>} : vector<16x32xf32>, vector<32x96xf32>, vector<16x96xf32> -> vector<16x96xf32>
    %c0_15 = arith.constant 0 : index
    %c128 = arith.constant 128 : index
    %14 = vector.load %arg6[%c0_15, %c128] : memref<1x1024xf32, #tpu.memory_space<vmem>>, vector<1x96xf32>
    %15 = vector.broadcast %14 : vector<1x96xf32> to vector<16x96xf32>
    %16 = arith.addf %13, %15 : vector<16x96xf32>
    %17 = vector.shape_cast %16 : vector<16x96xf32> to vector<2x8x96xf32>
    %18 = vector.extract_strided_slice %17 {offsets = [0, 0, 0], sizes = [2, 8, 8], strides = [1, 1, 1]} : vector<2x8x96xf32> to vector<2x8x8xf32>
    %19 = vector.extract_strided_slice %17 {offsets = [0, 0, 32], sizes = [2, 8, 8], strides = [1, 1, 1]} : vector<2x8x96xf32> to vector<2x8x8xf32>
    %20 = vector.extract_strided_slice %17 {offsets = [0, 0, 64], sizes = [2, 8, 8], strides = [1, 1, 1]} : vector<2x8x96xf32> to vector<2x8x8xf32>
    "tpu.trace_start"() <{level = 10 : i32, message = "bnd,bmd->bnm"}> : () -> ()
    %cst_16 = arith.constant dense<0.000000e+00> : vector<2x8x8xf32>
    %21 = tpu.matmul %18, %19, %cst_16 {dimension_numbers = #tpu.dot_dimension_numbers<[2], [2], [1], [1], [0, 0, 0, 1, 1, 1], [0], [0]>} : vector<2x8x8xf32>, vector<2x8x8xf32>, vector<2x8x8xf32> -> vector<2x8x8xf32>
    "tpu.trace_stop"() : () -> ()
    %cst_17 = arith.constant 0.353553385 : f32
    %22 = vector.broadcast %cst_17 : f32 to vector<2x8x8xf32>
    %23 = arith.mulf %21, %22 : vector<2x8x8xf32>
    %cst_18 = arith.constant -1.000000e+09 : f32
    %24 = vector.broadcast %cst_18 : f32 to vector<2x8x8xf32>
    %25 = arith.select %4, %23, %24 : vector<2x8x8xi1>, vector<2x8x8xf32>
    %cst_19 = arith.constant dense<0xFF800000> : vector<2x8xf32>
    %26 = vector.multi_reduction <maximumf>, %25, %cst_19 [2] : vector<2x8x8xf32> to vector<2x8xf32>
    %27 = vector.shape_cast %26 : vector<2x8xf32> to vector<2x8x1xf32>
    %28 = vector.broadcast %27 : vector<2x8x1xf32> to vector<2x8x8xf32>
    %29 = arith.subf %25, %28 : vector<2x8x8xf32>
    %30 = math.exp %29 : vector<2x8x8xf32>
    %cst_20 = arith.constant dense<0.000000e+00> : vector<2x8xf32>
    %31 = vector.multi_reduction <add>, %30, %cst_20 [2] : vector<2x8x8xf32> to vector<2x8xf32>
    %32 = vector.shape_cast %31 : vector<2x8xf32> to vector<2x8x1xf32>
    %33 = tpu.reciprocal %32 {approx = true} : vector<2x8x1xf32> -> vector<2x8x1xf32>
    %34 = vector.broadcast %33 : vector<2x8x1xf32> to vector<2x8x8xf32>
    %35 = arith.mulf %30, %34 : vector<2x8x8xf32>
    "tpu.trace_start"() <{level = 10 : i32, message = "bnm,bmd->bnd"}> : () -> ()
    %cst_21 = arith.constant dense<0.000000e+00> : vector<2x8x8xf32>
    %36 = tpu.matmul %35, %20, %cst_21 {dimension_numbers = #tpu.dot_dimension_numbers<[2], [1], [1], [2], [0, 0, 0, 1, 1, 2], [0], [0]>} : vector<2x8x8xf32>, vector<2x8x8xf32>, vector<2x8x8xf32> -> vector<2x8x8xf32>
    "tpu.trace_stop"() : () -> ()
    %37 = vector.extract_strided_slice %17 {offsets = [0, 0, 8], sizes = [2, 8, 8], strides = [1, 1, 1]} : vector<2x8x96xf32> to vector<2x8x8xf32>
    %38 = vector.extract_strided_slice %17 {offsets = [0, 0, 40], sizes = [2, 8, 8], strides = [1, 1, 1]} : vector<2x8x96xf32> to vector<2x8x8xf32>
    %39 = vector.extract_strided_slice %17 {offsets = [0, 0, 72], sizes = [2, 8, 8], strides = [1, 1, 1]} : vector<2x8x96xf32> to vector<2x8x8xf32>
    "tpu.trace_start"() <{level = 10 : i32, message = "bnd,bmd->bnm"}> : () -> ()
    %cst_22 = arith.constant dense<0.000000e+00> : vector<2x8x8xf32>
    %40 = tpu.matmul %37, %38, %cst_22 {dimension_numbers = #tpu.dot_dimension_numbers<[2], [2], [1], [1], [0, 0, 0, 1, 1, 1], [0], [0]>} : vector<2x8x8xf32>, vector<2x8x8xf32>, vector<2x8x8xf32> -> vector<2x8x8xf32>
    "tpu.trace_stop"() : () -> ()
    %cst_23 = arith.constant 0.353553385 : f32
    %41 = vector.broadcast %cst_23 : f32 to vector<2x8x8xf32>
    %42 = arith.mulf %40, %41 : vector<2x8x8xf32>
    %cst_24 = arith.constant -1.000000e+09 : f32
    %43 = vector.broadcast %cst_24 : f32 to vector<2x8x8xf32>
    %44 = arith.select %4, %42, %43 : vector<2x8x8xi1>, vector<2x8x8xf32>
    %cst_25 = arith.constant dense<0xFF800000> : vector<2x8xf32>
    %45 = vector.multi_reduction <maximumf>, %44, %cst_25 [2] : vector<2x8x8xf32> to vector<2x8xf32>
    %46 = vector.shape_cast %45 : vector<2x8xf32> to vector<2x8x1xf32>
    %47 = vector.broadcast %46 : vector<2x8x1xf32> to vector<2x8x8xf32>
    %48 = arith.subf %44, %47 : vector<2x8x8xf32>
    %49 = math.exp %48 : vector<2x8x8xf32>
    %cst_26 = arith.constant dense<0.000000e+00> : vector<2x8xf32>
    %50 = vector.multi_reduction <add>, %49, %cst_26 [2] : vector<2x8x8xf32> to vector<2x8xf32>
    %51 = vector.shape_cast %50 : vector<2x8xf32> to vector<2x8x1xf32>
    %52 = tpu.reciprocal %51 {approx = true} : vector<2x8x1xf32> -> vector<2x8x1xf32>
    %53 = vector.broadcast %52 : vector<2x8x1xf32> to vector<2x8x8xf32>
    %54 = arith.mulf %49, %53 : vector<2x8x8xf32>
    "tpu.trace_start"() <{level = 10 : i32, message = "bnm,bmd->bnd"}> : () -> ()
    %cst_27 = arith.constant dense<0.000000e+00> : vector<2x8x8xf32>
    %55 = tpu.matmul %54, %39, %cst_27 {dimension_numbers = #tpu.dot_dimension_numbers<[2], [1], [1], [2], [0, 0, 0, 1, 1, 2], [0], [0]>} : vector<2x8x8xf32>, vector<2x8x8xf32>, vector<2x8x8xf32> -> vector<2x8x8xf32>
    "tpu.trace_stop"() : () -> ()
    %56 = vector.extract_strided_slice %17 {offsets = [0, 0, 16], sizes = [2, 8, 8], strides = [1, 1, 1]} : vector<2x8x96xf32> to vector<2x8x8xf32>
    %57 = vector.extract_strided_slice %17 {offsets = [0, 0, 48], sizes = [2, 8, 8], strides = [1, 1, 1]} : vector<2x8x96xf32> to vector<2x8x8xf32>
    %58 = vector.extract_strided_slice %17 {offsets = [0, 0, 80], sizes = [2, 8, 8], strides = [1, 1, 1]} : vector<2x8x96xf32> to vector<2x8x8xf32>
    "tpu.trace_start"() <{level = 10 : i32, message = "bnd,bmd->bnm"}> : () -> ()
    %cst_28 = arith.constant dense<0.000000e+00> : vector<2x8x8xf32>
    %59 = tpu.matmul %56, %57, %cst_28 {dimension_numbers = #tpu.dot_dimension_numbers<[2], [2], [1], [1], [0, 0, 0, 1, 1, 1], [0], [0]>} : vector<2x8x8xf32>, vector<2x8x8xf32>, vector<2x8x8xf32> -> vector<2x8x8xf32>
    "tpu.trace_stop"() : () -> ()
    %cst_29 = arith.constant 0.353553385 : f32
    %60 = vector.broadcast %cst_29 : f32 to vector<2x8x8xf32>
    %61 = arith.mulf %59, %60 : vector<2x8x8xf32>
    %cst_30 = arith.constant -1.000000e+09 : f32
    %62 = vector.broadcast %cst_30 : f32 to vector<2x8x8xf32>
    %63 = arith.select %4, %61, %62 : vector<2x8x8xi1>, vector<2x8x8xf32>
    %cst_31 = arith.constant dense<0xFF800000> : vector<2x8xf32>
    %64 = vector.multi_reduction <maximumf>, %63, %cst_31 [2] : vector<2x8x8xf32> to vector<2x8xf32>
    %65 = vector.shape_cast %64 : vector<2x8xf32> to vector<2x8x1xf32>
    %66 = vector.broadcast %65 : vector<2x8x1xf32> to vector<2x8x8xf32>
    %67 = arith.subf %63, %66 : vector<2x8x8xf32>
    %68 = math.exp %67 : vector<2x8x8xf32>
    %cst_32 = arith.constant dense<0.000000e+00> : vector<2x8xf32>
    %69 = vector.multi_reduction <add>, %68, %cst_32 [2] : vector<2x8x8xf32> to vector<2x8xf32>
    %70 = vector.shape_cast %69 : vector<2x8xf32> to vector<2x8x1xf32>
    %71 = tpu.reciprocal %70 {approx = true} : vector<2x8x1xf32> -> vector<2x8x1xf32>
    %72 = vector.broadcast %71 : vector<2x8x1xf32> to vector<2x8x8xf32>
    %73 = arith.mulf %68, %72 : vector<2x8x8xf32>
    "tpu.trace_start"() <{level = 10 : i32, message = "bnm,bmd->bnd"}> : () -> ()
    %cst_33 = arith.constant dense<0.000000e+00> : vector<2x8x8xf32>
    %74 = tpu.matmul %73, %58, %cst_33 {dimension_numbers = #tpu.dot_dimension_numbers<[2], [1], [1], [2], [0, 0, 0, 1, 1, 2], [0], [0]>} : vector<2x8x8xf32>, vector<2x8x8xf32>, vector<2x8x8xf32> -> vector<2x8x8xf32>
    "tpu.trace_stop"() : () -> ()
    %75 = vector.extract_strided_slice %17 {offsets = [0, 0, 24], sizes = [2, 8, 8], strides = [1, 1, 1]} : vector<2x8x96xf32> to vector<2x8x8xf32>
    %76 = vector.extract_strided_slice %17 {offsets = [0, 0, 56], sizes = [2, 8, 8], strides = [1, 1, 1]} : vector<2x8x96xf32> to vector<2x8x8xf32>
    %77 = vector.extract_strided_slice %17 {offsets = [0, 0, 88], sizes = [2, 8, 8], strides = [1, 1, 1]} : vector<2x8x96xf32> to vector<2x8x8xf32>
    "tpu.trace_start"() <{level = 10 : i32, message = "bnd,bmd->bnm"}> : () -> ()
    %cst_34 = arith.constant dense<0.000000e+00> : vector<2x8x8xf32>
    %78 = tpu.matmul %75, %76, %cst_34 {dimension_numbers = #tpu.dot_dimension_numbers<[2], [2], [1], [1], [0, 0, 0, 1, 1, 1], [0], [0]>} : vector<2x8x8xf32>, vector<2x8x8xf32>, vector<2x8x8xf32> -> vector<2x8x8xf32>
    "tpu.trace_stop"() : () -> ()
    %cst_35 = arith.constant 0.353553385 : f32
    %79 = vector.broadcast %cst_35 : f32 to vector<2x8x8xf32>
    %80 = arith.mulf %78, %79 : vector<2x8x8xf32>
    %cst_36 = arith.constant -1.000000e+09 : f32
    %81 = vector.broadcast %cst_36 : f32 to vector<2x8x8xf32>
    %82 = arith.select %4, %80, %81 : vector<2x8x8xi1>, vector<2x8x8xf32>
    %cst_37 = arith.constant dense<0xFF800000> : vector<2x8xf32>
    %83 = vector.multi_reduction <maximumf>, %82, %cst_37 [2] : vector<2x8x8xf32> to vector<2x8xf32>
    %84 = vector.shape_cast %83 : vector<2x8xf32> to vector<2x8x1xf32>
    %85 = vector.broadcast %84 : vector<2x8x1xf32> to vector<2x8x8xf32>
    %86 = arith.subf %82, %85 : vector<2x8x8xf32>
    %87 = math.exp %86 : vector<2x8x8xf32>
    %cst_38 = arith.constant dense<0.000000e+00> : vector<2x8xf32>
    %88 = vector.multi_reduction <add>, %87, %cst_38 [2] : vector<2x8x8xf32> to vector<2x8xf32>
    %89 = vector.shape_cast %88 : vector<2x8xf32> to vector<2x8x1xf32>
    %90 = tpu.reciprocal %89 {approx = true} : vector<2x8x1xf32> -> vector<2x8x1xf32>
    %91 = vector.broadcast %90 : vector<2x8x1xf32> to vector<2x8x8xf32>
    %92 = arith.mulf %87, %91 : vector<2x8x8xf32>
    "tpu.trace_start"() <{level = 10 : i32, message = "bnm,bmd->bnd"}> : () -> ()
    %cst_39 = arith.constant dense<0.000000e+00> : vector<2x8x8xf32>
    %93 = tpu.matmul %92, %77, %cst_39 {dimension_numbers = #tpu.dot_dimension_numbers<[2], [1], [1], [2], [0, 0, 0, 1, 1, 2], [0], [0]>} : vector<2x8x8xf32>, vector<2x8x8xf32>, vector<2x8x8xf32> -> vector<2x8x8xf32>
    "tpu.trace_stop"() : () -> ()
    %94 = tpu.concatenate %36, %55, %74, %93 in 2 : vector<2x8x8xf32>, vector<2x8x8xf32>, vector<2x8x8xf32>, vector<2x8x8xf32> -> vector<2x8x32xf32>
    %95 = vector.shape_cast %94 : vector<2x8x32xf32> to vector<16x32xf32>
    %c0_40 = arith.constant 0 : index
    %c128_41 = arith.constant 128 : index
    %96 = vector.load %arg5[%c0_40, %c128_41] : memref<32x896xf32, #tpu.memory_space<vmem>>, vector<32x32xf32>
    %cst_42 = arith.constant dense<0.000000e+00> : vector<16x32xf32>
    %97 = tpu.matmul %95, %96, %cst_42 {dimension_numbers = #tpu.dot_dimension_numbers<[1], [0], [0], [1], [0, 0, 1, 1], [], []>} : vector<16x32xf32>, vector<32x32xf32>, vector<16x32xf32> -> vector<16x32xf32>
    %c0_43 = arith.constant 0 : index
    %c256 = arith.constant 256 : index
    %98 = vector.load %arg6[%c0_43, %c256] : memref<1x1024xf32, #tpu.memory_space<vmem>>, vector<1x32xf32>
    %99 = vector.broadcast %98 : vector<1x32xf32> to vector<16x32xf32>
    %100 = arith.addf %97, %99 : vector<16x32xf32>
    %cst_44 = arith.constant 0.000000e+00 : f32
    %101 = vector.broadcast %cst_44 : f32 to vector<16x32xf32>
    %102 = arith.maximumf %100, %101 : vector<16x32xf32>
    %c0_45 = arith.constant 0 : index
    %c256_46 = arith.constant 256 : index
    %103 = vector.load %arg5[%c0_45, %c256_46] : memref<32x896xf32, #tpu.memory_space<vmem>>, vector<32x96xf32>
    %cst_47 = arith.constant dense<0.000000e+00> : vector<16x96xf32>
    %104 = tpu.matmul %102, %103, %cst_47 {dimension_numbers = #tpu.dot_dimension_numbers<[1], [0], [0], [1], [0, 0, 1, 1], [], []>} : vector<16x32xf32>, vector<32x96xf32>, vector<16x96xf32> -> vector<16x96xf32>
    %c0_48 = arith.constant 0 : index
    %c384 = arith.constant 384 : index
    %105 = vector.load %arg6[%c0_48, %c384] : memref<1x1024xf32, #tpu.memory_space<vmem>>, vector<1x96xf32>
    %106 = vector.broadcast %105 : vector<1x96xf32> to vector<16x96xf32>
    %107 = arith.addf %104, %106 : vector<16x96xf32>
    %108 = vector.shape_cast %107 : vector<16x96xf32> to vector<2x8x96xf32>
    %109 = vector.extract_strided_slice %108 {offsets = [0, 0, 0], sizes = [2, 8, 8], strides = [1, 1, 1]} : vector<2x8x96xf32> to vector<2x8x8xf32>
    %110 = vector.extract_strided_slice %108 {offsets = [0, 0, 32], sizes = [2, 8, 8], strides = [1, 1, 1]} : vector<2x8x96xf32> to vector<2x8x8xf32>
    %111 = vector.extract_strided_slice %108 {offsets = [0, 0, 64], sizes = [2, 8, 8], strides = [1, 1, 1]} : vector<2x8x96xf32> to vector<2x8x8xf32>
    "tpu.trace_start"() <{level = 10 : i32, message = "bnd,bmd->bnm"}> : () -> ()
    %cst_49 = arith.constant dense<0.000000e+00> : vector<2x8x8xf32>
    %112 = tpu.matmul %109, %110, %cst_49 {dimension_numbers = #tpu.dot_dimension_numbers<[2], [2], [1], [1], [0, 0, 0, 1, 1, 1], [0], [0]>} : vector<2x8x8xf32>, vector<2x8x8xf32>, vector<2x8x8xf32> -> vector<2x8x8xf32>
    "tpu.trace_stop"() : () -> ()
    %cst_50 = arith.constant 0.353553385 : f32
    %113 = vector.broadcast %cst_50 : f32 to vector<2x8x8xf32>
    %114 = arith.mulf %112, %113 : vector<2x8x8xf32>
    %cst_51 = arith.constant -1.000000e+09 : f32
    %115 = vector.broadcast %cst_51 : f32 to vector<2x8x8xf32>
    %116 = arith.select %4, %114, %115 : vector<2x8x8xi1>, vector<2x8x8xf32>
    %cst_52 = arith.constant dense<0xFF800000> : vector<2x8xf32>
    %117 = vector.multi_reduction <maximumf>, %116, %cst_52 [2] : vector<2x8x8xf32> to vector<2x8xf32>
    %118 = vector.shape_cast %117 : vector<2x8xf32> to vector<2x8x1xf32>
    %119 = vector.broadcast %118 : vector<2x8x1xf32> to vector<2x8x8xf32>
    %120 = arith.subf %116, %119 : vector<2x8x8xf32>
    %121 = math.exp %120 : vector<2x8x8xf32>
    %cst_53 = arith.constant dense<0.000000e+00> : vector<2x8xf32>
    %122 = vector.multi_reduction <add>, %121, %cst_53 [2] : vector<2x8x8xf32> to vector<2x8xf32>
    %123 = vector.shape_cast %122 : vector<2x8xf32> to vector<2x8x1xf32>
    %124 = tpu.reciprocal %123 {approx = true} : vector<2x8x1xf32> -> vector<2x8x1xf32>
    %125 = vector.broadcast %124 : vector<2x8x1xf32> to vector<2x8x8xf32>
    %126 = arith.mulf %121, %125 : vector<2x8x8xf32>
    "tpu.trace_start"() <{level = 10 : i32, message = "bnm,bmd->bnd"}> : () -> ()
    %cst_54 = arith.constant dense<0.000000e+00> : vector<2x8x8xf32>
    %127 = tpu.matmul %126, %111, %cst_54 {dimension_numbers = #tpu.dot_dimension_numbers<[2], [1], [1], [2], [0, 0, 0, 1, 1, 2], [0], [0]>} : vector<2x8x8xf32>, vector<2x8x8xf32>, vector<2x8x8xf32> -> vector<2x8x8xf32>
    "tpu.trace_stop"() : () -> ()
    %128 = vector.extract_strided_slice %108 {offsets = [0, 0, 8], sizes = [2, 8, 8], strides = [1, 1, 1]} : vector<2x8x96xf32> to vector<2x8x8xf32>
    %129 = vector.extract_strided_slice %108 {offsets = [0, 0, 40], sizes = [2, 8, 8], strides = [1, 1, 1]} : vector<2x8x96xf32> to vector<2x8x8xf32>
    %130 = vector.extract_strided_slice %108 {offsets = [0, 0, 72], sizes = [2, 8, 8], strides = [1, 1, 1]} : vector<2x8x96xf32> to vector<2x8x8xf32>
    "tpu.trace_start"() <{level = 10 : i32, message = "bnd,bmd->bnm"}> : () -> ()
    %cst_55 = arith.constant dense<0.000000e+00> : vector<2x8x8xf32>
    %131 = tpu.matmul %128, %129, %cst_55 {dimension_numbers = #tpu.dot_dimension_numbers<[2], [2], [1], [1], [0, 0, 0, 1, 1, 1], [0], [0]>} : vector<2x8x8xf32>, vector<2x8x8xf32>, vector<2x8x8xf32> -> vector<2x8x8xf32>
    "tpu.trace_stop"() : () -> ()
    %cst_56 = arith.constant 0.353553385 : f32
    %132 = vector.broadcast %cst_56 : f32 to vector<2x8x8xf32>
    %133 = arith.mulf %131, %132 : vector<2x8x8xf32>
    %cst_57 = arith.constant -1.000000e+09 : f32
    %134 = vector.broadcast %cst_57 : f32 to vector<2x8x8xf32>
    %135 = arith.select %4, %133, %134 : vector<2x8x8xi1>, vector<2x8x8xf32>
    %cst_58 = arith.constant dense<0xFF800000> : vector<2x8xf32>
    %136 = vector.multi_reduction <maximumf>, %135, %cst_58 [2] : vector<2x8x8xf32> to vector<2x8xf32>
    %137 = vector.shape_cast %136 : vector<2x8xf32> to vector<2x8x1xf32>
    %138 = vector.broadcast %137 : vector<2x8x1xf32> to vector<2x8x8xf32>
    %139 = arith.subf %135, %138 : vector<2x8x8xf32>
    %140 = math.exp %139 : vector<2x8x8xf32>
    %cst_59 = arith.constant dense<0.000000e+00> : vector<2x8xf32>
    %141 = vector.multi_reduction <add>, %140, %cst_59 [2] : vector<2x8x8xf32> to vector<2x8xf32>
    %142 = vector.shape_cast %141 : vector<2x8xf32> to vector<2x8x1xf32>
    %143 = tpu.reciprocal %142 {approx = true} : vector<2x8x1xf32> -> vector<2x8x1xf32>
    %144 = vector.broadcast %143 : vector<2x8x1xf32> to vector<2x8x8xf32>
    %145 = arith.mulf %140, %144 : vector<2x8x8xf32>
    "tpu.trace_start"() <{level = 10 : i32, message = "bnm,bmd->bnd"}> : () -> ()
    %cst_60 = arith.constant dense<0.000000e+00> : vector<2x8x8xf32>
    %146 = tpu.matmul %145, %130, %cst_60 {dimension_numbers = #tpu.dot_dimension_numbers<[2], [1], [1], [2], [0, 0, 0, 1, 1, 2], [0], [0]>} : vector<2x8x8xf32>, vector<2x8x8xf32>, vector<2x8x8xf32> -> vector<2x8x8xf32>
    "tpu.trace_stop"() : () -> ()
    %147 = vector.extract_strided_slice %108 {offsets = [0, 0, 16], sizes = [2, 8, 8], strides = [1, 1, 1]} : vector<2x8x96xf32> to vector<2x8x8xf32>
    %148 = vector.extract_strided_slice %108 {offsets = [0, 0, 48], sizes = [2, 8, 8], strides = [1, 1, 1]} : vector<2x8x96xf32> to vector<2x8x8xf32>
    %149 = vector.extract_strided_slice %108 {offsets = [0, 0, 80], sizes = [2, 8, 8], strides = [1, 1, 1]} : vector<2x8x96xf32> to vector<2x8x8xf32>
    "tpu.trace_start"() <{level = 10 : i32, message = "bnd,bmd->bnm"}> : () -> ()
    %cst_61 = arith.constant dense<0.000000e+00> : vector<2x8x8xf32>
    %150 = tpu.matmul %147, %148, %cst_61 {dimension_numbers = #tpu.dot_dimension_numbers<[2], [2], [1], [1], [0, 0, 0, 1, 1, 1], [0], [0]>} : vector<2x8x8xf32>, vector<2x8x8xf32>, vector<2x8x8xf32> -> vector<2x8x8xf32>
    "tpu.trace_stop"() : () -> ()
    %cst_62 = arith.constant 0.353553385 : f32
    %151 = vector.broadcast %cst_62 : f32 to vector<2x8x8xf32>
    %152 = arith.mulf %150, %151 : vector<2x8x8xf32>
    %cst_63 = arith.constant -1.000000e+09 : f32
    %153 = vector.broadcast %cst_63 : f32 to vector<2x8x8xf32>
    %154 = arith.select %4, %152, %153 : vector<2x8x8xi1>, vector<2x8x8xf32>
    %cst_64 = arith.constant dense<0xFF800000> : vector<2x8xf32>
    %155 = vector.multi_reduction <maximumf>, %154, %cst_64 [2] : vector<2x8x8xf32> to vector<2x8xf32>
    %156 = vector.shape_cast %155 : vector<2x8xf32> to vector<2x8x1xf32>
    %157 = vector.broadcast %156 : vector<2x8x1xf32> to vector<2x8x8xf32>
    %158 = arith.subf %154, %157 : vector<2x8x8xf32>
    %159 = math.exp %158 : vector<2x8x8xf32>
    %cst_65 = arith.constant dense<0.000000e+00> : vector<2x8xf32>
    %160 = vector.multi_reduction <add>, %159, %cst_65 [2] : vector<2x8x8xf32> to vector<2x8xf32>
    %161 = vector.shape_cast %160 : vector<2x8xf32> to vector<2x8x1xf32>
    %162 = tpu.reciprocal %161 {approx = true} : vector<2x8x1xf32> -> vector<2x8x1xf32>
    %163 = vector.broadcast %162 : vector<2x8x1xf32> to vector<2x8x8xf32>
    %164 = arith.mulf %159, %163 : vector<2x8x8xf32>
    "tpu.trace_start"() <{level = 10 : i32, message = "bnm,bmd->bnd"}> : () -> ()
    %cst_66 = arith.constant dense<0.000000e+00> : vector<2x8x8xf32>
    %165 = tpu.matmul %164, %149, %cst_66 {dimension_numbers = #tpu.dot_dimension_numbers<[2], [1], [1], [2], [0, 0, 0, 1, 1, 2], [0], [0]>} : vector<2x8x8xf32>, vector<2x8x8xf32>, vector<2x8x8xf32> -> vector<2x8x8xf32>
    "tpu.trace_stop"() : () -> ()
    %166 = vector.extract_strided_slice %108 {offsets = [0, 0, 24], sizes = [2, 8, 8], strides = [1, 1, 1]} : vector<2x8x96xf32> to vector<2x8x8xf32>
    %167 = vector.extract_strided_slice %108 {offsets = [0, 0, 56], sizes = [2, 8, 8], strides = [1, 1, 1]} : vector<2x8x96xf32> to vector<2x8x8xf32>
    %168 = vector.extract_strided_slice %108 {offsets = [0, 0, 88], sizes = [2, 8, 8], strides = [1, 1, 1]} : vector<2x8x96xf32> to vector<2x8x8xf32>
    "tpu.trace_start"() <{level = 10 : i32, message = "bnd,bmd->bnm"}> : () -> ()
    %cst_67 = arith.constant dense<0.000000e+00> : vector<2x8x8xf32>
    %169 = tpu.matmul %166, %167, %cst_67 {dimension_numbers = #tpu.dot_dimension_numbers<[2], [2], [1], [1], [0, 0, 0, 1, 1, 1], [0], [0]>} : vector<2x8x8xf32>, vector<2x8x8xf32>, vector<2x8x8xf32> -> vector<2x8x8xf32>
    "tpu.trace_stop"() : () -> ()
    %cst_68 = arith.constant 0.353553385 : f32
    %170 = vector.broadcast %cst_68 : f32 to vector<2x8x8xf32>
    %171 = arith.mulf %169, %170 : vector<2x8x8xf32>
    %cst_69 = arith.constant -1.000000e+09 : f32
    %172 = vector.broadcast %cst_69 : f32 to vector<2x8x8xf32>
    %173 = arith.select %4, %171, %172 : vector<2x8x8xi1>, vector<2x8x8xf32>
    %cst_70 = arith.constant dense<0xFF800000> : vector<2x8xf32>
    %174 = vector.multi_reduction <maximumf>, %173, %cst_70 [2] : vector<2x8x8xf32> to vector<2x8xf32>
    %175 = vector.shape_cast %174 : vector<2x8xf32> to vector<2x8x1xf32>
    %176 = vector.broadcast %175 : vector<2x8x1xf32> to vector<2x8x8xf32>
    %177 = arith.subf %173, %176 : vector<2x8x8xf32>
    %178 = math.exp %177 : vector<2x8x8xf32>
    %cst_71 = arith.constant dense<0.000000e+00> : vector<2x8xf32>
    %179 = vector.multi_reduction <add>, %178, %cst_71 [2] : vector<2x8x8xf32> to vector<2x8xf32>
    %180 = vector.shape_cast %179 : vector<2x8xf32> to vector<2x8x1xf32>
    %181 = tpu.reciprocal %180 {approx = true} : vector<2x8x1xf32> -> vector<2x8x1xf32>
    %182 = vector.broadcast %181 : vector<2x8x1xf32> to vector<2x8x8xf32>
    %183 = arith.mulf %178, %182 : vector<2x8x8xf32>
    "tpu.trace_start"() <{level = 10 : i32, message = "bnm,bmd->bnd"}> : () -> ()
    %cst_72 = arith.constant dense<0.000000e+00> : vector<2x8x8xf32>
    %184 = tpu.matmul %183, %168, %cst_72 {dimension_numbers = #tpu.dot_dimension_numbers<[2], [1], [1], [2], [0, 0, 0, 1, 1, 2], [0], [0]>} : vector<2x8x8xf32>, vector<2x8x8xf32>, vector<2x8x8xf32> -> vector<2x8x8xf32>
    "tpu.trace_stop"() : () -> ()
    %185 = tpu.concatenate %127, %146, %165, %184 in 2 : vector<2x8x8xf32>, vector<2x8x8xf32>, vector<2x8x8xf32>, vector<2x8x8xf32> -> vector<2x8x32xf32>
    %186 = vector.shape_cast %185 : vector<2x8x32xf32> to vector<16x32xf32>
    %c0_73 = arith.constant 0 : index
    %c384_74 = arith.constant 384 : index
    %187 = vector.load %arg5[%c0_73, %c384_74] : memref<32x896xf32, #tpu.memory_space<vmem>>, vector<32x32xf32>
    %cst_75 = arith.constant dense<0.000000e+00> : vector<16x32xf32>
    %188 = tpu.matmul %186, %187, %cst_75 {dimension_numbers = #tpu.dot_dimension_numbers<[1], [0], [0], [1], [0, 0, 1, 1], [], []>} : vector<16x32xf32>, vector<32x32xf32>, vector<16x32xf32> -> vector<16x32xf32>
    %c0_76 = arith.constant 0 : index
    %c512 = arith.constant 512 : index
    %189 = vector.load %arg6[%c0_76, %c512] : memref<1x1024xf32, #tpu.memory_space<vmem>>, vector<1x32xf32>
    %190 = vector.broadcast %189 : vector<1x32xf32> to vector<16x32xf32>
    %191 = arith.addf %188, %190 : vector<16x32xf32>
    %cst_77 = arith.constant 0.000000e+00 : f32
    %192 = vector.broadcast %cst_77 : f32 to vector<16x32xf32>
    %193 = arith.maximumf %191, %192 : vector<16x32xf32>
    %c0_78 = arith.constant 0 : index
    %c512_79 = arith.constant 512 : index
    %194 = vector.load %arg5[%c0_78, %c512_79] : memref<32x896xf32, #tpu.memory_space<vmem>>, vector<32x96xf32>
    %cst_80 = arith.constant dense<0.000000e+00> : vector<16x96xf32>
    %195 = tpu.matmul %193, %194, %cst_80 {dimension_numbers = #tpu.dot_dimension_numbers<[1], [0], [0], [1], [0, 0, 1, 1], [], []>} : vector<16x32xf32>, vector<32x96xf32>, vector<16x96xf32> -> vector<16x96xf32>
    %c0_81 = arith.constant 0 : index
    %c640 = arith.constant 640 : index
    %196 = vector.load %arg6[%c0_81, %c640] : memref<1x1024xf32, #tpu.memory_space<vmem>>, vector<1x96xf32>
    %197 = vector.broadcast %196 : vector<1x96xf32> to vector<16x96xf32>
    %198 = arith.addf %195, %197 : vector<16x96xf32>
    %c0_82 = arith.constant 0 : index
    %c640_83 = arith.constant 640 : index
    %199 = vector.load %arg5[%c0_82, %c640_83] : memref<32x896xf32, #tpu.memory_space<vmem>>, vector<32x96xf32>
    %cst_84 = arith.constant dense<0.000000e+00> : vector<16x96xf32>
    %200 = tpu.matmul %1, %199, %cst_84 {dimension_numbers = #tpu.dot_dimension_numbers<[1], [0], [0], [1], [0, 0, 1, 1], [], []>} : vector<16x32xf32>, vector<32x96xf32>, vector<16x96xf32> -> vector<16x96xf32>
    %c0_85 = arith.constant 0 : index
    %c768 = arith.constant 768 : index
    %201 = vector.load %arg6[%c0_85, %c768] : memref<1x1024xf32, #tpu.memory_space<vmem>>, vector<1x96xf32>
    %202 = vector.broadcast %201 : vector<1x96xf32> to vector<16x96xf32>
    %203 = arith.addf %200, %202 : vector<16x96xf32>
    %204 = vector.extract_strided_slice %198 {offsets = [0, 0], sizes = [16, 32], strides = [1, 1]} : vector<16x96xf32> to vector<16x32xf32>
    %205 = vector.extract_strided_slice %203 {offsets = [0, 0], sizes = [16, 32], strides = [1, 1]} : vector<16x96xf32> to vector<16x32xf32>
    %206 = arith.addf %204, %205 : vector<16x32xf32>
    %207 = arith.negf %206 : vector<16x32xf32>
    %208 = math.exp %207 : vector<16x32xf32>
    %cst_86 = arith.constant 1.000000e+00 : f32
    %209 = vector.broadcast %cst_86 : f32 to vector<16x32xf32>
    %210 = arith.addf %209, %208 : vector<16x32xf32>
    %211 = arith.divf %209, %210 : vector<16x32xf32>
    %212 = vector.extract_strided_slice %198 {offsets = [0, 32], sizes = [16, 32], strides = [1, 1]} : vector<16x96xf32> to vector<16x32xf32>
    %213 = vector.extract_strided_slice %203 {offsets = [0, 32], sizes = [16, 32], strides = [1, 1]} : vector<16x96xf32> to vector<16x32xf32>
    %214 = arith.addf %212, %213 : vector<16x32xf32>
    %215 = arith.negf %214 : vector<16x32xf32>
    %216 = math.exp %215 : vector<16x32xf32>
    %cst_87 = arith.constant 1.000000e+00 : f32
    %217 = vector.broadcast %cst_87 : f32 to vector<16x32xf32>
    %218 = arith.addf %217, %216 : vector<16x32xf32>
    %219 = arith.divf %217, %218 : vector<16x32xf32>
    %220 = vector.extract_strided_slice %198 {offsets = [0, 64], sizes = [16, 32], strides = [1, 1]} : vector<16x96xf32> to vector<16x32xf32>
    %221 = vector.extract_strided_slice %203 {offsets = [0, 64], sizes = [16, 32], strides = [1, 1]} : vector<16x96xf32> to vector<16x32xf32>
    %222 = arith.mulf %211, %221 : vector<16x32xf32>
    %223 = arith.addf %220, %222 : vector<16x32xf32>
    %224 = math.tanh %223 : vector<16x32xf32>
    %cst_88 = arith.constant 1.000000e+00 : f32
    %225 = vector.broadcast %cst_88 : f32 to vector<16x32xf32>
    %226 = arith.subf %225, %219 : vector<16x32xf32>
    %227 = arith.mulf %226, %224 : vector<16x32xf32>
    %228 = arith.mulf %219, %1 : vector<16x32xf32>
    %229 = arith.addf %227, %228 : vector<16x32xf32>
    %c0_89 = arith.constant 0 : index
    %c768_90 = arith.constant 768 : index
    %230 = vector.load %arg5[%c0_89, %c768_90] : memref<32x896xf32, #tpu.memory_space<vmem>>, vector<32x8xf32>
    %cst_91 = arith.constant dense<0.000000e+00> : vector<16x8xf32>
    %231 = tpu.matmul %229, %230, %cst_91 {dimension_numbers = #tpu.dot_dimension_numbers<[1], [0], [0], [1], [0, 0, 1, 1], [], []>} : vector<16x32xf32>, vector<32x8xf32>, vector<16x8xf32> -> vector<16x8xf32>
    %c0_92 = arith.constant 0 : index
    %c896 = arith.constant 896 : index
    %232 = vector.load %arg6[%c0_92, %c896] : memref<1x1024xf32, #tpu.memory_space<vmem>>, vector<1x8xf32>
    %233 = vector.broadcast %232 : vector<1x8xf32> to vector<16x8xf32>
    %234 = arith.addf %231, %233 : vector<16x8xf32>
    %cst_93 = arith.constant 0.000000e+00 : f32
    %235 = vector.broadcast %cst_93 : f32 to vector<16x88xf32>
    %236 = tpu.concatenate %234, %229, %235 in 1 : vector<16x8xf32>, vector<16x32xf32>, vector<16x88xf32> -> vector<16x128xf32>
    %c0_94 = arith.constant 0 : index
    %c0_95 = arith.constant 0 : index
    %237 = vector.load %arg7[%c0_94, %c0_95] : memref<16x128xf32, #tpu.memory_space<vmem>>, vector<16x128xf32>
    tpu.vector_store %arg7[%c0_94, %c0_95], %236 {strides = array<i32>} : memref<16x128xf32, #tpu.memory_space<vmem>>, vector<16x128xf32>,
    return
  }
  func.func @transform_0(%arg0: i32) -> (i32, i32) {
    %c0_i32 = arith.constant 0 : i32
    %c0_i32_0 = arith.constant 0 : i32
    return %arg0, %c0_i32 : i32, i32
  }
  func.func @transform_1(%arg0: i32) -> (i32, i32, i32) {
    %c0_i32 = arith.constant 0 : i32
    %c0_i32_0 = arith.constant 0 : i32
    %c0_i32_1 = arith.constant 0 : i32
    return %arg0, %c0_i32, %c0_i32_0 : i32, i32, i32
  }
  func.func @transform_2(%arg0: i32) -> (i32, i32) {
    %c0_i32 = arith.constant 0 : i32
    %c0_i32_0 = arith.constant 0 : i32
    return %arg0, %c0_i32 : i32, i32
  }
  func.func @transform_3(%arg0: i32) -> (i32, i32) {
    %c0_i32 = arith.constant 0 : i32
    %c0_i32_0 = arith.constant 0 : i32
    %c0_i32_1 = arith.constant 0 : i32
    return %c0_i32, %c0_i32_0 : i32, i32
  }
  func.func @transform_4(%arg0: i32) -> (i32, i32) {
    %c0_i32 = arith.constant 0 : i32
    %c0_i32_0 = arith.constant 0 : i32
    %c0_i32_1 = arith.constant 0 : i32
    return %c0_i32, %c0_i32_0 : i32, i32
  }
  func.func @transform_5(%arg0: i32) -> (i32, i32) {
    %c0_i32 = arith.constant 0 : i32
    %c0_i32_0 = arith.constant 0 : i32
    %c0_i32_1 = arith.constant 0 : i32
    return %c0_i32, %c0_i32_0 : i32, i32
  }
  func.func @transform_6(%arg0: i32) -> (i32, i32) {
    %c0_i32 = arith.constant 0 : i32
    %c0_i32_0 = arith.constant 0 : i32
    return %arg0, %c0_i32 : i32, i32
  }
}

</mosaic_0001>

<llo_original>
// kernel: tpu_custom_call.1
$region0: #{tpu_custom_call.1}
  #allocation0 [shape = 'u32[]', space=smem, size = 0x4, offset = 0x4, fixed_abs, tag = 'smem constant byte address 0x4 - core index']
  #allocation1 [shape = 'u32[144,128]{1,0:T(1,128)}', space=vmem, size = 0x12000, scoped, tag = 'internal scratch']
  %s0 = inlined_call_operand.hbm [shape: f32[16,16], index: 0, kind: input, shape index: {}]
  %s1 = inlined_call_operand.hbm [shape: f32[2,8,8], index: 1, kind: input, shape index: {}]
  %s2 = inlined_call_operand.hbm [shape: f32[16,32], index: 2, kind: input, shape index: {}]
  %s3 = inlined_call_operand.hbm [shape: f32[16,32], index: 3, kind: input, shape index: {}]
  %s4 = inlined_call_operand.hbm [shape: f32[32,896], index: 4, kind: input, shape index: {}]
  %s5 = inlined_call_operand.vmem [shape: f32[1,1024], index: 5, kind: input, shape index: {}]
  %s6 = inlined_call_operand.hbm [shape: f32[16,128], index: 6, kind: output, shape index: {}]
  %s7 = sld [smem:[#allocation0]]
  $region54: #{tpu_custom_call.1} parent=0
    _
  %s9 = ssub.s32 1, %s7
  %s10 = scalar_select 0, %s9, %s7
  $region1: #{tpu_custom_call.1} parent=0
    #allocation2 [shape = 'u8[8192]{0}', space=vmem, size = 0x2000, scoped, tag = 'input window, operand 0, single buffered']
    #allocation3 [shape = 's32[1]{0}', space=sflag, size = 0x4, scoped, tag = 'scoped memory for tpu_custom_call.1']
    #allocation4 [shape = 's32[1]{0}', space=sflag, size = 0x4, scoped, tag = 'scoped memory for tpu_custom_call.1']
    #allocation5 [shape = 'u8[8192]{0}', space=vmem, size = 0x2000, scoped, tag = 'input window, operand 1, single buffered']
    #allocation6 [shape = 's32[1]{0}', space=sflag, size = 0x4, scoped, tag = 'scoped memory for tpu_custom_call.1']
    #allocation7 [shape = 'u8[8192]{0}', space=vmem, size = 0x2000, scoped, tag = 'input window, operand 2, single buffered']
    #allocation8 [shape = 'u8[8192]{0}', space=vmem, size = 0x2000, scoped, tag = 'input window, operand 3, single buffered']
    #allocation9 [shape = 's32[1]{0}', space=sflag, size = 0x4, scoped, tag = 'scoped memory for tpu_custom_call.1']
    #allocation10 [shape = 'u8[114688]{0}', space=vmem, size = 0x1c000, scoped, tag = 'input window, operand 4, single buffered']
    #allocation11 [shape = 'u8[8192]{0}', space=vmem, size = 0x2000, scoped, tag = 'output window, operand 0, single buffered']
    %11 = vsyncpa [#allocation3], 0
    %12 = vsyncpa [#allocation6], 0
    %13 = vsyncpa [#allocation9], 0
    %14 = vsyncpa [#allocation4], 0
    // Predicated region
    $region2: #{tpu_custom_call.1} parent=1 // pred_check
      _
    $region3: #{tpu_custom_call.1} parent=1 // pred_check_branch
      %16 = sbr.rel (0) target = $region5
    $region4: #{tpu_custom_call.1} parent=1 // pred_region
      %s18 = ssub.s32 256, 256
      %19 = vsyncadd [#allocation3], %s18
      %s20 = sshll.u32 [#allocation2], 4
      %s21 = int_to_ptr.vmem [resolvable:$true] %s20
      %26 = dma.hbm_to_vmem [thread:$0]  %s0, 256, %s21, [#allocation3], 128, 128, 8
    $region5: #{tpu_custom_call.1} parent=1 // pred_fallthru
      _
    // Predicated region
    $region6: #{tpu_custom_call.1} parent=1 // pred_check
      _
    $region7: #{tpu_custom_call.1} parent=1 // pred_check_branch
      %28 = sbr.rel (0) target = $region9
    $region8: #{tpu_custom_call.1} parent=1 // pred_region
      %s30 = ssub.s32 256, 256
      %31 = vsyncadd [#allocation6], %s30
      %s32 = sshll.u32 [#allocation5], 4
      %s33 = int_to_ptr.vmem [resolvable:$true] %s32
      %38 = dma.hbm_to_vmem [thread:$0]  %s1, 256, %s33, [#allocation6], 128, 128, 8
    $region9: #{tpu_custom_call.1} parent=1 // pred_fallthru
      _
    // Predicated region
    $region10: #{tpu_custom_call.1} parent=1 // pred_check
      _
    $region11: #{tpu_custom_call.1} parent=1 // pred_check_branch
      %40 = sbr.rel (0) target = $region13
    $region12: #{tpu_custom_call.1} parent=1 // pred_region
      %s42 = ssub.s32 256, 256
      %43 = vsyncadd [#allocation6], %s42
      %s44 = sshll.u32 [#allocation7], 4
      %s45 = int_to_ptr.vmem [resolvable:$true] %s44
      %50 = dma.hbm_to_vmem [thread:$0]  %s2, 256, %s45, [#allocation6], 128, 128, 8
    $region13: #{tpu_custom_call.1} parent=1 // pred_fallthru
      _
    // Predicated region
    $region14: #{tpu_custom_call.1} parent=1 // pred_check
      _
    $region15: #{tpu_custom_call.1} parent=1 // pred_check_branch
      %52 = sbr.rel (0) target = $region17
    $region16: #{tpu_custom_call.1} parent=1 // pred_region
      %s54 = ssub.s32 256, 256
      %55 = vsyncadd [#allocation9], %s54
      %s56 = sshll.u32 [#allocation8], 4
      %s57 = int_to_ptr.vmem [resolvable:$true] %s56
      %62 = dma.hbm_to_vmem [thread:$0]  %s3, 256, %s57, [#allocation9], 128, 128, 8
    $region17: #{tpu_custom_call.1} parent=1 // pred_fallthru
      _
    // Predicated region
    $region18: #{tpu_custom_call.1} parent=1 // pred_check
      _
    $region19: #{tpu_custom_call.1} parent=1 // pred_check_branch
      %64 = sbr.rel (0) target = $region21
    $region20: #{tpu_custom_call.1} parent=1 // pred_region
      %s66 = ssub.s32 3584, 3584
      %67 = vsyncadd [#allocation9], %s66
      %s68 = sshll.u32 [#allocation10], 4
      %s69 = int_to_ptr.vmem [resolvable:$true] %s68
      %74 = dma.hbm_to_vmem [thread:$0]  %s4, 3584, %s69, [#allocation9], 896, 896, 56
    $region21: #{tpu_custom_call.1} parent=1 // pred_fallthru
      _
    // Predicated region
    $region22: #{tpu_custom_call.1} parent=1 // pred_check
      _
    $region23: #{tpu_custom_call.1} parent=1 // pred_check_branch
      %76 = sbr.rel (0) target = $region25
    $region24: #{tpu_custom_call.1} parent=1 // pred_region
      _
    $region25: #{tpu_custom_call.1} parent=1 // pred_fallthru
      _
    // Predicated region
    $region26: #{tpu_custom_call.1} parent=1 // pred_check
      _
    $region27: #{tpu_custom_call.1} parent=1 // pred_check_branch
      %78 = sbr.rel (0) target = $region29
    $region28: #{tpu_custom_call.1} parent=1 // pred_region
      %79 = dma.done [#allocation3], 256
    $region29: #{tpu_custom_call.1} parent=1 // pred_fallthru
      _
    // Predicated region
    $region30: #{tpu_custom_call.1} parent=1 // pred_check
      _
    $region31: #{tpu_custom_call.1} parent=1 // pred_check_branch
      %81 = sbr.rel (0) target = $region33
    $region32: #{tpu_custom_call.1} parent=1 // pred_region
      %82 = dma.done [#allocation6], 256
    $region33: #{tpu_custom_call.1} parent=1 // pred_fallthru
      _
    // Predicated region
    $region34: #{tpu_custom_call.1} parent=1 // pred_check
      _
    $region35: #{tpu_custom_call.1} parent=1 // pred_check_branch
      %84 = sbr.rel (0) target = $region37
    $region36: #{tpu_custom_call.1} parent=1 // pred_region
      %85 = dma.done [#allocation6], 256
    $region37: #{tpu_custom_call.1} parent=1 // pred_fallthru
      _
    // Predicated region
    $region38: #{tpu_custom_call.1} parent=1 // pred_check
      _
    $region39: #{tpu_custom_call.1} parent=1 // pred_check_branch
      %87 = sbr.rel (0) target = $region41
    $region40: #{tpu_custom_call.1} parent=1 // pred_region
      %88 = dma.done [#allocation9], 256
    $region41: #{tpu_custom_call.1} parent=1 // pred_fallthru
      _
    // Predicated region
    $region42: #{tpu_custom_call.1} parent=1 // pred_check
      _
    $region43: #{tpu_custom_call.1} parent=1 // pred_check_branch
      %90 = sbr.rel (0) target = $region45
    $region44: #{tpu_custom_call.1} parent=1 // pred_region
      %91 = dma.done [#allocation9], 3584
    $region45: #{tpu_custom_call.1} parent=1 // pred_fallthru
      _
    %v92 = vld [vmem:[#allocation2] sm:$0xff]
    %v93 = vld [vmem:[#allocation2 + $0x8] sm:$0xff]
    %v94 = vld [vmem:[#allocation7] sm:$0xff]
    %v95 = vld [vmem:[#allocation7 + $0x8] sm:$0xff]
    %v96 = vld [vmem:[#allocation5] sm:$0xff]
    %v97 = vld [vmem:[#allocation5 + $0x8] sm:$0xff]
    %vm98 = vcmp.gt.f32.partialorder %v96, 0.0
    %vm99 = vcmp.gt.f32.partialorder %v97, 0.0
    %v100 = vld [vmem:[#allocation8] sm:$0xff]
    %v101 = vld [vmem:[#allocation8 + $0x8] sm:$0xff]
    %v102 = vld [vmem:[%s5] sm:$0x1]
    %v104 = vlaneseq
    %v105 = vshrl.u32 %v104, 7
    %v106 = vsub.s32 0, %v105
    %v107 = vrot.slane %v102, %v106
    %vm109 = vcmask 130048
    %v111 = vsel %vm109, %v92, 0
    %v114 = vsel %vm109, %v93, 0
    %116 = vmatprep.subr.mxu0 0.0
    %117 = vmatpush1.msra.mxu0 0.0
    %118 = vmatprep.subr.mxu0 0.0
    %119 = vmatpush1.msra.mxu0 0.0
    %120 = vmatprep.subr.mxu0 0.0
    %121 = vmatpush1.msra.mxu0 0.0
    %122 = vmatprep.subr.mxu0 0.0
    %123 = vmatpush1.msra.mxu0 0.0
    %124 = vmatprep.subr.mxu0 0.0
    %125 = vmatpush1.msra.mxu0 0.0
    %126 = vmatprep.subr.mxu0 0.0
    %127 = vmatpush1.msra.mxu0 0.0
    %128 = vmatprep.subr.mxu0 0.0
    %129 = vmatpush1.msra.mxu0 0.0
    %130 = vmatprep.subr.mxu0 0.0
    %131 = vmatpush1.msra.mxu0 0.0
    %132 = vmatprep.subr.mxu0 0.0
    %133 = vmatpush1.msra.mxu0 0.0
    %134 = vmatprep.subr.mxu0 0.0
    %135 = vmatpush1.msra.mxu0 0.0
    %136 = vmatprep.subr.mxu0 0.0
    %137 = vmatpush1.msra.mxu0 0.0
    %138 = vmatprep.subr.mxu0 0.0
    %139 = vmatpush1.msra.mxu0 0.0
    %140 = vmatprep.subr.mxu0 0.0
    %141 = vmatpush1.msra.mxu0 0.0
    %142 = vmatprep.subr.mxu0 0.0
    %143 = vmatpush1.msra.mxu0 0.0
    %144 = vmatprep.subr.mxu0 0.0
    %145 = vmatpush1.msra.mxu0 %v101
    %146 = vmatprep.subr.mxu0 0.0
    %147 = vmatpush1.msra.mxu0 %v100
    %148 = vmatprep.subr.mxu0 0.0
    %149 = vmatpush2.msra.mxu0 0.0
    %150 = vmatprep.subr.mxu0 0.0
    %151 = vmatpush2.msra.mxu0 0.0
    %152 = vmatprep.subr.mxu0 0.0
    %153 = vmatpush2.msra.mxu0 0.0
    %154 = vmatprep.subr.mxu0 0.0
    %155 = vmatpush2.msra.mxu0 0.0
    %156 = vmatprep.subr.mxu0 0.0
    %157 = vmatpush2.msra.mxu0 0.0
    %158 = vmatprep.subr.mxu0 0.0
    %159 = vmatpush2.msra.mxu0 0.0
    %160 = vmatprep.subr.mxu0 0.0
    %161 = vmatpush2.msra.mxu0 0.0
    %162 = vmatprep.subr.mxu0 0.0
    %163 = vmatpush2.msra.mxu0 0.0
    %164 = vmatprep.subr.mxu0 0.0
    %165 = vmatpush2.msra.mxu0 0.0
    %166 = vmatprep.subr.mxu0 0.0
    %167 = vmatpush2.msra.mxu0 0.0
    %168 = vmatprep.subr.mxu0 0.0
    %169 = vmatpush2.msra.mxu0 0.0
    %170 = vmatprep.subr.mxu0 0.0
    %171 = vmatpush2.msra.mxu0 0.0
    %172 = vmatprep.subr.mxu0 0.0
    %173 = vmatpush2.msra.mxu0 0.0
    %174 = vmatprep.subr.mxu0 0.0
    %175 = vmatpush2.msra.mxu0 0.0
    %176 = vmatprep.subr.mxu0 0.0
    %177 = vmatpush2.msra.mxu0 0.0
    %178 = vmatprep.subr.mxu0 0.0
    %179 = vmatpush2.msra.mxu0 0.0
    %180 = vmatprep.mubr.f32.mxu0 0.0
    %181 = vmatmul.mubr.f32.gmra.mxu0 %v111
    %v182 = vpop.f32.mrf.mxu0
    %v183 = vadd.f32 %v107, %v182
    %v184 = vpop.f32.mrf.mxu0
    %185 = vmatprep.mubr.f32.mxu0 0.0
    %186 = vmatmul.mubr.f32.gmra.mxu0 %v114
    %v187 = vpop.f32.mrf.mxu0
    %v188 = vadd.f32 %v107, %v187
    %v189 = vpop.f32.mrf.mxu0
    %190 = vdwg.mxu0
    %v191 = vmax.f32 %v183, 0.0
    %v192 = vmax.f32 %v188, 0.0
    %v193 = vld [vmem:[#allocation10] sm:$0xff]
    %v194 = vld [vmem:[#allocation10 + $0x38] sm:$0xff]
    %v195 = vld [vmem:[#allocation10 + $0x70] sm:$0xff]
    %v196 = vld [vmem:[#allocation10 + $0xa8] sm:$0xff]
    %v197 = vld [vmem:[%s5 + $0x1] sm:$0x1]
    %v199 = vlaneseq
    %v200 = vshrl.u32 %v199, 7
    %v201 = vsub.s32 0, %v200
    %v202 = vrot.slane %v197, %v201
    %vm204 = vcmask 261120
    %v206 = vsel %vm204, %v191, 0
    %v209 = vsel %vm204, %v192, 0
    %211 = vmatprep.subr.mxu0 0.0
    %212 = vmatpush1.msra.mxu0 0.0
    %213 = vmatprep.subr.mxu0 0.0
    %214 = vmatpush1.msra.mxu0 0.0
    %215 = vmatprep.subr.mxu0 0.0
    %216 = vmatpush1.msra.mxu0 0.0
    %217 = vmatprep.subr.mxu0 0.0
    %218 = vmatpush1.msra.mxu0 0.0
    %219 = vmatprep.subr.mxu0 0.0
    %220 = vmatpush1.msra.mxu0 0.0
    %221 = vmatprep.subr.mxu0 0.0
    %222 = vmatpush1.msra.mxu0 0.0
    %223 = vmatprep.subr.mxu0 0.0
    %224 = vmatpush1.msra.mxu0 0.0
    %225 = vmatprep.subr.mxu0 0.0
    %226 = vmatpush1.msra.mxu0 0.0
    %227 = vmatprep.subr.mxu0 0.0
    %228 = vmatpush1.msra.mxu0 0.0
    %229 = vmatprep.subr.mxu0 0.0
    %230 = vmatpush1.msra.mxu0 0.0
    %231 = vmatprep.subr.mxu0 0.0
    %232 = vmatpush1.msra.mxu0 0.0
    %233 = vmatprep.subr.mxu0 0.0
    %234 = vmatpush1.msra.mxu0 0.0
    %235 = vmatprep.subr.mxu0 0.0
    %236 = vmatpush1.msra.mxu0 %v196
    %237 = vmatprep.subr.mxu0 0.0
    %238 = vmatpush1.msra.mxu0 %v195
    %239 = vmatprep.subr.mxu0 0.0
    %240 = vmatpush1.msra.mxu0 %v194
    %241 = vmatprep.subr.mxu0 0.0
    %242 = vmatpush1.msra.mxu0 %v193
    %243 = vmatprep.subr.mxu0 0.0
    %244 = vmatpush2.msra.mxu0 0.0
    %245 = vmatprep.subr.mxu0 0.0
    %246 = vmatpush2.msra.mxu0 0.0
    %247 = vmatprep.subr.mxu0 0.0
    %248 = vmatpush2.msra.mxu0 0.0
    %249 = vmatprep.subr.mxu0 0.0
    %250 = vmatpush2.msra.mxu0 0.0
    %251 = vmatprep.subr.mxu0 0.0
    %252 = vmatpush2.msra.mxu0 0.0
    %253 = vmatprep.subr.mxu0 0.0
    %254 = vmatpush2.msra.mxu0 0.0
    %255 = vmatprep.subr.mxu0 0.0
    %256 = vmatpush2.msra.mxu0 0.0
    %257 = vmatprep.subr.mxu0 0.0
    %258 = vmatpush2.msra.mxu0 0.0
    %259 = vmatprep.subr.mxu0 0.0
    %260 = vmatpush2.msra.mxu0 0.0
    %261 = vmatprep.subr.mxu0 0.0
    %262 = vmatpush2.msra.mxu0 0.0
    %263 = vmatprep.subr.mxu0 0.0
    %264 = vmatpush2.msra.mxu0 0.0
    %265 = vmatprep.subr.mxu0 0.0
    %266 = vmatpush2.msra.mxu0 0.0
    %267 = vmatprep.subr.mxu0 0.0
    %268 = vmatpush2.msra.mxu0 0.0
    %269 = vmatprep.subr.mxu0 0.0
    %270 = vmatpush2.msra.mxu0 0.0
    %271 = vmatprep.subr.mxu0 0.0
    %272 = vmatpush2.msra.mxu0 0.0
    %273 = vmatprep.subr.mxu0 0.0
    %274 = vmatpush2.msra.mxu0 0.0
    %275 = vmatprep.mubr.f32.mxu0 0.0
    %276 = vmatmul.mubr.f32.gmra.mxu0 %v206
    %v277 = vpop.f32.mrf.mxu0
    %v278 = vadd.f32 %v202, %v277
    %v279 = vpop.f32.mrf.mxu0
    %280 = vmatprep.mubr.f32.mxu0 0.0
    %281 = vmatmul.mubr.f32.gmra.mxu0 %v209
    %v282 = vpop.f32.mrf.mxu0
    %v283 = vadd.f32 %v202, %v282
    %v284 = vpop.f32.mrf.mxu0
    %285 = vdwg.mxu0
    %287 = vrot.lane.b32.xlu0 %v278, 96
    %v288 = vpop.permute.xlu0 %287
    %vm289 = vcmask 64512
    %v290 = vsel %vm289, %v278, 0
    %v292 = vsel %vm289, %v288, 0
    %294 = vmatprep.subr.mxu0 0.0
    %295 = vmatpush1.xpose.msra.mxu0 0.0
    %296 = vmatprep.subr.mxu0 0.0
    %297 = vmatpush1.xpose.msra.mxu0 0.0
    %298 = vmatprep.subr.mxu0 0.0
    %299 = vmatpush1.xpose.msra.mxu0 0.0
    %300 = vmatprep.subr.mxu0 0.0
    %301 = vmatpush1.xpose.msra.mxu0 0.0
    %302 = vmatprep.subr.mxu0 0.0
    %303 = vmatpush1.xpose.msra.mxu0 0.0
    %304 = vmatprep.subr.mxu0 0.0
    %305 = vmatpush1.xpose.msra.mxu0 0.0
    %306 = vmatprep.subr.mxu0 0.0
    %307 = vmatpush1.xpose.msra.mxu0 0.0
    %308 = vmatprep.subr.mxu0 0.0
    %309 = vmatpush1.xpose.msra.mxu0 0.0
    %310 = vmatprep.subr.mxu0 0.0
    %311 = vmatpush1.xpose.msra.mxu0 0.0
    %312 = vmatprep.subr.mxu0 0.0
    %313 = vmatpush1.xpose.msra.mxu0 0.0
    %314 = vmatprep.subr.mxu0 0.0
    %315 = vmatpush1.xpose.msra.mxu0 0.0
    %316 = vmatprep.subr.mxu0 0.0
    %317 = vmatpush1.xpose.msra.mxu0 0.0
    %318 = vmatprep.subr.mxu0 0.0
    %319 = vmatpush1.xpose.msra.mxu0 0.0
    %320 = vmatprep.subr.mxu0 0.0
    %321 = vmatpush1.xpose.msra.mxu0 0.0
    %322 = vmatprep.subr.mxu0 0.0
    %323 = vmatpush1.xpose.msra.mxu0 0.0
    %324 = vmatprep.subr.mxu0 0.0
    %325 = vmatpush1.xpose.msra.mxu0 %v292
    %326 = vmatprep.subr.mxu0 0.0
    %327 = vmatpush2.xpose.msra.mxu0 0.0
    %328 = vmatprep.subr.mxu0 0.0
    %329 = vmatpush2.xpose.msra.mxu0 0.0
    %330 = vmatprep.subr.mxu0 0.0
    %331 = vmatpush2.xpose.msra.mxu0 0.0
    %332 = vmatprep.subr.mxu0 0.0
    %333 = vmatpush2.xpose.msra.mxu0 0.0
    %334 = vmatprep.subr.mxu0 0.0
    %335 = vmatpush2.xpose.msra.mxu0 0.0
    %336 = vmatprep.subr.mxu0 0.0
    %337 = vmatpush2.xpose.msra.mxu0 0.0
    %338 = vmatprep.subr.mxu0 0.0
    %339 = vmatpush2.xpose.msra.mxu0 0.0
    %340 = vmatprep.subr.mxu0 0.0
    %341 = vmatpush2.xpose.msra.mxu0 0.0
    %342 = vmatprep.subr.mxu0 0.0
    %343 = vmatpush2.xpose.msra.mxu0 0.0
    %344 = vmatprep.subr.mxu0 0.0
    %345 = vmatpush2.xpose.msra.mxu0 0.0
    %346 = vmatprep.subr.mxu0 0.0
    %347 = vmatpush2.xpose.msra.mxu0 0.0
    %348 = vmatprep.subr.mxu0 0.0
    %349 = vmatpush2.xpose.msra.mxu0 0.0
    %350 = vmatprep.subr.mxu0 0.0
    %351 = vmatpush2.xpose.msra.mxu0 0.0
    %352 = vmatprep.subr.mxu0 0.0
    %353 = vmatpush2.xpose.msra.mxu0 0.0
    %354 = vmatprep.subr.mxu0 0.0
    %355 = vmatpush2.xpose.msra.mxu0 0.0
    %356 = vmatprep.subr.mxu0 0.0
    %357 = vmatpush2.xpose.msra.mxu0 0.0
    %358 = vmatprep.mubr.f32.mxu0 0.0
    %359 = vmatmul.mubr.f32.gmra.mxu0 %v290
    %v360 = vpop.f32.mrf.mxu0
    %v361 = vadd.f32 0.0, %v360
    %v362 = vpop.f32.mrf.mxu0
    %363 = vdwg.mxu0
    %365 = vrot.lane.b32.xlu0 %v283, 96
    %v366 = vpop.permute.xlu0 %365
    %v367 = vsel %vm289, %v283, 0
    %v369 = vsel %vm289, %v366, 0
    %371 = vmatprep.subr.mxu0 0.0
    %372 = vmatpush1.xpose.msra.mxu0 0.0
    %373 = vmatprep.subr.mxu0 0.0
    %374 = vmatpush1.xpose.msra.mxu0 0.0
    %375 = vmatprep.subr.mxu0 0.0
    %376 = vmatpush1.xpose.msra.mxu0 0.0
    %377 = vmatprep.subr.mxu0 0.0
    %378 = vmatpush1.xpose.msra.mxu0 0.0
    %379 = vmatprep.subr.mxu0 0.0
    %380 = vmatpush1.xpose.msra.mxu0 0.0
    %381 = vmatprep.subr.mxu0 0.0
    %382 = vmatpush1.xpose.msra.mxu0 0.0
    %383 = vmatprep.subr.mxu0 0.0
    %384 = vmatpush1.xpose.msra.mxu0 0.0
    %385 = vmatprep.subr.mxu0 0.0
    %386 = vmatpush1.xpose.msra.mxu0 0.0
    %387 = vmatprep.subr.mxu0 0.0
    %388 = vmatpush1.xpose.msra.mxu0 0.0
    %389 = vmatprep.subr.mxu0 0.0
    %390 = vmatpush1.xpose.msra.mxu0 0.0
    %391 = vmatprep.subr.mxu0 0.0
    %392 = vmatpush1.xpose.msra.mxu0 0.0
    %393 = vmatprep.subr.mxu0 0.0
    %394 = vmatpush1.xpose.msra.mxu0 0.0
    %395 = vmatprep.subr.mxu0 0.0
    %396 = vmatpush1.xpose.msra.mxu0 0.0
    %397 = vmatprep.subr.mxu0 0.0
    %398 = vmatpush1.xpose.msra.mxu0 0.0
    %399 = vmatprep.subr.mxu0 0.0
    %400 = vmatpush1.xpose.msra.mxu0 0.0
    %401 = vmatprep.subr.mxu0 0.0
    %402 = vmatpush1.xpose.msra.mxu0 %v369
    %403 = vmatprep.subr.mxu0 0.0
    %404 = vmatpush2.xpose.msra.mxu0 0.0
    %405 = vmatprep.subr.mxu0 0.0
    %406 = vmatpush2.xpose.msra.mxu0 0.0
    %407 = vmatprep.subr.mxu0 0.0
    %408 = vmatpush2.xpose.msra.mxu0 0.0
    %409 = vmatprep.subr.mxu0 0.0
    %410 = vmatpush2.xpose.msra.mxu0 0.0
    %411 = vmatprep.subr.mxu0 0.0
    %412 = vmatpush2.xpose.msra.mxu0 0.0
    %413 = vmatprep.subr.mxu0 0.0
    %414 = vmatpush2.xpose.msra.mxu0 0.0
    %415 = vmatprep.subr.mxu0 0.0
    %416 = vmatpush2.xpose.msra.mxu0 0.0
    %417 = vmatprep.subr.mxu0 0.0
    %418 = vmatpush2.xpose.msra.mxu0 0.0
    %419 = vmatprep.subr.mxu0 0.0
    %420 = vmatpush2.xpose.msra.mxu0 0.0
    %421 = vmatprep.subr.mxu0 0.0
    %422 = vmatpush2.xpose.msra.mxu0 0.0
    %423 = vmatprep.subr.mxu0 0.0
    %424 = vmatpush2.xpose.msra.mxu0 0.0
    %425 = vmatprep.subr.mxu0 0.0
    %426 = vmatpush2.xpose.msra.mxu0 0.0
    %427 = vmatprep.subr.mxu0 0.0
    %428 = vmatpush2.xpose.msra.mxu0 0.0
    %429 = vmatprep.subr.mxu0 0.0
    %430 = vmatpush2.xpose.msra.mxu0 0.0
    %431 = vmatprep.subr.mxu0 0.0
    %432 = vmatpush2.xpose.msra.mxu0 0.0
    %433 = vmatprep.subr.mxu0 0.0
    %434 = vmatpush2.xpose.msra.mxu0 0.0
    %435 = vmatprep.mubr.f32.mxu0 0.0
    %436 = vmatmul.mubr.f32.gmra.mxu0 %v367
    %v437 = vpop.f32.mrf.mxu0
    %v438 = vadd.f32 0.0, %v437
    %v439 = vpop.f32.mrf.mxu0
    %440 = vdwg.mxu0
    %v441 = vmul.f32 %v361, 0.35355338
    %v442 = vmul.f32 %v438, 0.35355338
    %v443 = vsel %vm98, %v441, -1e+09
    %v444 = vsel %vm99, %v442, -1e+09
    %v445 = vsel %vm289, %v443, -inf
    %446 = vmax.xlane.f32.xlu0 %v445
    %v447 = vpop.xlane.xlu0 %446
    %v448 = vsel %vm289, %v444, -inf
    %449 = vmax.xlane.f32.xlu0 %v448
    %v450 = vpop.xlane.xlu0 %449
    %v451 = vsub.f32 %v443, %v447
    %v452 = vsub.f32 %v444, %v450
    %v453 = vmul.f32 %v451, 1.442695
    %v454 = vpow.pop %v453
    %v455 = vmul.f32 %v452, 1.442695
    %v456 = vpow.pop %v455
    %v457 = vsel %vm289, %v454, 0.0
    %458 = vadd.xlane.f32.xlu0 %v457
    %v459 = vpop.xlane.xlu0 %458
    %v460 = vsel %vm289, %v456, 0.0
    %461 = vadd.xlane.f32.xlu0 %v460
    %v462 = vpop.xlane.xlu0 %461
    %v463 = vrcp.pop %v459
    %v464 = vrcp.pop %v462
    %v465 = vmul.f32 %v454, %v463
    %v466 = vmul.f32 %v456, %v464
    %467 = vrot.lane.b32.xlu0 %v278, 64
    %v468 = vpop.permute.xlu0 %467
    %v471 = vsel %vm289, %v465, 0
    %473 = vmatprep.subr.mxu0 0.0
    %474 = vmatpush1.msra.mxu0 0.0
    %475 = vmatprep.subr.mxu0 0.0
    %476 = vmatpush1.msra.mxu0 0.0
    %477 = vmatprep.subr.mxu0 0.0
    %478 = vmatpush1.msra.mxu0 0.0
    %479 = vmatprep.subr.mxu0 0.0
    %480 = vmatpush1.msra.mxu0 0.0
    %481 = vmatprep.subr.mxu0 0.0
    %482 = vmatpush1.msra.mxu0 0.0
    %483 = vmatprep.subr.mxu0 0.0
    %484 = vmatpush1.msra.mxu0 0.0
    %485 = vmatprep.subr.mxu0 0.0
    %486 = vmatpush1.msra.mxu0 0.0
    %487 = vmatprep.subr.mxu0 0.0
    %488 = vmatpush1.msra.mxu0 0.0
    %489 = vmatprep.subr.mxu0 0.0
    %490 = vmatpush1.msra.mxu0 0.0
    %491 = vmatprep.subr.mxu0 0.0
    %492 = vmatpush1.msra.mxu0 0.0
    %493 = vmatprep.subr.mxu0 0.0
    %494 = vmatpush1.msra.mxu0 0.0
    %495 = vmatprep.subr.mxu0 0.0
    %496 = vmatpush1.msra.mxu0 0.0
    %497 = vmatprep.subr.mxu0 0.0
    %498 = vmatpush1.msra.mxu0 0.0
    %499 = vmatprep.subr.mxu0 0.0
    %500 = vmatpush1.msra.mxu0 0.0
    %501 = vmatprep.subr.mxu0 0.0
    %502 = vmatpush1.msra.mxu0 0.0
    %503 = vmatprep.subr.mxu0 0.0
    %504 = vmatpush1.msra.mxu0 %v468
    %505 = vmatprep.subr.mxu0 0.0
    %506 = vmatpush2.msra.mxu0 0.0
    %507 = vmatprep.subr.mxu0 0.0
    %508 = vmatpush2.msra.mxu0 0.0
    %509 = vmatprep.subr.mxu0 0.0
    %510 = vmatpush2.msra.mxu0 0.0
    %511 = vmatprep.subr.mxu0 0.0
    %512 = vmatpush2.msra.mxu0 0.0
    %513 = vmatprep.subr.mxu0 0.0
    %514 = vmatpush2.msra.mxu0 0.0
    %515 = vmatprep.subr.mxu0 0.0
    %516 = vmatpush2.msra.mxu0 0.0
    %517 = vmatprep.subr.mxu0 0.0
    %518 = vmatpush2.msra.mxu0 0.0
    %519 = vmatprep.subr.mxu0 0.0
    %520 = vmatpush2.msra.mxu0 0.0
    %521 = vmatprep.subr.mxu0 0.0
    %522 = vmatpush2.msra.mxu0 0.0
    %523 = vmatprep.subr.mxu0 0.0
    %524 = vmatpush2.msra.mxu0 0.0
    %525 = vmatprep.subr.mxu0 0.0
    %526 = vmatpush2.msra.mxu0 0.0
    %527 = vmatprep.subr.mxu0 0.0
    %528 = vmatpush2.msra.mxu0 0.0
    %529 = vmatprep.subr.mxu0 0.0
    %530 = vmatpush2.msra.mxu0 0.0
    %531 = vmatprep.subr.mxu0 0.0
    %532 = vmatpush2.msra.mxu0 0.0
    %533 = vmatprep.subr.mxu0 0.0
    %534 = vmatpush2.msra.mxu0 0.0
    %535 = vmatprep.subr.mxu0 0.0
    %536 = vmatpush2.msra.mxu0 0.0
    %537 = vmatprep.mubr.f32.mxu0 0.0
    %538 = vmatmul.mubr.f32.gmra.mxu0 %v471
    %v539 = vpop.f32.mrf.mxu0
    %v540 = vadd.f32 0.0, %v539
    %v541 = vpop.f32.mrf.mxu0
    %542 = vdwg.mxu0
    %543 = vrot.lane.b32.xlu0 %v283, 64
    %v544 = vpop.permute.xlu0 %543
    %v547 = vsel %vm289, %v466, 0
    %549 = vmatprep.subr.mxu0 0.0
    %550 = vmatpush1.msra.mxu0 0.0
    %551 = vmatprep.subr.mxu0 0.0
    %552 = vmatpush1.msra.mxu0 0.0
    %553 = vmatprep.subr.mxu0 0.0
    %554 = vmatpush1.msra.mxu0 0.0
    %555 = vmatprep.subr.mxu0 0.0
    %556 = vmatpush1.msra.mxu0 0.0
    %557 = vmatprep.subr.mxu0 0.0
    %558 = vmatpush1.msra.mxu0 0.0
    %559 = vmatprep.subr.mxu0 0.0
    %560 = vmatpush1.msra.mxu0 0.0
    %561 = vmatprep.subr.mxu0 0.0
    %562 = vmatpush1.msra.mxu0 0.0
    %563 = vmatprep.subr.mxu0 0.0
    %564 = vmatpush1.msra.mxu0 0.0
    %565 = vmatprep.subr.mxu0 0.0
    %566 = vmatpush1.msra.mxu0 0.0
    %567 = vmatprep.subr.mxu0 0.0
    %568 = vmatpush1.msra.mxu0 0.0
    %569 = vmatprep.subr.mxu0 0.0
    %570 = vmatpush1.msra.mxu0 0.0
    %571 = vmatprep.subr.mxu0 0.0
    %572 = vmatpush1.msra.mxu0 0.0
    %573 = vmatprep.subr.mxu0 0.0
    %574 = vmatpush1.msra.mxu0 0.0
    %575 = vmatprep.subr.mxu0 0.0
    %576 = vmatpush1.msra.mxu0 0.0
    %577 = vmatprep.subr.mxu0 0.0
    %578 = vmatpush1.msra.mxu0 0.0
    %579 = vmatprep.subr.mxu0 0.0
    %580 = vmatpush1.msra.mxu0 %v544
    %581 = vmatprep.subr.mxu0 0.0
    %582 = vmatpush2.msra.mxu0 0.0
    %583 = vmatprep.subr.mxu0 0.0
    %584 = vmatpush2.msra.mxu0 0.0
    %585 = vmatprep.subr.mxu0 0.0
    %586 = vmatpush2.msra.mxu0 0.0
    %587 = vmatprep.subr.mxu0 0.0
    %588 = vmatpush2.msra.mxu0 0.0
    %589 = vmatprep.subr.mxu0 0.0
    %590 = vmatpush2.msra.mxu0 0.0
    %591 = vmatprep.subr.mxu0 0.0
    %592 = vmatpush2.msra.mxu0 0.0
    %593 = vmatprep.subr.mxu0 0.0
    %594 = vmatpush2.msra.mxu0 0.0
    %595 = vmatprep.subr.mxu0 0.0
    %596 = vmatpush2.msra.mxu0 0.0
    %597 = vmatprep.subr.mxu0 0.0
    %598 = vmatpush2.msra.mxu0 0.0
    %599 = vmatprep.subr.mxu0 0.0
    %600 = vmatpush2.msra.mxu0 0.0
    %601 = vmatprep.subr.mxu0 0.0
    %602 = vmatpush2.msra.mxu0 0.0
    %603 = vmatprep.subr.mxu0 0.0
    %604 = vmatpush2.msra.mxu0 0.0
    %605 = vmatprep.subr.mxu0 0.0
    %606 = vmatpush2.msra.mxu0 0.0
    %607 = vmatprep.subr.mxu0 0.0
    %608 = vmatpush2.msra.mxu0 0.0
    %609 = vmatprep.subr.mxu0 0.0
    %610 = vmatpush2.msra.mxu0 0.0
    %611 = vmatprep.subr.mxu0 0.0
    %612 = vmatpush2.msra.mxu0 0.0
    %613 = vmatprep.mubr.f32.mxu0 0.0
    %614 = vmatmul.mubr.f32.gmra.mxu0 %v547
    %v615 = vpop.f32.mrf.mxu0
    %v616 = vadd.f32 0.0, %v615
    %v617 = vpop.f32.mrf.mxu0
    %618 = vdwg.mxu0
    %619 = vrot.lane.b32.xlu0 %v278, 120
    %v620 = vpop.permute.xlu0 %619
    %621 = vrot.lane.b32.xlu0 %v278, 88
    %v622 = vpop.permute.xlu0 %621
    %v623 = vsel %vm289, %v620, 0
    %v625 = vsel %vm289, %v622, 0
    %627 = vmatprep.subr.mxu0 0.0
    %628 = vmatpush1.xpose.msra.mxu0 0.0
    %629 = vmatprep.subr.mxu0 0.0
    %630 = vmatpush1.xpose.msra.mxu0 0.0
    %631 = vmatprep.subr.mxu0 0.0
    %632 = vmatpush1.xpose.msra.mxu0 0.0
    %633 = vmatprep.subr.mxu0 0.0
    %634 = vmatpush1.xpose.msra.mxu0 0.0
    %635 = vmatprep.subr.mxu0 0.0
    %636 = vmatpush1.xpose.msra.mxu0 0.0
    %637 = vmatprep.subr.mxu0 0.0
    %638 = vmatpush1.xpose.msra.mxu0 0.0
    %639 = vmatprep.subr.mxu0 0.0
    %640 = vmatpush1.xpose.msra.mxu0 0.0
    %641 = vmatprep.subr.mxu0 0.0
    %642 = vmatpush1.xpose.msra.mxu0 0.0
    %643 = vmatprep.subr.mxu0 0.0
    %644 = vmatpush1.xpose.msra.mxu0 0.0
    %645 = vmatprep.subr.mxu0 0.0
    %646 = vmatpush1.xpose.msra.mxu0 0.0
    %647 = vmatprep.subr.mxu0 0.0
    %648 = vmatpush1.xpose.msra.mxu0 0.0
    %649 = vmatprep.subr.mxu0 0.0
    %650 = vmatpush1.xpose.msra.mxu0 0.0
    %651 = vmatprep.subr.mxu0 0.0
    %652 = vmatpush1.xpose.msra.mxu0 0.0
    %653 = vmatprep.subr.mxu0 0.0
    %654 = vmatpush1.xpose.msra.mxu0 0.0
    %655 = vmatprep.subr.mxu0 0.0
    %656 = vmatpush1.xpose.msra.mxu0 0.0
    %657 = vmatprep.subr.mxu0 0.0
    %658 = vmatpush1.xpose.msra.mxu0 %v625
    %659 = vmatprep.subr.mxu0 0.0
    %660 = vmatpush2.xpose.msra.mxu0 0.0
    %661 = vmatprep.subr.mxu0 0.0
    %662 = vmatpush2.xpose.msra.mxu0 0.0
    %663 = vmatprep.subr.mxu0 0.0
    %664 = vmatpush2.xpose.msra.mxu0 0.0
    %665 = vmatprep.subr.mxu0 0.0
    %666 = vmatpush2.xpose.msra.mxu0 0.0
    %667 = vmatprep.subr.mxu0 0.0
    %668 = vmatpush2.xpose.msra.mxu0 0.0
    %669 = vmatprep.subr.mxu0 0.0
    %670 = vmatpush2.xpose.msra.mxu0 0.0
    %671 = vmatprep.subr.mxu0 0.0
    %672 = vmatpush2.xpose.msra.mxu0 0.0
    %673 = vmatprep.subr.mxu0 0.0
    %674 = vmatpush2.xpose.msra.mxu0 0.0
    %675 = vmatprep.subr.mxu0 0.0
    %676 = vmatpush2.xpose.msra.mxu0 0.0
    %677 = vmatprep.subr.mxu0 0.0
    %678 = vmatpush2.xpose.msra.mxu0 0.0
    %679 = vmatprep.subr.mxu0 0.0
    %680 = vmatpush2.xpose.msra.mxu0 0.0
    %681 = vmatprep.subr.mxu0 0.0
    %682 = vmatpush2.xpose.msra.mxu0 0.0
    %683 = vmatprep.subr.mxu0 0.0
    %684 = vmatpush2.xpose.msra.mxu0 0.0
    %685 = vmatprep.subr.mxu0 0.0
    %686 = vmatpush2.xpose.msra.mxu0 0.0
    %687 = vmatprep.subr.mxu0 0.0
    %688 = vmatpush2.xpose.msra.mxu0 0.0
    %689 = vmatprep.subr.mxu0 0.0
    %690 = vmatpush2.xpose.msra.mxu0 0.0
    %691 = vmatprep.mubr.f32.mxu0 0.0
    %692 = vmatmul.mubr.f32.gmra.mxu0 %v623
    %v693 = vpop.f32.mrf.mxu0
    %v694 = vadd.f32 0.0, %v693
    %v695 = vpop.f32.mrf.mxu0
    %696 = vdwg.mxu0
    %697 = vrot.lane.b32.xlu0 %v283, 120
    %v698 = vpop.permute.xlu0 %697
    %699 = vrot.lane.b32.xlu0 %v283, 88
    %v700 = vpop.permute.xlu0 %699
    %v701 = vsel %vm289, %v698, 0
    %v703 = vsel %vm289, %v700, 0
    %705 = vmatprep.subr.mxu0 0.0
    %706 = vmatpush1.xpose.msra.mxu0 0.0
    %707 = vmatprep.subr.mxu0 0.0
    %708 = vmatpush1.xpose.msra.mxu0 0.0
    %709 = vmatprep.subr.mxu0 0.0
    %710 = vmatpush1.xpose.msra.mxu0 0.0
    %711 = vmatprep.subr.mxu0 0.0
    %712 = vmatpush1.xpose.msra.mxu0 0.0
    %713 = vmatprep.subr.mxu0 0.0
    %714 = vmatpush1.xpose.msra.mxu0 0.0
    %715 = vmatprep.subr.mxu0 0.0
    %716 = vmatpush1.xpose.msra.mxu0 0.0
    %717 = vmatprep.subr.mxu0 0.0
    %718 = vmatpush1.xpose.msra.mxu0 0.0
    %719 = vmatprep.subr.mxu0 0.0
    %720 = vmatpush1.xpose.msra.mxu0 0.0
    %721 = vmatprep.subr.mxu0 0.0
    %722 = vmatpush1.xpose.msra.mxu0 0.0
    %723 = vmatprep.subr.mxu0 0.0
    %724 = vmatpush1.xpose.msra.mxu0 0.0
    %725 = vmatprep.subr.mxu0 0.0
    %726 = vmatpush1.xpose.msra.mxu0 0.0
    %727 = vmatprep.subr.mxu0 0.0
    %728 = vmatpush1.xpose.msra.mxu0 0.0
    %729 = vmatprep.subr.mxu0 0.0
    %730 = vmatpush1.xpose.msra.mxu0 0.0
    %731 = vmatprep.subr.mxu0 0.0
    %732 = vmatpush1.xpose.msra.mxu0 0.0
    %733 = vmatprep.subr.mxu0 0.0
    %734 = vmatpush1.xpose.msra.mxu0 0.0
    %735 = vmatprep.subr.mxu0 0.0
    %736 = vmatpush1.xpose.msra.mxu0 %v703
    %737 = vmatprep.subr.mxu0 0.0
    %738 = vmatpush2.xpose.msra.mxu0 0.0
    %739 = vmatprep.subr.mxu0 0.0
    %740 = vmatpush2.xpose.msra.mxu0 0.0
    %741 = vmatprep.subr.mxu0 0.0
    %742 = vmatpush2.xpose.msra.mxu0 0.0
    %743 = vmatprep.subr.mxu0 0.0
    %744 = vmatpush2.xpose.msra.mxu0 0.0
    %745 = vmatprep.subr.mxu0 0.0
    %746 = vmatpush2.xpose.msra.mxu0 0.0
    %747 = vmatprep.subr.mxu0 0.0
    %748 = vmatpush2.xpose.msra.mxu0 0.0
    %749 = vmatprep.subr.mxu0 0.0
    %750 = vmatpush2.xpose.msra.mxu0 0.0
    %751 = vmatprep.subr.mxu0 0.0
    %752 = vmatpush2.xpose.msra.mxu0 0.0
    %753 = vmatprep.subr.mxu0 0.0
    %754 = vmatpush2.xpose.msra.mxu0 0.0
    %755 = vmatprep.subr.mxu0 0.0
    %756 = vmatpush2.xpose.msra.mxu0 0.0
    %757 = vmatprep.subr.mxu0 0.0
    %758 = vmatpush2.xpose.msra.mxu0 0.0
    %759 = vmatprep.subr.mxu0 0.0
    %760 = vmatpush2.xpose.msra.mxu0 0.0
    %761 = vmatprep.subr.mxu0 0.0
    %762 = vmatpush2.xpose.msra.mxu0 0.0
    %763 = vmatprep.subr.mxu0 0.0
    %764 = vmatpush2.xpose.msra.mxu0 0.0
    %765 = vmatprep.subr.mxu0 0.0
    %766 = vmatpush2.xpose.msra.mxu0 0.0
    %767 = vmatprep.subr.mxu0 0.0
    %768 = vmatpush2.xpose.msra.mxu0 0.0
    %769 = vmatprep.mubr.f32.mxu0 0.0
    %770 = vmatmul.mubr.f32.gmra.mxu0 %v701
    %v771 = vpop.f32.mrf.mxu0
    %v772 = vadd.f32 0.0, %v771
    %v773 = vpop.f32.mrf.mxu0
    %774 = vdwg.mxu0
    %v775 = vmul.f32 %v694, 0.35355338
    %v776 = vmul.f32 %v772, 0.35355338
    %v777 = vsel %vm98, %v775, -1e+09
    %v778 = vsel %vm99, %v776, -1e+09
    %v779 = vsel %vm289, %v777, -inf
    %780 = vmax.xlane.f32.xlu0 %v779
    %v781 = vpop.xlane.xlu0 %780
    %v782 = vsel %vm289, %v778, -inf
    %783 = vmax.xlane.f32.xlu0 %v782
    %v784 = vpop.xlane.xlu0 %783
    %v785 = vsub.f32 %v777, %v781
    %v786 = vsub.f32 %v778, %v784
    %v787 = vmul.f32 %v785, 1.442695
    %v788 = vpow.pop %v787
    %v789 = vmul.f32 %v786, 1.442695
    %v790 = vpow.pop %v789
    %v791 = vsel %vm289, %v788, 0.0
    %792 = vadd.xlane.f32.xlu0 %v791
    %v793 = vpop.xlane.xlu0 %792
    %v794 = vsel %vm289, %v790, 0.0
    %795 = vadd.xlane.f32.xlu0 %v794
    %v796 = vpop.xlane.xlu0 %795
    %v797 = vrcp.pop %v793
    %v798 = vrcp.pop %v796
    %v799 = vmul.f32 %v788, %v797
    %v800 = vmul.f32 %v790, %v798
    %801 = vrot.lane.b32.xlu0 %v278, 56
    %v802 = vpop.permute.xlu0 %801
    %v805 = vsel %vm289, %v799, 0
    %807 = vmatprep.subr.mxu0 0.0
    %808 = vmatpush1.msra.mxu0 0.0
    %809 = vmatprep.subr.mxu0 0.0
    %810 = vmatpush1.msra.mxu0 0.0
    %811 = vmatprep.subr.mxu0 0.0
    %812 = vmatpush1.msra.mxu0 0.0
    %813 = vmatprep.subr.mxu0 0.0
    %814 = vmatpush1.msra.mxu0 0.0
    %815 = vmatprep.subr.mxu0 0.0
    %816 = vmatpush1.msra.mxu0 0.0
    %817 = vmatprep.subr.mxu0 0.0
    %818 = vmatpush1.msra.mxu0 0.0
    %819 = vmatprep.subr.mxu0 0.0
    %820 = vmatpush1.msra.mxu0 0.0
    %821 = vmatprep.subr.mxu0 0.0
    %822 = vmatpush1.msra.mxu0 0.0
    %823 = vmatprep.subr.mxu0 0.0
    %824 = vmatpush1.msra.mxu0 0.0
    %825 = vmatprep.subr.mxu0 0.0
    %826 = vmatpush1.msra.mxu0 0.0
    %827 = vmatprep.subr.mxu0 0.0
    %828 = vmatpush1.msra.mxu0 0.0
    %829 = vmatprep.subr.mxu0 0.0
    %830 = vmatpush1.msra.mxu0 0.0
    %831 = vmatprep.subr.mxu0 0.0
    %832 = vmatpush1.msra.mxu0 0.0
    %833 = vmatprep.subr.mxu0 0.0
    %834 = vmatpush1.msra.mxu0 0.0
    %835 = vmatprep.subr.mxu0 0.0
    %836 = vmatpush1.msra.mxu0 0.0
    %837 = vmatprep.subr.mxu0 0.0
    %838 = vmatpush1.msra.mxu0 %v802
    %839 = vmatprep.subr.mxu0 0.0
    %840 = vmatpush2.msra.mxu0 0.0
    %841 = vmatprep.subr.mxu0 0.0
    %842 = vmatpush2.msra.mxu0 0.0
    %843 = vmatprep.subr.mxu0 0.0
    %844 = vmatpush2.msra.mxu0 0.0
    %845 = vmatprep.subr.mxu0 0.0
    %846 = vmatpush2.msra.mxu0 0.0
    %847 = vmatprep.subr.mxu0 0.0
    %848 = vmatpush2.msra.mxu0 0.0
    %849 = vmatprep.subr.mxu0 0.0
    %850 = vmatpush2.msra.mxu0 0.0
    %851 = vmatprep.subr.mxu0 0.0
    %852 = vmatpush2.msra.mxu0 0.0
    %853 = vmatprep.subr.mxu0 0.0
    %854 = vmatpush2.msra.mxu0 0.0
    %855 = vmatprep.subr.mxu0 0.0
    %856 = vmatpush2.msra.mxu0 0.0
    %857 = vmatprep.subr.mxu0 0.0
    %858 = vmatpush2.msra.mxu0 0.0
    %859 = vmatprep.subr.mxu0 0.0
    %860 = vmatpush2.msra.mxu0 0.0
    %861 = vmatprep.subr.mxu0 0.0
    %862 = vmatpush2.msra.mxu0 0.0
    %863 = vmatprep.subr.mxu0 0.0
    %864 = vmatpush2.msra.mxu0 0.0
    %865 = vmatprep.subr.mxu0 0.0
    %866 = vmatpush2.msra.mxu0 0.0
    %867 = vmatprep.subr.mxu0 0.0
    %868 = vmatpush2.msra.mxu0 0.0
    %869 = vmatprep.subr.mxu0 0.0
    %870 = vmatpush2.msra.mxu0 0.0
    %871 = vmatprep.mubr.f32.mxu0 0.0
    %872 = vmatmul.mubr.f32.gmra.mxu0 %v805
    %v873 = vpop.f32.mrf.mxu0
    %v874 = vadd.f32 0.0, %v873
    %v875 = vpop.f32.mrf.mxu0
    %876 = vdwg.mxu0
    %877 = vrot.lane.b32.xlu0 %v283, 56
    %v878 = vpop.permute.xlu0 %877
    %v881 = vsel %vm289, %v800, 0
    %883 = vmatprep.subr.mxu0 0.0
    %884 = vmatpush1.msra.mxu0 0.0
    %885 = vmatprep.subr.mxu0 0.0
    %886 = vmatpush1.msra.mxu0 0.0
    %887 = vmatprep.subr.mxu0 0.0
    %888 = vmatpush1.msra.mxu0 0.0
    %889 = vmatprep.subr.mxu0 0.0
    %890 = vmatpush1.msra.mxu0 0.0
    %891 = vmatprep.subr.mxu0 0.0
    %892 = vmatpush1.msra.mxu0 0.0
    %893 = vmatprep.subr.mxu0 0.0
    %894 = vmatpush1.msra.mxu0 0.0
    %895 = vmatprep.subr.mxu0 0.0
    %896 = vmatpush1.msra.mxu0 0.0
    %897 = vmatprep.subr.mxu0 0.0
    %898 = vmatpush1.msra.mxu0 0.0
    %899 = vmatprep.subr.mxu0 0.0
    %900 = vmatpush1.msra.mxu0 0.0
    %901 = vmatprep.subr.mxu0 0.0
    %902 = vmatpush1.msra.mxu0 0.0
    %903 = vmatprep.subr.mxu0 0.0
    %904 = vmatpush1.msra.mxu0 0.0
    %905 = vmatprep.subr.mxu0 0.0
    %906 = vmatpush1.msra.mxu0 0.0
    %907 = vmatprep.subr.mxu0 0.0
    %908 = vmatpush1.msra.mxu0 0.0
    %909 = vmatprep.subr.mxu0 0.0
    %910 = vmatpush1.msra.mxu0 0.0
    %911 = vmatprep.subr.mxu0 0.0
    %912 = vmatpush1.msra.mxu0 0.0
    %913 = vmatprep.subr.mxu0 0.0
    %914 = vmatpush1.msra.mxu0 %v878
    %915 = vmatprep.subr.mxu0 0.0
    %916 = vmatpush2.msra.mxu0 0.0
    %917 = vmatprep.subr.mxu0 0.0
    %918 = vmatpush2.msra.mxu0 0.0
    %919 = vmatprep.subr.mxu0 0.0
    %920 = vmatpush2.msra.mxu0 0.0
    %921 = vmatprep.subr.mxu0 0.0
    %922 = vmatpush2.msra.mxu0 0.0
    %923 = vmatprep.subr.mxu0 0.0
    %924 = vmatpush2.msra.mxu0 0.0
    %925 = vmatprep.subr.mxu0 0.0
    %926 = vmatpush2.msra.mxu0 0.0
    %927 = vmatprep.subr.mxu0 0.0
    %928 = vmatpush2.msra.mxu0 0.0
    %929 = vmatprep.subr.mxu0 0.0
    %930 = vmatpush2.msra.mxu0 0.0
    %931 = vmatprep.subr.mxu0 0.0
    %932 = vmatpush2.msra.mxu0 0.0
    %933 = vmatprep.subr.mxu0 0.0
    %934 = vmatpush2.msra.mxu0 0.0
    %935 = vmatprep.subr.mxu0 0.0
    %936 = vmatpush2.msra.mxu0 0.0
    %937 = vmatprep.subr.mxu0 0.0
    %938 = vmatpush2.msra.mxu0 0.0
    %939 = vmatprep.subr.mxu0 0.0
    %940 = vmatpush2.msra.mxu0 0.0
    %941 = vmatprep.subr.mxu0 0.0
    %942 = vmatpush2.msra.mxu0 0.0
    %943 = vmatprep.subr.mxu0 0.0
    %944 = vmatpush2.msra.mxu0 0.0
    %945 = vmatprep.subr.mxu0 0.0
    %946 = vmatpush2.msra.mxu0 0.0
    %947 = vmatprep.mubr.f32.mxu0 0.0
    %948 = vmatmul.mubr.f32.gmra.mxu0 %v881
    %v949 = vpop.f32.mrf.mxu0
    %v950 = vadd.f32 0.0, %v949
    %v951 = vpop.f32.mrf.mxu0
    %952 = vdwg.mxu0
    %953 = vrot.lane.b32.xlu0 %v278, 112
    %v954 = vpop.permute.xlu0 %953
    %955 = vrot.lane.b32.xlu0 %v278, 80
    %v956 = vpop.permute.xlu0 %955
    %v957 = vsel %vm289, %v954, 0
    %v959 = vsel %vm289, %v956, 0
    %961 = vmatprep.subr.mxu0 0.0
    %962 = vmatpush1.xpose.msra.mxu0 0.0
    %963 = vmatprep.subr.mxu0 0.0
    %964 = vmatpush1.xpose.msra.mxu0 0.0
    %965 = vmatprep.subr.mxu0 0.0
    %966 = vmatpush1.xpose.msra.mxu0 0.0
    %967 = vmatprep.subr.mxu0 0.0
    %968 = vmatpush1.xpose.msra.mxu0 0.0
    %969 = vmatprep.subr.mxu0 0.0
    %970 = vmatpush1.xpose.msra.mxu0 0.0
    %971 = vmatprep.subr.mxu0 0.0
    %972 = vmatpush1.xpose.msra.mxu0 0.0
    %973 = vmatprep.subr.mxu0 0.0
    %974 = vmatpush1.xpose.msra.mxu0 0.0
    %975 = vmatprep.subr.mxu0 0.0
    %976 = vmatpush1.xpose.msra.mxu0 0.0
    %977 = vmatprep.subr.mxu0 0.0
    %978 = vmatpush1.xpose.msra.mxu0 0.0
    %979 = vmatprep.subr.mxu0 0.0
    %980 = vmatpush1.xpose.msra.mxu0 0.0
    %981 = vmatprep.subr.mxu0 0.0
    %982 = vmatpush1.xpose.msra.mxu0 0.0
    %983 = vmatprep.subr.mxu0 0.0
    %984 = vmatpush1.xpose.msra.mxu0 0.0
    %985 = vmatprep.subr.mxu0 0.0
    %986 = vmatpush1.xpose.msra.mxu0 0.0
    %987 = vmatprep.subr.mxu0 0.0
    %988 = vmatpush1.xpose.msra.mxu0 0.0
    %989 = vmatprep.subr.mxu0 0.0
    %990 = vmatpush1.xpose.msra.mxu0 0.0
    %991 = vmatprep.subr.mxu0 0.0
    %992 = vmatpush1.xpose.msra.mxu0 %v959
    %993 = vmatprep.subr.mxu0 0.0
    %994 = vmatpush2.xpose.msra.mxu0 0.0
    %995 = vmatprep.subr.mxu0 0.0
    %996 = vmatpush2.xpose.msra.mxu0 0.0
    %997 = vmatprep.subr.mxu0 0.0
    %998 = vmatpush2.xpose.msra.mxu0 0.0
    %999 = vmatprep.subr.mxu0 0.0
    %1000 = vmatpush2.xpose.msra.mxu0 0.0
    %1001 = vmatprep.subr.mxu0 0.0
    %1002 = vmatpush2.xpose.msra.mxu0 0.0
    %1003 = vmatprep.subr.mxu0 0.0
    %1004 = vmatpush2.xpose.msra.mxu0 0.0
    %1005 = vmatprep.subr.mxu0 0.0
    %1006 = vmatpush2.xpose.msra.mxu0 0.0
    %1007 = vmatprep.subr.mxu0 0.0
    %1008 = vmatpush2.xpose.msra.mxu0 0.0
    %1009 = vmatprep.subr.mxu0 0.0
    %1010 = vmatpush2.xpose.msra.mxu0 0.0
    %1011 = vmatprep.subr.mxu0 0.0
    %1012 = vmatpush2.xpose.msra.mxu0 0.0
    %1013 = vmatprep.subr.mxu0 0.0
    %1014 = vmatpush2.xpose.msra.mxu0 0.0
    %1015 = vmatprep.subr.mxu0 0.0
    %1016 = vmatpush2.xpose.msra.mxu0 0.0
    %1017 = vmatprep.subr.mxu0 0.0
    %1018 = vmatpush2.xpose.msra.mxu0 0.0
    %1019 = vmatprep.subr.mxu0 0.0
    %1020 = vmatpush2.xpose.msra.mxu0 0.0
    %1021 = vmatprep.subr.mxu0 0.0
    %1022 = vmatpush2.xpose.msra.mxu0 0.0
    %1023 = vmatprep.subr.mxu0 0.0
    %1024 = vmatpush2.xpose.msra.mxu0 0.0
    %1025 = vmatprep.mubr.f32.mxu0 0.0
    %1026 = vmatmul.mubr.f32.gmra.mxu0 %v957
    %v1027 = vpop.f32.mrf.mxu0
    %v1028 = vadd.f32 0.0, %v1027
    %v1029 = vpop.f32.mrf.mxu0
    %1030 = vdwg.mxu0
    %1031 = vrot.lane.b32.xlu0 %v283, 112
    %v1032 = vpop.permute.xlu0 %1031
    %1033 = vrot.lane.b32.xlu0 %v283, 80
    %v1034 = vpop.permute.xlu0 %1033
    %v1035 = vsel %vm289, %v1032, 0
    %v1037 = vsel %vm289, %v1034, 0
    %1039 = vmatprep.subr.mxu0 0.0
    %1040 = vmatpush1.xpose.msra.mxu0 0.0
    %1041 = vmatprep.subr.mxu0 0.0
    %1042 = vmatpush1.xpose.msra.mxu0 0.0
    %1043 = vmatprep.subr.mxu0 0.0
    %1044 = vmatpush1.xpose.msra.mxu0 0.0
    %1045 = vmatprep.subr.mxu0 0.0
    %1046 = vmatpush1.xpose.msra.mxu0 0.0
    %1047 = vmatprep.subr.mxu0 0.0
    %1048 = vmatpush1.xpose.msra.mxu0 0.0
    %1049 = vmatprep.subr.mxu0 0.0
    %1050 = vmatpush1.xpose.msra.mxu0 0.0
    %1051 = vmatprep.subr.mxu0 0.0
    %1052 = vmatpush1.xpose.msra.mxu0 0.0
    %1053 = vmatprep.subr.mxu0 0.0
    %1054 = vmatpush1.xpose.msra.mxu0 0.0
    %1055 = vmatprep.subr.mxu0 0.0
    %1056 = vmatpush1.xpose.msra.mxu0 0.0
    %1057 = vmatprep.subr.mxu0 0.0
    %1058 = vmatpush1.xpose.msra.mxu0 0.0
    %1059 = vmatprep.subr.mxu0 0.0
    %1060 = vmatpush1.xpose.msra.mxu0 0.0
    %1061 = vmatprep.subr.mxu0 0.0
    %1062 = vmatpush1.xpose.msra.mxu0 0.0
    %1063 = vmatprep.subr.mxu0 0.0
    %1064 = vmatpush1.xpose.msra.mxu0 0.0
    %1065 = vmatprep.subr.mxu0 0.0
    %1066 = vmatpush1.xpose.msra.mxu0 0.0
    %1067 = vmatprep.subr.mxu0 0.0
    %1068 = vmatpush1.xpose.msra.mxu0 0.0
    %1069 = vmatprep.subr.mxu0 0.0
    %1070 = vmatpush1.xpose.msra.mxu0 %v1037
    %1071 = vmatprep.subr.mxu0 0.0
    %1072 = vmatpush2.xpose.msra.mxu0 0.0
    %1073 = vmatprep.subr.mxu0 0.0
    %1074 = vmatpush2.xpose.msra.mxu0 0.0
    %1075 = vmatprep.subr.mxu0 0.0
    %1076 = vmatpush2.xpose.msra.mxu0 0.0
    %1077 = vmatprep.subr.mxu0 0.0
    %1078 = vmatpush2.xpose.msra.mxu0 0.0
    %1079 = vmatprep.subr.mxu0 0.0
    %1080 = vmatpush2.xpose.msra.mxu0 0.0
    %1081 = vmatprep.subr.mxu0 0.0
    %1082 = vmatpush2.xpose.msra.mxu0 0.0
    %1083 = vmatprep.subr.mxu0 0.0
    %1084 = vmatpush2.xpose.msra.mxu0 0.0
    %1085 = vmatprep.subr.mxu0 0.0
    %1086 = vmatpush2.xpose.msra.mxu0 0.0
    %1087 = vmatprep.subr.mxu0 0.0
    %1088 = vmatpush2.xpose.msra.mxu0 0.0
    %1089 = vmatprep.subr.mxu0 0.0
    %1090 = vmatpush2.xpose.msra.mxu0 0.0
    %1091 = vmatprep.subr.mxu0 0.0
    %1092 = vmatpush2.xpose.msra.mxu0 0.0
    %1093 = vmatprep.subr.mxu0 0.0
    %1094 = vmatpush2.xpose.msra.mxu0 0.0
    %1095 = vmatprep.subr.mxu0 0.0
    %1096 = vmatpush2.xpose.msra.mxu0 0.0
    %1097 = vmatprep.subr.mxu0 0.0
    %1098 = vmatpush2.xpose.msra.mxu0 0.0
    %1099 = vmatprep.subr.mxu0 0.0
    %1100 = vmatpush2.xpose.msra.mxu0 0.0
    %1101 = vmatprep.subr.mxu0 0.0
    %1102 = vmatpush2.xpose.msra.mxu0 0.0
    %1103 = vmatprep.mubr.f32.mxu0 0.0
    %1104 = vmatmul.mubr.f32.gmra.mxu0 %v1035
    %v1105 = vpop.f32.mrf.mxu0
    %v1106 = vadd.f32 0.0, %v1105
    %v1107 = vpop.f32.mrf.mxu0
    %1108 = vdwg.mxu0
    %v1109 = vmul.f32 %v1028, 0.35355338
    %v1110 = vmul.f32 %v1106, 0.35355338
    %v1111 = vsel %vm98, %v1109, -1e+09
    %v1112 = vsel %vm99, %v1110, -1e+09
    %v1113 = vsel %vm289, %v1111, -inf
    %1114 = vmax.xlane.f32.xlu0 %v1113
    %v1115 = vpop.xlane.xlu0 %1114
    %v1116 = vsel %vm289, %v1112, -inf
    %1117 = vmax.xlane.f32.xlu0 %v1116
    %v1118 = vpop.xlane.xlu0 %1117
    %v1119 = vsub.f32 %v1111, %v1115
    %v1120 = vsub.f32 %v1112, %v1118
    %v1121 = vmul.f32 %v1119, 1.442695
    %v1122 = vpow.pop %v1121
    %v1123 = vmul.f32 %v1120, 1.442695
    %v1124 = vpow.pop %v1123
    %v1125 = vsel %vm289, %v1122, 0.0
    %1126 = vadd.xlane.f32.xlu0 %v1125
    %v1127 = vpop.xlane.xlu0 %1126
    %v1128 = vsel %vm289, %v1124, 0.0
    %1129 = vadd.xlane.f32.xlu0 %v1128
    %v1130 = vpop.xlane.xlu0 %1129
    %v1131 = vrcp.pop %v1127
    %v1132 = vrcp.pop %v1130
    %v1133 = vmul.f32 %v1122, %v1131
    %v1134 = vmul.f32 %v1124, %v1132
    %1135 = vrot.lane.b32.xlu0 %v278, 48
    %v1136 = vpop.permute.xlu0 %1135
    %v1139 = vsel %vm289, %v1133, 0
    %1141 = vmatprep.subr.mxu0 0.0
    %1142 = vmatpush1.msra.mxu0 0.0
    %1143 = vmatprep.subr.mxu0 0.0
    %1144 = vmatpush1.msra.mxu0 0.0
    %1145 = vmatprep.subr.mxu0 0.0
    %1146 = vmatpush1.msra.mxu0 0.0
    %1147 = vmatprep.subr.mxu0 0.0
    %1148 = vmatpush1.msra.mxu0 0.0
    %1149 = vmatprep.subr.mxu0 0.0
    %1150 = vmatpush1.msra.mxu0 0.0
    %1151 = vmatprep.subr.mxu0 0.0
    %1152 = vmatpush1.msra.mxu0 0.0
    %1153 = vmatprep.subr.mxu0 0.0
    %1154 = vmatpush1.msra.mxu0 0.0
    %1155 = vmatprep.subr.mxu0 0.0
    %1156 = vmatpush1.msra.mxu0 0.0
    %1157 = vmatprep.subr.mxu0 0.0
    %1158 = vmatpush1.msra.mxu0 0.0
    %1159 = vmatprep.subr.mxu0 0.0
    %1160 = vmatpush1.msra.mxu0 0.0
    %1161 = vmatprep.subr.mxu0 0.0
    %1162 = vmatpush1.msra.mxu0 0.0
    %1163 = vmatprep.subr.mxu0 0.0
    %1164 = vmatpush1.msra.mxu0 0.0
    %1165 = vmatprep.subr.mxu0 0.0
    %1166 = vmatpush1.msra.mxu0 0.0
    %1167 = vmatprep.subr.mxu0 0.0
    %1168 = vmatpush1.msra.mxu0 0.0
    %1169 = vmatprep.subr.mxu0 0.0
    %1170 = vmatpush1.msra.mxu0 0.0
    %1171 = vmatprep.subr.mxu0 0.0
    %1172 = vmatpush1.msra.mxu0 %v1136
    %1173 = vmatprep.subr.mxu0 0.0
    %1174 = vmatpush2.msra.mxu0 0.0
    %1175 = vmatprep.subr.mxu0 0.0
    %1176 = vmatpush2.msra.mxu0 0.0
    %1177 = vmatprep.subr.mxu0 0.0
    %1178 = vmatpush2.msra.mxu0 0.0
    %1179 = vmatprep.subr.mxu0 0.0
    %1180 = vmatpush2.msra.mxu0 0.0
    %1181 = vmatprep.subr.mxu0 0.0
    %1182 = vmatpush2.msra.mxu0 0.0
    %1183 = vmatprep.subr.mxu0 0.0
    %1184 = vmatpush2.msra.mxu0 0.0
    %1185 = vmatprep.subr.mxu0 0.0
    %1186 = vmatpush2.msra.mxu0 0.0
    %1187 = vmatprep.subr.mxu0 0.0
    %1188 = vmatpush2.msra.mxu0 0.0
    %1189 = vmatprep.subr.mxu0 0.0
    %1190 = vmatpush2.msra.mxu0 0.0
    %1191 = vmatprep.subr.mxu0 0.0
    %1192 = vmatpush2.msra.mxu0 0.0
    %1193 = vmatprep.subr.mxu0 0.0
    %1194 = vmatpush2.msra.mxu0 0.0
    %1195 = vmatprep.subr.mxu0 0.0
    %1196 = vmatpush2.msra.mxu0 0.0
    %1197 = vmatprep.subr.mxu0 0.0
    %1198 = vmatpush2.msra.mxu0 0.0
    %1199 = vmatprep.subr.mxu0 0.0
    %1200 = vmatpush2.msra.mxu0 0.0
    %1201 = vmatprep.subr.mxu0 0.0
    %1202 = vmatpush2.msra.mxu0 0.0
    %1203 = vmatprep.subr.mxu0 0.0
    %1204 = vmatpush2.msra.mxu0 0.0
    %1205 = vmatprep.mubr.f32.mxu0 0.0
    %1206 = vmatmul.mubr.f32.gmra.mxu0 %v1139
    %v1207 = vpop.f32.mrf.mxu0
    %v1208 = vadd.f32 0.0, %v1207
    %v1209 = vpop.f32.mrf.mxu0
    %1210 = vdwg.mxu0
    %1211 = vrot.lane.b32.xlu0 %v283, 48
    %v1212 = vpop.permute.xlu0 %1211
    %v1215 = vsel %vm289, %v1134, 0
    %1217 = vmatprep.subr.mxu0 0.0
    %1218 = vmatpush1.msra.mxu0 0.0
    %1219 = vmatprep.subr.mxu0 0.0
    %1220 = vmatpush1.msra.mxu0 0.0
    %1221 = vmatprep.subr.mxu0 0.0
    %1222 = vmatpush1.msra.mxu0 0.0
    %1223 = vmatprep.subr.mxu0 0.0
    %1224 = vmatpush1.msra.mxu0 0.0
    %1225 = vmatprep.subr.mxu0 0.0
    %1226 = vmatpush1.msra.mxu0 0.0
    %1227 = vmatprep.subr.mxu0 0.0
    %1228 = vmatpush1.msra.mxu0 0.0
    %1229 = vmatprep.subr.mxu0 0.0
    %1230 = vmatpush1.msra.mxu0 0.0
    %1231 = vmatprep.subr.mxu0 0.0
    %1232 = vmatpush1.msra.mxu0 0.0
    %1233 = vmatprep.subr.mxu0 0.0
    %1234 = vmatpush1.msra.mxu0 0.0
    %1235 = vmatprep.subr.mxu0 0.0
    %1236 = vmatpush1.msra.mxu0 0.0
    %1237 = vmatprep.subr.mxu0 0.0
    %1238 = vmatpush1.msra.mxu0 0.0
    %1239 = vmatprep.subr.mxu0 0.0
    %1240 = vmatpush1.msra.mxu0 0.0
    %1241 = vmatprep.subr.mxu0 0.0
    %1242 = vmatpush1.msra.mxu0 0.0
    %1243 = vmatprep.subr.mxu0 0.0
    %1244 = vmatpush1.msra.mxu0 0.0
    %1245 = vmatprep.subr.mxu0 0.0
    %1246 = vmatpush1.msra.mxu0 0.0
    %1247 = vmatprep.subr.mxu0 0.0
    %1248 = vmatpush1.msra.mxu0 %v1212
    %1249 = vmatprep.subr.mxu0 0.0
    %1250 = vmatpush2.msra.mxu0 0.0
    %1251 = vmatprep.subr.mxu0 0.0
    %1252 = vmatpush2.msra.mxu0 0.0
    %1253 = vmatprep.subr.mxu0 0.0
    %1254 = vmatpush2.msra.mxu0 0.0
    %1255 = vmatprep.subr.mxu0 0.0
    %1256 = vmatpush2.msra.mxu0 0.0
    %1257 = vmatprep.subr.mxu0 0.0
    %1258 = vmatpush2.msra.mxu0 0.0
    %1259 = vmatprep.subr.mxu0 0.0
    %1260 = vmatpush2.msra.mxu0 0.0
    %1261 = vmatprep.subr.mxu0 0.0
    %1262 = vmatpush2.msra.mxu0 0.0
    %1263 = vmatprep.subr.mxu0 0.0
    %1264 = vmatpush2.msra.mxu0 0.0
    %1265 = vmatprep.subr.mxu0 0.0
    %1266 = vmatpush2.msra.mxu0 0.0
    %1267 = vmatprep.subr.mxu0 0.0
    %1268 = vmatpush2.msra.mxu0 0.0
    %1269 = vmatprep.subr.mxu0 0.0
    %1270 = vmatpush2.msra.mxu0 0.0
    %1271 = vmatprep.subr.mxu0 0.0
    %1272 = vmatpush2.msra.mxu0 0.0
    %1273 = vmatprep.subr.mxu0 0.0
    %1274 = vmatpush2.msra.mxu0 0.0
    %1275 = vmatprep.subr.mxu0 0.0
    %1276 = vmatpush2.msra.mxu0 0.0
    %1277 = vmatprep.subr.mxu0 0.0
    %1278 = vmatpush2.msra.mxu0 0.0
    %1279 = vmatprep.subr.mxu0 0.0
    %1280 = vmatpush2.msra.mxu0 0.0
    %1281 = vmatprep.mubr.f32.mxu0 0.0
    %1282 = vmatmul.mubr.f32.gmra.mxu0 %v1215
    %v1283 = vpop.f32.mrf.mxu0
    %v1284 = vadd.f32 0.0, %v1283
    %v1285 = vpop.f32.mrf.mxu0
    %1286 = vdwg.mxu0
    %1287 = vrot.lane.b32.xlu0 %v278, 104
    %v1288 = vpop.permute.xlu0 %1287
    %1289 = vrot.lane.b32.xlu0 %v278, 72
    %v1290 = vpop.permute.xlu0 %1289
    %v1291 = vsel %vm289, %v1288, 0
    %v1293 = vsel %vm289, %v1290, 0
    %1295 = vmatprep.subr.mxu0 0.0
    %1296 = vmatpush1.xpose.msra.mxu0 0.0
    %1297 = vmatprep.subr.mxu0 0.0
    %1298 = vmatpush1.xpose.msra.mxu0 0.0
    %1299 = vmatprep.subr.mxu0 0.0
    %1300 = vmatpush1.xpose.msra.mxu0 0.0
    %1301 = vmatprep.subr.mxu0 0.0
    %1302 = vmatpush1.xpose.msra.mxu0 0.0
    %1303 = vmatprep.subr.mxu0 0.0
    %1304 = vmatpush1.xpose.msra.mxu0 0.0
    %1305 = vmatprep.subr.mxu0 0.0
    %1306 = vmatpush1.xpose.msra.mxu0 0.0
    %1307 = vmatprep.subr.mxu0 0.0
    %1308 = vmatpush1.xpose.msra.mxu0 0.0
    %1309 = vmatprep.subr.mxu0 0.0
    %1310 = vmatpush1.xpose.msra.mxu0 0.0
    %1311 = vmatprep.subr.mxu0 0.0
    %1312 = vmatpush1.xpose.msra.mxu0 0.0
    %1313 = vmatprep.subr.mxu0 0.0
    %1314 = vmatpush1.xpose.msra.mxu0 0.0
    %1315 = vmatprep.subr.mxu0 0.0
    %1316 = vmatpush1.xpose.msra.mxu0 0.0
    %1317 = vmatprep.subr.mxu0 0.0
    %1318 = vmatpush1.xpose.msra.mxu0 0.0
    %1319 = vmatprep.subr.mxu0 0.0
    %1320 = vmatpush1.xpose.msra.mxu0 0.0
    %1321 = vmatprep.subr.mxu0 0.0
    %1322 = vmatpush1.xpose.msra.mxu0 0.0
    %1323 = vmatprep.subr.mxu0 0.0
    %1324 = vmatpush1.xpose.msra.mxu0 0.0
    %1325 = vmatprep.subr.mxu0 0.0
    %1326 = vmatpush1.xpose.msra.mxu0 %v1293
    %1327 = vmatprep.subr.mxu0 0.0
    %1328 = vmatpush2.xpose.msra.mxu0 0.0
    %1329 = vmatprep.subr.mxu0 0.0
    %1330 = vmatpush2.xpose.msra.mxu0 0.0
    %1331 = vmatprep.subr.mxu0 0.0
    %1332 = vmatpush2.xpose.msra.mxu0 0.0
    %1333 = vmatprep.subr.mxu0 0.0
    %1334 = vmatpush2.xpose.msra.mxu0 0.0
    %1335 = vmatprep.subr.mxu0 0.0
    %1336 = vmatpush2.xpose.msra.mxu0 0.0
    %1337 = vmatprep.subr.mxu0 0.0
    %1338 = vmatpush2.xpose.msra.mxu0 0.0
    %1339 = vmatprep.subr.mxu0 0.0
    %1340 = vmatpush2.xpose.msra.mxu0 0.0
    %1341 = vmatprep.subr.mxu0 0.0
    %1342 = vmatpush2.xpose.msra.mxu0 0.0
    %1343 = vmatprep.subr.mxu0 0.0
    %1344 = vmatpush2.xpose.msra.mxu0 0.0
    %1345 = vmatprep.subr.mxu0 0.0
    %1346 = vmatpush2.xpose.msra.mxu0 0.0
    %1347 = vmatprep.subr.mxu0 0.0
    %1348 = vmatpush2.xpose.msra.mxu0 0.0
    %1349 = vmatprep.subr.mxu0 0.0
    %1350 = vmatpush2.xpose.msra.mxu0 0.0
    %1351 = vmatprep.subr.mxu0 0.0
    %1352 = vmatpush2.xpose.msra.mxu0 0.0
    %1353 = vmatprep.subr.mxu0 0.0
    %1354 = vmatpush2.xpose.msra.mxu0 0.0
    %1355 = vmatprep.subr.mxu0 0.0
    %1356 = vmatpush2.xpose.msra.mxu0 0.0
    %1357 = vmatprep.subr.mxu0 0.0
    %1358 = vmatpush2.xpose.msra.mxu0 0.0
    %1359 = vmatprep.mubr.f32.mxu0 0.0
    %1360 = vmatmul.mubr.f32.gmra.mxu0 %v1291
    %v1361 = vpop.f32.mrf.mxu0
    %v1362 = vadd.f32 0.0, %v1361
    %v1363 = vpop.f32.mrf.mxu0
    %1364 = vdwg.mxu0
    %1365 = vrot.lane.b32.xlu0 %v283, 104
    %v1366 = vpop.permute.xlu0 %1365
    %1367 = vrot.lane.b32.xlu0 %v283, 72
    %v1368 = vpop.permute.xlu0 %1367
    %v1369 = vsel %vm289, %v1366, 0
    %v1371 = vsel %vm289, %v1368, 0
    %1373 = vmatprep.subr.mxu0 0.0
    %1374 = vmatpush1.xpose.msra.mxu0 0.0
    %1375 = vmatprep.subr.mxu0 0.0
    %1376 = vmatpush1.xpose.msra.mxu0 0.0
    %1377 = vmatprep.subr.mxu0 0.0
    %1378 = vmatpush1.xpose.msra.mxu0 0.0
    %1379 = vmatprep.subr.mxu0 0.0
    %1380 = vmatpush1.xpose.msra.mxu0 0.0
    %1381 = vmatprep.subr.mxu0 0.0
    %1382 = vmatpush1.xpose.msra.mxu0 0.0
    %1383 = vmatprep.subr.mxu0 0.0
    %1384 = vmatpush1.xpose.msra.mxu0 0.0
    %1385 = vmatprep.subr.mxu0 0.0
    %1386 = vmatpush1.xpose.msra.mxu0 0.0
    %1387 = vmatprep.subr.mxu0 0.0
    %1388 = vmatpush1.xpose.msra.mxu0 0.0
    %1389 = vmatprep.subr.mxu0 0.0
    %1390 = vmatpush1.xpose.msra.mxu0 0.0
    %1391 = vmatprep.subr.mxu0 0.0
    %1392 = vmatpush1.xpose.msra.mxu0 0.0
    %1393 = vmatprep.subr.mxu0 0.0
    %1394 = vmatpush1.xpose.msra.mxu0 0.0
    %1395 = vmatprep.subr.mxu0 0.0
    %1396 = vmatpush1.xpose.msra.mxu0 0.0
    %1397 = vmatprep.subr.mxu0 0.0
    %1398 = vmatpush1.xpose.msra.mxu0 0.0
    %1399 = vmatprep.subr.mxu0 0.0
    %1400 = vmatpush1.xpose.msra.mxu0 0.0
    %1401 = vmatprep.subr.mxu0 0.0
    %1402 = vmatpush1.xpose.msra.mxu0 0.0
    %1403 = vmatprep.subr.mxu0 0.0
    %1404 = vmatpush1.xpose.msra.mxu0 %v1371
    %1405 = vmatprep.subr.mxu0 0.0
    %1406 = vmatpush2.xpose.msra.mxu0 0.0
    %1407 = vmatprep.subr.mxu0 0.0
    %1408 = vmatpush2.xpose.msra.mxu0 0.0
    %1409 = vmatprep.subr.mxu0 0.0
    %1410 = vmatpush2.xpose.msra.mxu0 0.0
    %1411 = vmatprep.subr.mxu0 0.0
    %1412 = vmatpush2.xpose.msra.mxu0 0.0
    %1413 = vmatprep.subr.mxu0 0.0
    %1414 = vmatpush2.xpose.msra.mxu0 0.0
    %1415 = vmatprep.subr.mxu0 0.0
    %1416 = vmatpush2.xpose.msra.mxu0 0.0
    %1417 = vmatprep.subr.mxu0 0.0
    %1418 = vmatpush2.xpose.msra.mxu0 0.0
    %1419 = vmatprep.subr.mxu0 0.0
    %1420 = vmatpush2.xpose.msra.mxu0 0.0
    %1421 = vmatprep.subr.mxu0 0.0
    %1422 = vmatpush2.xpose.msra.mxu0 0.0
    %1423 = vmatprep.subr.mxu0 0.0
    %1424 = vmatpush2.xpose.msra.mxu0 0.0
    %1425 = vmatprep.subr.mxu0 0.0
    %1426 = vmatpush2.xpose.msra.mxu0 0.0
    %1427 = vmatprep.subr.mxu0 0.0
    %1428 = vmatpush2.xpose.msra.mxu0 0.0
    %1429 = vmatprep.subr.mxu0 0.0
    %1430 = vmatpush2.xpose.msra.mxu0 0.0
    %1431 = vmatprep.subr.mxu0 0.0
    %1432 = vmatpush2.xpose.msra.mxu0 0.0
    %1433 = vmatprep.subr.mxu0 0.0
    %1434 = vmatpush2.xpose.msra.mxu0 0.0
    %1435 = vmatprep.subr.mxu0 0.0
    %1436 = vmatpush2.xpose.msra.mxu0 0.0
    %1437 = vmatprep.mubr.f32.mxu0 0.0
    %1438 = vmatmul.mubr.f32.gmra.mxu0 %v1369
    %v1439 = vpop.f32.mrf.mxu0
    %v1440 = vadd.f32 0.0, %v1439
    %v1441 = vpop.f32.mrf.mxu0
    %1442 = vdwg.mxu0
    %v1443 = vmul.f32 %v1362, 0.35355338
    %v1444 = vmul.f32 %v1440, 0.35355338
    %v1445 = vsel %vm98, %v1443, -1e+09
    %v1446 = vsel %vm99, %v1444, -1e+09
    %v1447 = vsel %vm289, %v1445, -inf
    %1448 = vmax.xlane.f32.xlu0 %v1447
    %v1449 = vpop.xlane.xlu0 %1448
    %v1450 = vsel %vm289, %v1446, -inf
    %1451 = vmax.xlane.f32.xlu0 %v1450
    %v1452 = vpop.xlane.xlu0 %1451
    %v1453 = vsub.f32 %v1445, %v1449
    %v1454 = vsub.f32 %v1446, %v1452
    %v1455 = vmul.f32 %v1453, 1.442695
    %v1456 = vpow.pop %v1455
    %v1457 = vmul.f32 %v1454, 1.442695
    %v1458 = vpow.pop %v1457
    %v1459 = vsel %vm289, %v1456, 0.0
    %1460 = vadd.xlane.f32.xlu0 %v1459
    %v1461 = vpop.xlane.xlu0 %1460
    %v1462 = vsel %vm289, %v1458, 0.0
    %1463 = vadd.xlane.f32.xlu0 %v1462
    %v1464 = vpop.xlane.xlu0 %1463
    %v1465 = vrcp.pop %v1461
    %v1466 = vrcp.pop %v1464
    %v1467 = vmul.f32 %v1456, %v1465
    %v1468 = vmul.f32 %v1458, %v1466
    %1469 = vrot.lane.b32.xlu0 %v278, 40
    %v1470 = vpop.permute.xlu0 %1469
    %v1473 = vsel %vm289, %v1467, 0
    %1475 = vmatprep.subr.mxu0 0.0
    %1476 = vmatpush1.msra.mxu0 0.0
    %1477 = vmatprep.subr.mxu0 0.0
    %1478 = vmatpush1.msra.mxu0 0.0
    %1479 = vmatprep.subr.mxu0 0.0
    %1480 = vmatpush1.msra.mxu0 0.0
    %1481 = vmatprep.subr.mxu0 0.0
    %1482 = vmatpush1.msra.mxu0 0.0
    %1483 = vmatprep.subr.mxu0 0.0
    %1484 = vmatpush1.msra.mxu0 0.0
    %1485 = vmatprep.subr.mxu0 0.0
    %1486 = vmatpush1.msra.mxu0 0.0
    %1487 = vmatprep.subr.mxu0 0.0
    %1488 = vmatpush1.msra.mxu0 0.0
    %1489 = vmatprep.subr.mxu0 0.0
    %1490 = vmatpush1.msra.mxu0 0.0
    %1491 = vmatprep.subr.mxu0 0.0
    %1492 = vmatpush1.msra.mxu0 0.0
    %1493 = vmatprep.subr.mxu0 0.0
    %1494 = vmatpush1.msra.mxu0 0.0
    %1495 = vmatprep.subr.mxu0 0.0
    %1496 = vmatpush1.msra.mxu0 0.0
    %1497 = vmatprep.subr.mxu0 0.0
    %1498 = vmatpush1.msra.mxu0 0.0
    %1499 = vmatprep.subr.mxu0 0.0
    %1500 = vmatpush1.msra.mxu0 0.0
    %1501 = vmatprep.subr.mxu0 0.0
    %1502 = vmatpush1.msra.mxu0 0.0
    %1503 = vmatprep.subr.mxu0 0.0
    %1504 = vmatpush1.msra.mxu0 0.0
    %1505 = vmatprep.subr.mxu0 0.0
    %1506 = vmatpush1.msra.mxu0 %v1470
    %1507 = vmatprep.subr.mxu0 0.0
    %1508 = vmatpush2.msra.mxu0 0.0
    %1509 = vmatprep.subr.mxu0 0.0
    %1510 = vmatpush2.msra.mxu0 0.0
    %1511 = vmatprep.subr.mxu0 0.0
    %1512 = vmatpush2.msra.mxu0 0.0
    %1513 = vmatprep.subr.mxu0 0.0
    %1514 = vmatpush2.msra.mxu0 0.0
    %1515 = vmatprep.subr.mxu0 0.0
    %1516 = vmatpush2.msra.mxu0 0.0
    %1517 = vmatprep.subr.mxu0 0.0
    %1518 = vmatpush2.msra.mxu0 0.0
    %1519 = vmatprep.subr.mxu0 0.0
    %1520 = vmatpush2.msra.mxu0 0.0
    %1521 = vmatprep.subr.mxu0 0.0
    %1522 = vmatpush2.msra.mxu0 0.0
    %1523 = vmatprep.subr.mxu0 0.0
    %1524 = vmatpush2.msra.mxu0 0.0
    %1525 = vmatprep.subr.mxu0 0.0
    %1526 = vmatpush2.msra.mxu0 0.0
    %1527 = vmatprep.subr.mxu0 0.0
    %1528 = vmatpush2.msra.mxu0 0.0
    %1529 = vmatprep.subr.mxu0 0.0
    %1530 = vmatpush2.msra.mxu0 0.0
    %1531 = vmatprep.subr.mxu0 0.0
    %1532 = vmatpush2.msra.mxu0 0.0
    %1533 = vmatprep.subr.mxu0 0.0
    %1534 = vmatpush2.msra.mxu0 0.0
    %1535 = vmatprep.subr.mxu0 0.0
    %1536 = vmatpush2.msra.mxu0 0.0
    %1537 = vmatprep.subr.mxu0 0.0
    %1538 = vmatpush2.msra.mxu0 0.0
    %1539 = vmatprep.mubr.f32.mxu0 0.0
    %1540 = vmatmul.mubr.f32.gmra.mxu0 %v1473
    %v1541 = vpop.f32.mrf.mxu0
    %v1542 = vadd.f32 0.0, %v1541
    %v1543 = vpop.f32.mrf.mxu0
    %1544 = vdwg.mxu0
    %1545 = vrot.lane.b32.xlu0 %v283, 40
    %v1546 = vpop.permute.xlu0 %1545
    %v1549 = vsel %vm289, %v1468, 0
    %1551 = vmatprep.subr.mxu0 0.0
    %1552 = vmatpush1.msra.mxu0 0.0
    %1553 = vmatprep.subr.mxu0 0.0
    %1554 = vmatpush1.msra.mxu0 0.0
    %1555 = vmatprep.subr.mxu0 0.0
    %1556 = vmatpush1.msra.mxu0 0.0
    %1557 = vmatprep.subr.mxu0 0.0
    %1558 = vmatpush1.msra.mxu0 0.0
    %1559 = vmatprep.subr.mxu0 0.0
    %1560 = vmatpush1.msra.mxu0 0.0
    %1561 = vmatprep.subr.mxu0 0.0
    %1562 = vmatpush1.msra.mxu0 0.0
    %1563 = vmatprep.subr.mxu0 0.0
    %1564 = vmatpush1.msra.mxu0 0.0
    %1565 = vmatprep.subr.mxu0 0.0
    %1566 = vmatpush1.msra.mxu0 0.0
    %1567 = vmatprep.subr.mxu0 0.0
    %1568 = vmatpush1.msra.mxu0 0.0
    %1569 = vmatprep.subr.mxu0 0.0
    %1570 = vmatpush1.msra.mxu0 0.0
    %1571 = vmatprep.subr.mxu0 0.0
    %1572 = vmatpush1.msra.mxu0 0.0
    %1573 = vmatprep.subr.mxu0 0.0
    %1574 = vmatpush1.msra.mxu0 0.0
    %1575 = vmatprep.subr.mxu0 0.0
    %1576 = vmatpush1.msra.mxu0 0.0
    %1577 = vmatprep.subr.mxu0 0.0
    %1578 = vmatpush1.msra.mxu0 0.0
    %1579 = vmatprep.subr.mxu0 0.0
    %1580 = vmatpush1.msra.mxu0 0.0
    %1581 = vmatprep.subr.mxu0 0.0
    %1582 = vmatpush1.msra.mxu0 %v1546
    %1583 = vmatprep.subr.mxu0 0.0
    %1584 = vmatpush2.msra.mxu0 0.0
    %1585 = vmatprep.subr.mxu0 0.0
    %1586 = vmatpush2.msra.mxu0 0.0
    %1587 = vmatprep.subr.mxu0 0.0
    %1588 = vmatpush2.msra.mxu0 0.0
    %1589 = vmatprep.subr.mxu0 0.0
    %1590 = vmatpush2.msra.mxu0 0.0
    %1591 = vmatprep.subr.mxu0 0.0
    %1592 = vmatpush2.msra.mxu0 0.0
    %1593 = vmatprep.subr.mxu0 0.0
    %1594 = vmatpush2.msra.mxu0 0.0
    %1595 = vmatprep.subr.mxu0 0.0
    %1596 = vmatpush2.msra.mxu0 0.0
    %1597 = vmatprep.subr.mxu0 0.0
    %1598 = vmatpush2.msra.mxu0 0.0
    %1599 = vmatprep.subr.mxu0 0.0
    %1600 = vmatpush2.msra.mxu0 0.0
    %1601 = vmatprep.subr.mxu0 0.0
    %1602 = vmatpush2.msra.mxu0 0.0
    %1603 = vmatprep.subr.mxu0 0.0
    %1604 = vmatpush2.msra.mxu0 0.0
    %1605 = vmatprep.subr.mxu0 0.0
    %1606 = vmatpush2.msra.mxu0 0.0
    %1607 = vmatprep.subr.mxu0 0.0
    %1608 = vmatpush2.msra.mxu0 0.0
    %1609 = vmatprep.subr.mxu0 0.0
    %1610 = vmatpush2.msra.mxu0 0.0
    %1611 = vmatprep.subr.mxu0 0.0
    %1612 = vmatpush2.msra.mxu0 0.0
    %1613 = vmatprep.subr.mxu0 0.0
    %1614 = vmatpush2.msra.mxu0 0.0
    %1615 = vmatprep.mubr.f32.mxu0 0.0
    %1616 = vmatmul.mubr.f32.gmra.mxu0 %v1549
    %v1617 = vpop.f32.mrf.mxu0
    %v1618 = vadd.f32 0.0, %v1617
    %v1619 = vpop.f32.mrf.mxu0
    %1620 = vdwg.mxu0
    %1623 = vrot.lane.b32.xlu0 %v874, 8
    %v1624 = vpop.permute.xlu0 %1623
    %1625 = vrot.lane.b32.xlu0 %v950, 8
    %v1626 = vpop.permute.xlu0 %1625
    %1631 = vrot.lane.b32.xlu0 %v1208, 16
    %v1632 = vpop.permute.xlu0 %1631
    %1633 = vrot.lane.b32.xlu0 %v1284, 16
    %v1634 = vpop.permute.xlu0 %1633
    %1639 = vrot.lane.b32.xlu0 %v1542, 24
    %v1640 = vpop.permute.xlu0 %1639
    %1641 = vrot.lane.b32.xlu0 %v1618, 24
    %v1642 = vpop.permute.xlu0 %1641
    %v1645 = vsel %vm289, %v540, %v1624
    %v1646 = vsel %vm289, %v616, %v1626
    %v1647 = vsel %vm109, %v1645, %v1632
    %v1648 = vsel %vm109, %v1646, %v1634
    %vm1649 = vcmask 195584
    %v1650 = vsel %vm1649, %v1647, %v1640
    %v1651 = vsel %vm1649, %v1648, %v1642
    %v1652 = vld [vmem:[#allocation10 + $0x8] sm:$0xff]
    %v1653 = vld [vmem:[#allocation10 + $0x40] sm:$0xff]
    %v1654 = vld [vmem:[#allocation10 + $0x78] sm:$0xff]
    %v1655 = vld [vmem:[#allocation10 + $0xb0] sm:$0xff]
    %v1656 = vld [vmem:[%s5 + $0x2] sm:$0x1]
    %v1658 = vlaneseq
    %v1659 = vshrl.u32 %v1658, 7
    %v1660 = vsub.s32 0, %v1659
    %v1661 = vrot.slane %v1656, %v1660
    %v1664 = vsel %vm204, %v1650, 0
    %v1667 = vsel %vm204, %v1651, 0
    %1669 = vmatprep.subr.mxu0 0.0
    %1670 = vmatpush1.msra.mxu0 0.0
    %1671 = vmatprep.subr.mxu0 0.0
    %1672 = vmatpush1.msra.mxu0 0.0
    %1673 = vmatprep.subr.mxu0 0.0
    %1674 = vmatpush1.msra.mxu0 0.0
    %1675 = vmatprep.subr.mxu0 0.0
    %1676 = vmatpush1.msra.mxu0 0.0
    %1677 = vmatprep.subr.mxu0 0.0
    %1678 = vmatpush1.msra.mxu0 0.0
    %1679 = vmatprep.subr.mxu0 0.0
    %1680 = vmatpush1.msra.mxu0 0.0
    %1681 = vmatprep.subr.mxu0 0.0
    %1682 = vmatpush1.msra.mxu0 0.0
    %1683 = vmatprep.subr.mxu0 0.0
    %1684 = vmatpush1.msra.mxu0 0.0
    %1685 = vmatprep.subr.mxu0 0.0
    %1686 = vmatpush1.msra.mxu0 0.0
    %1687 = vmatprep.subr.mxu0 0.0
    %1688 = vmatpush1.msra.mxu0 0.0
    %1689 = vmatprep.subr.mxu0 0.0
    %1690 = vmatpush1.msra.mxu0 0.0
    %1691 = vmatprep.subr.mxu0 0.0
    %1692 = vmatpush1.msra.mxu0 0.0
    %1693 = vmatprep.subr.mxu0 0.0
    %1694 = vmatpush1.msra.mxu0 %v1655
    %1695 = vmatprep.subr.mxu0 0.0
    %1696 = vmatpush1.msra.mxu0 %v1654
    %1697 = vmatprep.subr.mxu0 0.0
    %1698 = vmatpush1.msra.mxu0 %v1653
    %1699 = vmatprep.subr.mxu0 0.0
    %1700 = vmatpush1.msra.mxu0 %v1652
    %1701 = vmatprep.subr.mxu0 0.0
    %1702 = vmatpush2.msra.mxu0 0.0
    %1703 = vmatprep.subr.mxu0 0.0
    %1704 = vmatpush2.msra.mxu0 0.0
    %1705 = vmatprep.subr.mxu0 0.0
    %1706 = vmatpush2.msra.mxu0 0.0
    %1707 = vmatprep.subr.mxu0 0.0
    %1708 = vmatpush2.msra.mxu0 0.0
    %1709 = vmatprep.subr.mxu0 0.0
    %1710 = vmatpush2.msra.mxu0 0.0
    %1711 = vmatprep.subr.mxu0 0.0
    %1712 = vmatpush2.msra.mxu0 0.0
    %1713 = vmatprep.subr.mxu0 0.0
    %1714 = vmatpush2.msra.mxu0 0.0
    %1715 = vmatprep.subr.mxu0 0.0
    %1716 = vmatpush2.msra.mxu0 0.0
    %1717 = vmatprep.subr.mxu0 0.0
    %1718 = vmatpush2.msra.mxu0 0.0
    %1719 = vmatprep.subr.mxu0 0.0
    %1720 = vmatpush2.msra.mxu0 0.0
    %1721 = vmatprep.subr.mxu0 0.0
    %1722 = vmatpush2.msra.mxu0 0.0
    %1723 = vmatprep.subr.mxu0 0.0
    %1724 = vmatpush2.msra.mxu0 0.0
    %1725 = vmatprep.subr.mxu0 0.0
    %1726 = vmatpush2.msra.mxu0 0.0
    %1727 = vmatprep.subr.mxu0 0.0
    %1728 = vmatpush2.msra.mxu0 0.0
    %1729 = vmatprep.subr.mxu0 0.0
    %1730 = vmatpush2.msra.mxu0 0.0
    %1731 = vmatprep.subr.mxu0 0.0
    %1732 = vmatpush2.msra.mxu0 0.0
    %1733 = vmatprep.mubr.f32.mxu0 0.0
    %1734 = vmatmul.mubr.f32.gmra.mxu0 %v1664
    %v1735 = vpop.f32.mrf.mxu0
    %v1736 = vadd.f32 %v1661, %v1735
    %v1737 = vpop.f32.mrf.mxu0
    %1738 = vmatprep.mubr.f32.mxu0 0.0
    %1739 = vmatmul.mubr.f32.gmra.mxu0 %v1667
    %v1740 = vpop.f32.mrf.mxu0
    %v1741 = vadd.f32 %v1661, %v1740
    %v1742 = vpop.f32.mrf.mxu0
    %1743 = vdwg.mxu0
    %v1744 = vmax.f32 %v1736, 0.0
    %v1745 = vmax.f32 %v1741, 0.0
    %v1746 = vld [vmem:[#allocation10 + $0x10] sm:$0xff]
    %v1747 = vld [vmem:[#allocation10 + $0x48] sm:$0xff]
    %v1748 = vld [vmem:[#allocation10 + $0x80] sm:$0xff]
    %v1749 = vld [vmem:[#allocation10 + $0xb8] sm:$0xff]
    %v1750 = vld [vmem:[%s5 + $0x3] sm:$0x1]
    %v1752 = vlaneseq
    %v1753 = vshrl.u32 %v1752, 7
    %v1754 = vsub.s32 0, %v1753
    %v1755 = vrot.slane %v1750, %v1754
    %v1758 = vsel %vm204, %v1744, 0
    %v1761 = vsel %vm204, %v1745, 0
    %1763 = vmatprep.subr.mxu0 0.0
    %1764 = vmatpush1.msra.mxu0 0.0
    %1765 = vmatprep.subr.mxu0 0.0
    %1766 = vmatpush1.msra.mxu0 0.0
    %1767 = vmatprep.subr.mxu0 0.0
    %1768 = vmatpush1.msra.mxu0 0.0
    %1769 = vmatprep.subr.mxu0 0.0
    %1770 = vmatpush1.msra.mxu0 0.0
    %1771 = vmatprep.subr.mxu0 0.0
    %1772 = vmatpush1.msra.mxu0 0.0
    %1773 = vmatprep.subr.mxu0 0.0
    %1774 = vmatpush1.msra.mxu0 0.0
    %1775 = vmatprep.subr.mxu0 0.0
    %1776 = vmatpush1.msra.mxu0 0.0
    %1777 = vmatprep.subr.mxu0 0.0
    %1778 = vmatpush1.msra.mxu0 0.0
    %1779 = vmatprep.subr.mxu0 0.0
    %1780 = vmatpush1.msra.mxu0 0.0
    %1781 = vmatprep.subr.mxu0 0.0
    %1782 = vmatpush1.msra.mxu0 0.0
    %1783 = vmatprep.subr.mxu0 0.0
    %1784 = vmatpush1.msra.mxu0 0.0
    %1785 = vmatprep.subr.mxu0 0.0
    %1786 = vmatpush1.msra.mxu0 0.0
    %1787 = vmatprep.subr.mxu0 0.0
    %1788 = vmatpush1.msra.mxu0 %v1749
    %1789 = vmatprep.subr.mxu0 0.0
    %1790 = vmatpush1.msra.mxu0 %v1748
    %1791 = vmatprep.subr.mxu0 0.0
    %1792 = vmatpush1.msra.mxu0 %v1747
    %1793 = vmatprep.subr.mxu0 0.0
    %1794 = vmatpush1.msra.mxu0 %v1746
    %1795 = vmatprep.subr.mxu0 0.0
    %1796 = vmatpush2.msra.mxu0 0.0
    %1797 = vmatprep.subr.mxu0 0.0
    %1798 = vmatpush2.msra.mxu0 0.0
    %1799 = vmatprep.subr.mxu0 0.0
    %1800 = vmatpush2.msra.mxu0 0.0
    %1801 = vmatprep.subr.mxu0 0.0
    %1802 = vmatpush2.msra.mxu0 0.0
    %1803 = vmatprep.subr.mxu0 0.0
    %1804 = vmatpush2.msra.mxu0 0.0
    %1805 = vmatprep.subr.mxu0 0.0
    %1806 = vmatpush2.msra.mxu0 0.0
    %1807 = vmatprep.subr.mxu0 0.0
    %1808 = vmatpush2.msra.mxu0 0.0
    %1809 = vmatprep.subr.mxu0 0.0
    %1810 = vmatpush2.msra.mxu0 0.0
    %1811 = vmatprep.subr.mxu0 0.0
    %1812 = vmatpush2.msra.mxu0 0.0
    %1813 = vmatprep.subr.mxu0 0.0
    %1814 = vmatpush2.msra.mxu0 0.0
    %1815 = vmatprep.subr.mxu0 0.0
    %1816 = vmatpush2.msra.mxu0 0.0
    %1817 = vmatprep.subr.mxu0 0.0
    %1818 = vmatpush2.msra.mxu0 0.0
    %1819 = vmatprep.subr.mxu0 0.0
    %1820 = vmatpush2.msra.mxu0 0.0
    %1821 = vmatprep.subr.mxu0 0.0
    %1822 = vmatpush2.msra.mxu0 0.0
    %1823 = vmatprep.subr.mxu0 0.0
    %1824 = vmatpush2.msra.mxu0 0.0
    %1825 = vmatprep.subr.mxu0 0.0
    %1826 = vmatpush2.msra.mxu0 0.0
    %1827 = vmatprep.mubr.f32.mxu0 0.0
    %1828 = vmatmul.mubr.f32.gmra.mxu0 %v1758
    %v1829 = vpop.f32.mrf.mxu0
    %v1830 = vadd.f32 %v1755, %v1829
    %v1831 = vpop.f32.mrf.mxu0
    %1832 = vmatprep.mubr.f32.mxu0 0.0
    %1833 = vmatmul.mubr.f32.gmra.mxu0 %v1761
    %v1834 = vpop.f32.mrf.mxu0
    %v1835 = vadd.f32 %v1755, %v1834
    %v1836 = vpop.f32.mrf.mxu0
    %1837 = vdwg.mxu0
    %1839 = vrot.lane.b32.xlu0 %v1830, 96
    %v1840 = vpop.permute.xlu0 %1839
    %v1841 = vsel %vm289, %v1830, 0
    %v1843 = vsel %vm289, %v1840, 0
    %1845 = vmatprep.subr.mxu0 0.0
    %1846 = vmatpush1.xpose.msra.mxu0 0.0
    %1847 = vmatprep.subr.mxu0 0.0
    %1848 = vmatpush1.xpose.msra.mxu0 0.0
    %1849 = vmatprep.subr.mxu0 0.0
    %1850 = vmatpush1.xpose.msra.mxu0 0.0
    %1851 = vmatprep.subr.mxu0 0.0
    %1852 = vmatpush1.xpose.msra.mxu0 0.0
    %1853 = vmatprep.subr.mxu0 0.0
    %1854 = vmatpush1.xpose.msra.mxu0 0.0
    %1855 = vmatprep.subr.mxu0 0.0
    %1856 = vmatpush1.xpose.msra.mxu0 0.0
    %1857 = vmatprep.subr.mxu0 0.0
    %1858 = vmatpush1.xpose.msra.mxu0 0.0
    %1859 = vmatprep.subr.mxu0 0.0
    %1860 = vmatpush1.xpose.msra.mxu0 0.0
    %1861 = vmatprep.subr.mxu0 0.0
    %1862 = vmatpush1.xpose.msra.mxu0 0.0
    %1863 = vmatprep.subr.mxu0 0.0
    %1864 = vmatpush1.xpose.msra.mxu0 0.0
    %1865 = vmatprep.subr.mxu0 0.0
    %1866 = vmatpush1.xpose.msra.mxu0 0.0
    %1867 = vmatprep.subr.mxu0 0.0
    %1868 = vmatpush1.xpose.msra.mxu0 0.0
    %1869 = vmatprep.subr.mxu0 0.0
    %1870 = vmatpush1.xpose.msra.mxu0 0.0
    %1871 = vmatprep.subr.mxu0 0.0
    %1872 = vmatpush1.xpose.msra.mxu0 0.0
    %1873 = vmatprep.subr.mxu0 0.0
    %1874 = vmatpush1.xpose.msra.mxu0 0.0
    %1875 = vmatprep.subr.mxu0 0.0
    %1876 = vmatpush1.xpose.msra.mxu0 %v1843
    %1877 = vmatprep.subr.mxu0 0.0
    %1878 = vmatpush2.xpose.msra.mxu0 0.0
    %1879 = vmatprep.subr.mxu0 0.0
    %1880 = vmatpush2.xpose.msra.mxu0 0.0
    %1881 = vmatprep.subr.mxu0 0.0
    %1882 = vmatpush2.xpose.msra.mxu0 0.0
    %1883 = vmatprep.subr.mxu0 0.0
    %1884 = vmatpush2.xpose.msra.mxu0 0.0
    %1885 = vmatprep.subr.mxu0 0.0
    %1886 = vmatpush2.xpose.msra.mxu0 0.0
    %1887 = vmatprep.subr.mxu0 0.0
    %1888 = vmatpush2.xpose.msra.mxu0 0.0
    %1889 = vmatprep.subr.mxu0 0.0
    %1890 = vmatpush2.xpose.msra.mxu0 0.0
    %1891 = vmatprep.subr.mxu0 0.0
    %1892 = vmatpush2.xpose.msra.mxu0 0.0
    %1893 = vmatprep.subr.mxu0 0.0
    %1894 = vmatpush2.xpose.msra.mxu0 0.0
    %1895 = vmatprep.subr.mxu0 0.0
    %1896 = vmatpush2.xpose.msra.mxu0 0.0
    %1897 = vmatprep.subr.mxu0 0.0
    %1898 = vmatpush2.xpose.msra.mxu0 0.0
    %1899 = vmatprep.subr.mxu0 0.0
    %1900 = vmatpush2.xpose.msra.mxu0 0.0
    %1901 = vmatprep.subr.mxu0 0.0
    %1902 = vmatpush2.xpose.msra.mxu0 0.0
    %1903 = vmatprep.subr.mxu0 0.0
    %1904 = vmatpush2.xpose.msra.mxu0 0.0
    %1905 = vmatprep.subr.mxu0 0.0
    %1906 = vmatpush2.xpose.msra.mxu0 0.0
    %1907 = vmatprep.subr.mxu0 0.0
    %1908 = vmatpush2.xpose.msra.mxu0 0.0
    %1909 = vmatprep.mubr.f32.mxu0 0.0
    %1910 = vmatmul.mubr.f32.gmra.mxu0 %v1841
    %v1911 = vpop.f32.mrf.mxu0
    %v1912 = vadd.f32 0.0, %v1911
    %v1913 = vpop.f32.mrf.mxu0
    %1914 = vdwg.mxu0
    %1916 = vrot.lane.b32.xlu0 %v1835, 96
    %v1917 = vpop.permute.xlu0 %1916
    %v1918 = vsel %vm289, %v1835, 0
    %v1920 = vsel %vm289, %v1917, 0
    %1922 = vmatprep.subr.mxu0 0.0
    %1923 = vmatpush1.xpose.msra.mxu0 0.0
    %1924 = vmatprep.subr.mxu0 0.0
    %1925 = vmatpush1.xpose.msra.mxu0 0.0
    %1926 = vmatprep.subr.mxu0 0.0
    %1927 = vmatpush1.xpose.msra.mxu0 0.0
    %1928 = vmatprep.subr.mxu0 0.0
    %1929 = vmatpush1.xpose.msra.mxu0 0.0
    %1930 = vmatprep.subr.mxu0 0.0
    %1931 = vmatpush1.xpose.msra.mxu0 0.0
    %1932 = vmatprep.subr.mxu0 0.0
    %1933 = vmatpush1.xpose.msra.mxu0 0.0
    %1934 = vmatprep.subr.mxu0 0.0
    %1935 = vmatpush1.xpose.msra.mxu0 0.0
    %1936 = vmatprep.subr.mxu0 0.0
    %1937 = vmatpush1.xpose.msra.mxu0 0.0
    %1938 = vmatprep.subr.mxu0 0.0
    %1939 = vmatpush1.xpose.msra.mxu0 0.0
    %1940 = vmatprep.subr.mxu0 0.0
    %1941 = vmatpush1.xpose.msra.mxu0 0.0
    %1942 = vmatprep.subr.mxu0 0.0
    %1943 = vmatpush1.xpose.msra.mxu0 0.0
    %1944 = vmatprep.subr.mxu0 0.0
    %1945 = vmatpush1.xpose.msra.mxu0 0.0
    %1946 = vmatprep.subr.mxu0 0.0
    %1947 = vmatpush1.xpose.msra.mxu0 0.0
    %1948 = vmatprep.subr.mxu0 0.0
    %1949 = vmatpush1.xpose.msra.mxu0 0.0
    %1950 = vmatprep.subr.mxu0 0.0
    %1951 = vmatpush1.xpose.msra.mxu0 0.0
    %1952 = vmatprep.subr.mxu0 0.0
    %1953 = vmatpush1.xpose.msra.mxu0 %v1920
    %1954 = vmatprep.subr.mxu0 0.0
    %1955 = vmatpush2.xpose.msra.mxu0 0.0
    %1956 = vmatprep.subr.mxu0 0.0
    %1957 = vmatpush2.xpose.msra.mxu0 0.0
    %1958 = vmatprep.subr.mxu0 0.0
    %1959 = vmatpush2.xpose.msra.mxu0 0.0
    %1960 = vmatprep.subr.mxu0 0.0
    %1961 = vmatpush2.xpose.msra.mxu0 0.0
    %1962 = vmatprep.subr.mxu0 0.0
    %1963 = vmatpush2.xpose.msra.mxu0 0.0
    %1964 = vmatprep.subr.mxu0 0.0
    %1965 = vmatpush2.xpose.msra.mxu0 0.0
    %1966 = vmatprep.subr.mxu0 0.0
    %1967 = vmatpush2.xpose.msra.mxu0 0.0
    %1968 = vmatprep.subr.mxu0 0.0
    %1969 = vmatpush2.xpose.msra.mxu0 0.0
    %1970 = vmatprep.subr.mxu0 0.0
    %1971 = vmatpush2.xpose.msra.mxu0 0.0
    %1972 = vmatprep.subr.mxu0 0.0
    %1973 = vmatpush2.xpose.msra.mxu0 0.0
    %1974 = vmatprep.subr.mxu0 0.0
    %1975 = vmatpush2.xpose.msra.mxu0 0.0
    %1976 = vmatprep.subr.mxu0 0.0
    %1977 = vmatpush2.xpose.msra.mxu0 0.0
    %1978 = vmatprep.subr.mxu0 0.0
    %1979 = vmatpush2.xpose.msra.mxu0 0.0
    %1980 = vmatprep.subr.mxu0 0.0
    %1981 = vmatpush2.xpose.msra.mxu0 0.0
    %1982 = vmatprep.subr.mxu0 0.0
    %1983 = vmatpush2.xpose.msra.mxu0 0.0
    %1984 = vmatprep.subr.mxu0 0.0
    %1985 = vmatpush2.xpose.msra.mxu0 0.0
    %1986 = vmatprep.mubr.f32.mxu0 0.0
    %1987 = vmatmul.mubr.f32.gmra.mxu0 %v1918
    %v1988 = vpop.f32.mrf.mxu0
    %v1989 = vadd.f32 0.0, %v1988
    %v1990 = vpop.f32.mrf.mxu0
    %1991 = vdwg.mxu0
    %v1992 = vmul.f32 %v1912, 0.35355338
    %v1993 = vmul.f32 %v1989, 0.35355338
    %v1994 = vsel %vm98, %v1992, -1e+09
    %v1995 = vsel %vm99, %v1993, -1e+09
    %v1996 = vsel %vm289, %v1994, -inf
    %1997 = vmax.xlane.f32.xlu0 %v1996
    %v1998 = vpop.xlane.xlu0 %1997
    %v1999 = vsel %vm289, %v1995, -inf
    %2000 = vmax.xlane.f32.xlu0 %v1999
    %v2001 = vpop.xlane.xlu0 %2000
    %v2002 = vsub.f32 %v1994, %v1998
    %v2003 = vsub.f32 %v1995, %v2001
    %v2004 = vmul.f32 %v2002, 1.442695
    %v2005 = vpow.pop %v2004
    %v2006 = vmul.f32 %v2003, 1.442695
    %v2007 = vpow.pop %v2006
    %v2008 = vsel %vm289, %v2005, 0.0
    %2009 = vadd.xlane.f32.xlu0 %v2008
    %v2010 = vpop.xlane.xlu0 %2009
    %v2011 = vsel %vm289, %v2007, 0.0
    %2012 = vadd.xlane.f32.xlu0 %v2011
    %v2013 = vpop.xlane.xlu0 %2012
    %v2014 = vrcp.pop %v2010
    %v2015 = vrcp.pop %v2013
    %v2016 = vmul.f32 %v2005, %v2014
    %v2017 = vmul.f32 %v2007, %v2015
    %2018 = vrot.lane.b32.xlu0 %v1830, 64
    %v2019 = vpop.permute.xlu0 %2018
    %v2022 = vsel %vm289, %v2016, 0
    %2024 = vmatprep.subr.mxu0 0.0
    %2025 = vmatpush1.msra.mxu0 0.0
    %2026 = vmatprep.subr.mxu0 0.0
    %2027 = vmatpush1.msra.mxu0 0.0
    %2028 = vmatprep.subr.mxu0 0.0
    %2029 = vmatpush1.msra.mxu0 0.0
    %2030 = vmatprep.subr.mxu0 0.0
    %2031 = vmatpush1.msra.mxu0 0.0
    %2032 = vmatprep.subr.mxu0 0.0
    %2033 = vmatpush1.msra.mxu0 0.0
    %2034 = vmatprep.subr.mxu0 0.0
    %2035 = vmatpush1.msra.mxu0 0.0
    %2036 = vmatprep.subr.mxu0 0.0
    %2037 = vmatpush1.msra.mxu0 0.0
    %2038 = vmatprep.subr.mxu0 0.0
    %2039 = vmatpush1.msra.mxu0 0.0
    %2040 = vmatprep.subr.mxu0 0.0
    %2041 = vmatpush1.msra.mxu0 0.0
    %2042 = vmatprep.subr.mxu0 0.0
    %2043 = vmatpush1.msra.mxu0 0.0
    %2044 = vmatprep.subr.mxu0 0.0
    %2045 = vmatpush1.msra.mxu0 0.0
    %2046 = vmatprep.subr.mxu0 0.0
    %2047 = vmatpush1.msra.mxu0 0.0
    %2048 = vmatprep.subr.mxu0 0.0
    %2049 = vmatpush1.msra.mxu0 0.0
    %2050 = vmatprep.subr.mxu0 0.0
    %2051 = vmatpush1.msra.mxu0 0.0
    %2052 = vmatprep.subr.mxu0 0.0
    %2053 = vmatpush1.msra.mxu0 0.0
    %2054 = vmatprep.subr.mxu0 0.0
    %2055 = vmatpush1.msra.mxu0 %v2019
    %2056 = vmatprep.subr.mxu0 0.0
    %2057 = vmatpush2.msra.mxu0 0.0
    %2058 = vmatprep.subr.mxu0 0.0
    %2059 = vmatpush2.msra.mxu0 0.0
    %2060 = vmatprep.subr.mxu0 0.0
    %2061 = vmatpush2.msra.mxu0 0.0
    %2062 = vmatprep.subr.mxu0 0.0
    %2063 = vmatpush2.msra.mxu0 0.0
    %2064 = vmatprep.subr.mxu0 0.0
    %2065 = vmatpush2.msra.mxu0 0.0
    %2066 = vmatprep.subr.mxu0 0.0
    %2067 = vmatpush2.msra.mxu0 0.0
    %2068 = vmatprep.subr.mxu0 0.0
    %2069 = vmatpush2.msra.mxu0 0.0
    %2070 = vmatprep.subr.mxu0 0.0
    %2071 = vmatpush2.msra.mxu0 0.0
    %2072 = vmatprep.subr.mxu0 0.0
    %2073 = vmatpush2.msra.mxu0 0.0
    %2074 = vmatprep.subr.mxu0 0.0
    %2075 = vmatpush2.msra.mxu0 0.0
    %2076 = vmatprep.subr.mxu0 0.0
    %2077 = vmatpush2.msra.mxu0 0.0
    %2078 = vmatprep.subr.mxu0 0.0
    %2079 = vmatpush2.msra.mxu0 0.0
    %2080 = vmatprep.subr.mxu0 0.0
    %2081 = vmatpush2.msra.mxu0 0.0
    %2082 = vmatprep.subr.mxu0 0.0
    %2083 = vmatpush2.msra.mxu0 0.0
    %2084 = vmatprep.subr.mxu0 0.0
    %2085 = vmatpush2.msra.mxu0 0.0
    %2086 = vmatprep.subr.mxu0 0.0
    %2087 = vmatpush2.msra.mxu0 0.0
    %2088 = vmatprep.mubr.f32.mxu0 0.0
    %2089 = vmatmul.mubr.f32.gmra.mxu0 %v2022
    %v2090 = vpop.f32.mrf.mxu0
    %v2091 = vadd.f32 0.0, %v2090
    %v2092 = vpop.f32.mrf.mxu0
    %2093 = vdwg.mxu0
    %2094 = vrot.lane.b32.xlu0 %v1835, 64
    %v2095 = vpop.permute.xlu0 %2094
    %v2098 = vsel %vm289, %v2017, 0
    %2100 = vmatprep.subr.mxu0 0.0
    %2101 = vmatpush1.msra.mxu0 0.0
    %2102 = vmatprep.subr.mxu0 0.0
    %2103 = vmatpush1.msra.mxu0 0.0
    %2104 = vmatprep.subr.mxu0 0.0
    %2105 = vmatpush1.msra.mxu0 0.0
    %2106 = vmatprep.subr.mxu0 0.0
    %2107 = vmatpush1.msra.mxu0 0.0
    %2108 = vmatprep.subr.mxu0 0.0
    %2109 = vmatpush1.msra.mxu0 0.0
    %2110 = vmatprep.subr.mxu0 0.0
    %2111 = vmatpush1.msra.mxu0 0.0
    %2112 = vmatprep.subr.mxu0 0.0
    %2113 = vmatpush1.msra.mxu0 0.0
    %2114 = vmatprep.subr.mxu0 0.0
    %2115 = vmatpush1.msra.mxu0 0.0
    %2116 = vmatprep.subr.mxu0 0.0
    %2117 = vmatpush1.msra.mxu0 0.0
    %2118 = vmatprep.subr.mxu0 0.0
    %2119 = vmatpush1.msra.mxu0 0.0
    %2120 = vmatprep.subr.mxu0 0.0
    %2121 = vmatpush1.msra.mxu0 0.0
    %2122 = vmatprep.subr.mxu0 0.0
    %2123 = vmatpush1.msra.mxu0 0.0
    %2124 = vmatprep.subr.mxu0 0.0
    %2125 = vmatpush1.msra.mxu0 0.0
    %2126 = vmatprep.subr.mxu0 0.0
    %2127 = vmatpush1.msra.mxu0 0.0
    %2128 = vmatprep.subr.mxu0 0.0
    %2129 = vmatpush1.msra.mxu0 0.0
    %2130 = vmatprep.subr.mxu0 0.0
    %2131 = vmatpush1.msra.mxu0 %v2095
    %2132 = vmatprep.subr.mxu0 0.0
    %2133 = vmatpush2.msra.mxu0 0.0
    %2134 = vmatprep.subr.mxu0 0.0
    %2135 = vmatpush2.msra.mxu0 0.0
    %2136 = vmatprep.subr.mxu0 0.0
    %2137 = vmatpush2.msra.mxu0 0.0
    %2138 = vmatprep.subr.mxu0 0.0
    %2139 = vmatpush2.msra.mxu0 0.0
    %2140 = vmatprep.subr.mxu0 0.0
    %2141 = vmatpush2.msra.mxu0 0.0
    %2142 = vmatprep.subr.mxu0 0.0
    %2143 = vmatpush2.msra.mxu0 0.0
    %2144 = vmatprep.subr.mxu0 0.0
    %2145 = vmatpush2.msra.mxu0 0.0
    %2146 = vmatprep.subr.mxu0 0.0
    %2147 = vmatpush2.msra.mxu0 0.0
    %2148 = vmatprep.subr.mxu0 0.0
    %2149 = vmatpush2.msra.mxu0 0.0
    %2150 = vmatprep.subr.mxu0 0.0
    %2151 = vmatpush2.msra.mxu0 0.0
    %2152 = vmatprep.subr.mxu0 0.0
    %2153 = vmatpush2.msra.mxu0 0.0
    %2154 = vmatprep.subr.mxu0 0.0
    %2155 = vmatpush2.msra.mxu0 0.0
    %2156 = vmatprep.subr.mxu0 0.0
    %2157 = vmatpush2.msra.mxu0 0.0
    %2158 = vmatprep.subr.mxu0 0.0
    %2159 = vmatpush2.msra.mxu0 0.0
    %2160 = vmatprep.subr.mxu0 0.0
    %2161 = vmatpush2.msra.mxu0 0.0
    %2162 = vmatprep.subr.mxu0 0.0
    %2163 = vmatpush2.msra.mxu0 0.0
    %2164 = vmatprep.mubr.f32.mxu0 0.0
    %2165 = vmatmul.mubr.f32.gmra.mxu0 %v2098
    %v2166 = vpop.f32.mrf.mxu0
    %v2167 = vadd.f32 0.0, %v2166
    %v2168 = vpop.f32.mrf.mxu0
    %2169 = vdwg.mxu0
    %2170 = vrot.lane.b32.xlu0 %v1830, 120
    %v2171 = vpop.permute.xlu0 %2170
    %2172 = vrot.lane.b32.xlu0 %v1830, 88
    %v2173 = vpop.permute.xlu0 %2172
    %v2174 = vsel %vm289, %v2171, 0
    %v2176 = vsel %vm289, %v2173, 0
    %2178 = vmatprep.subr.mxu0 0.0
    %2179 = vmatpush1.xpose.msra.mxu0 0.0
    %2180 = vmatprep.subr.mxu0 0.0
    %2181 = vmatpush1.xpose.msra.mxu0 0.0
    %2182 = vmatprep.subr.mxu0 0.0
    %2183 = vmatpush1.xpose.msra.mxu0 0.0
    %2184 = vmatprep.subr.mxu0 0.0
    %2185 = vmatpush1.xpose.msra.mxu0 0.0
    %2186 = vmatprep.subr.mxu0 0.0
    %2187 = vmatpush1.xpose.msra.mxu0 0.0
    %2188 = vmatprep.subr.mxu0 0.0
    %2189 = vmatpush1.xpose.msra.mxu0 0.0
    %2190 = vmatprep.subr.mxu0 0.0
    %2191 = vmatpush1.xpose.msra.mxu0 0.0
    %2192 = vmatprep.subr.mxu0 0.0
    %2193 = vmatpush1.xpose.msra.mxu0 0.0
    %2194 = vmatprep.subr.mxu0 0.0
    %2195 = vmatpush1.xpose.msra.mxu0 0.0
    %2196 = vmatprep.subr.mxu0 0.0
    %2197 = vmatpush1.xpose.msra.mxu0 0.0
    %2198 = vmatprep.subr.mxu0 0.0
    %2199 = vmatpush1.xpose.msra.mxu0 0.0
    %2200 = vmatprep.subr.mxu0 0.0
    %2201 = vmatpush1.xpose.msra.mxu0 0.0
    %2202 = vmatprep.subr.mxu0 0.0
    %2203 = vmatpush1.xpose.msra.mxu0 0.0
    %2204 = vmatprep.subr.mxu0 0.0
    %2205 = vmatpush1.xpose.msra.mxu0 0.0
    %2206 = vmatprep.subr.mxu0 0.0
    %2207 = vmatpush1.xpose.msra.mxu0 0.0
    %2208 = vmatprep.subr.mxu0 0.0
    %2209 = vmatpush1.xpose.msra.mxu0 %v2176
    %2210 = vmatprep.subr.mxu0 0.0
    %2211 = vmatpush2.xpose.msra.mxu0 0.0
    %2212 = vmatprep.subr.mxu0 0.0
    %2213 = vmatpush2.xpose.msra.mxu0 0.0
    %2214 = vmatprep.subr.mxu0 0.0
    %2215 = vmatpush2.xpose.msra.mxu0 0.0
    %2216 = vmatprep.subr.mxu0 0.0
    %2217 = vmatpush2.xpose.msra.mxu0 0.0
    %2218 = vmatprep.subr.mxu0 0.0
    %2219 = vmatpush2.xpose.msra.mxu0 0.0
    %2220 = vmatprep.subr.mxu0 0.0
    %2221 = vmatpush2.xpose.msra.mxu0 0.0
    %2222 = vmatprep.subr.mxu0 0.0
    %2223 = vmatpush2.xpose.msra.mxu0 0.0
    %2224 = vmatprep.subr.mxu0 0.0
    %2225 = vmatpush2.xpose.msra.mxu0 0.0
    %2226 = vmatprep.subr.mxu0 0.0
    %2227 = vmatpush2.xpose.msra.mxu0 0.0
    %2228 = vmatprep.subr.mxu0 0.0
    %2229 = vmatpush2.xpose.msra.mxu0 0.0
    %2230 = vmatprep.subr.mxu0 0.0
    %2231 = vmatpush2.xpose.msra.mxu0 0.0
    %2232 = vmatprep.subr.mxu0 0.0
    %2233 = vmatpush2.xpose.msra.mxu0 0.0
    %2234 = vmatprep.subr.mxu0 0.0
    %2235 = vmatpush2.xpose.msra.mxu0 0.0
    %2236 = vmatprep.subr.mxu0 0.0
    %2237 = vmatpush2.xpose.msra.mxu0 0.0
    %2238 = vmatprep.subr.mxu0 0.0
    %2239 = vmatpush2.xpose.msra.mxu0 0.0
    %2240 = vmatprep.subr.mxu0 0.0
    %2241 = vmatpush2.xpose.msra.mxu0 0.0
    %2242 = vmatprep.mubr.f32.mxu0 0.0
    %2243 = vmatmul.mubr.f32.gmra.mxu0 %v2174
    %v2244 = vpop.f32.mrf.mxu0
    %v2245 = vadd.f32 0.0, %v2244
    %v2246 = vpop.f32.mrf.mxu0
    %2247 = vdwg.mxu0
    %2248 = vrot.lane.b32.xlu0 %v1835, 120
    %v2249 = vpop.permute.xlu0 %2248
    %2250 = vrot.lane.b32.xlu0 %v1835, 88
    %v2251 = vpop.permute.xlu0 %2250
    %v2252 = vsel %vm289, %v2249, 0
    %v2254 = vsel %vm289, %v2251, 0
    %2256 = vmatprep.subr.mxu0 0.0
    %2257 = vmatpush1.xpose.msra.mxu0 0.0
    %2258 = vmatprep.subr.mxu0 0.0
    %2259 = vmatpush1.xpose.msra.mxu0 0.0
    %2260 = vmatprep.subr.mxu0 0.0
    %2261 = vmatpush1.xpose.msra.mxu0 0.0
    %2262 = vmatprep.subr.mxu0 0.0
    %2263 = vmatpush1.xpose.msra.mxu0 0.0
    %2264 = vmatprep.subr.mxu0 0.0
    %2265 = vmatpush1.xpose.msra.mxu0 0.0
    %2266 = vmatprep.subr.mxu0 0.0
    %2267 = vmatpush1.xpose.msra.mxu0 0.0
    %2268 = vmatprep.subr.mxu0 0.0
    %2269 = vmatpush1.xpose.msra.mxu0 0.0
    %2270 = vmatprep.subr.mxu0 0.0
    %2271 = vmatpush1.xpose.msra.mxu0 0.0
    %2272 = vmatprep.subr.mxu0 0.0
    %2273 = vmatpush1.xpose.msra.mxu0 0.0
    %2274 = vmatprep.subr.mxu0 0.0
    %2275 = vmatpush1.xpose.msra.mxu0 0.0
    %2276 = vmatprep.subr.mxu0 0.0
    %2277 = vmatpush1.xpose.msra.mxu0 0.0
    %2278 = vmatprep.subr.mxu0 0.0
    %2279 = vmatpush1.xpose.msra.mxu0 0.0
    %2280 = vmatprep.subr.mxu0 0.0
    %2281 = vmatpush1.xpose.msra.mxu0 0.0
    %2282 = vmatprep.subr.mxu0 0.0
    %2283 = vmatpush1.xpose.msra.mxu0 0.0
    %2284 = vmatprep.subr.mxu0 0.0
    %2285 = vmatpush1.xpose.msra.mxu0 0.0
    %2286 = vmatprep.subr.mxu0 0.0
    %2287 = vmatpush1.xpose.msra.mxu0 %v2254
    %2288 = vmatprep.subr.mxu0 0.0
    %2289 = vmatpush2.xpose.msra.mxu0 0.0
    %2290 = vmatprep.subr.mxu0 0.0
    %2291 = vmatpush2.xpose.msra.mxu0 0.0
    %2292 = vmatprep.subr.mxu0 0.0
    %2293 = vmatpush2.xpose.msra.mxu0 0.0
    %2294 = vmatprep.subr.mxu0 0.0
    %2295 = vmatpush2.xpose.msra.mxu0 0.0
    %2296 = vmatprep.subr.mxu0 0.0
    %2297 = vmatpush2.xpose.msra.mxu0 0.0
    %2298 = vmatprep.subr.mxu0 0.0
    %2299 = vmatpush2.xpose.msra.mxu0 0.0
    %2300 = vmatprep.subr.mxu0 0.0
    %2301 = vmatpush2.xpose.msra.mxu0 0.0
    %2302 = vmatprep.subr.mxu0 0.0
    %2303 = vmatpush2.xpose.msra.mxu0 0.0
    %2304 = vmatprep.subr.mxu0 0.0
    %2305 = vmatpush2.xpose.msra.mxu0 0.0
    %2306 = vmatprep.subr.mxu0 0.0
    %2307 = vmatpush2.xpose.msra.mxu0 0.0
    %2308 = vmatprep.subr.mxu0 0.0
    %2309 = vmatpush2.xpose.msra.mxu0 0.0
    %2310 = vmatprep.subr.mxu0 0.0
    %2311 = vmatpush2.xpose.msra.mxu0 0.0
    %2312 = vmatprep.subr.mxu0 0.0
    %2313 = vmatpush2.xpose.msra.mxu0 0.0
    %2314 = vmatprep.subr.mxu0 0.0
    %2315 = vmatpush2.xpose.msra.mxu0 0.0
    %2316 = vmatprep.subr.mxu0 0.0
    %2317 = vmatpush2.xpose.msra.mxu0 0.0
    %2318 = vmatprep.subr.mxu0 0.0
    %2319 = vmatpush2.xpose.msra.mxu0 0.0
    %2320 = vmatprep.mubr.f32.mxu0 0.0
    %2321 = vmatmul.mubr.f32.gmra.mxu0 %v2252
    %v2322 = vpop.f32.mrf.mxu0
    %v2323 = vadd.f32 0.0, %v2322
    %v2324 = vpop.f32.mrf.mxu0
    %2325 = vdwg.mxu0
    %v2326 = vmul.f32 %v2245, 0.35355338
    %v2327 = vmul.f32 %v2323, 0.35355338
    %v2328 = vsel %vm98, %v2326, -1e+09
    %v2329 = vsel %vm99, %v2327, -1e+09
    %v2330 = vsel %vm289, %v2328, -inf
    %2331 = vmax.xlane.f32.xlu0 %v2330
    %v2332 = vpop.xlane.xlu0 %2331
    %v2333 = vsel %vm289, %v2329, -inf
    %2334 = vmax.xlane.f32.xlu0 %v2333
    %v2335 = vpop.xlane.xlu0 %2334
    %v2336 = vsub.f32 %v2328, %v2332
    %v2337 = vsub.f32 %v2329, %v2335
    %v2338 = vmul.f32 %v2336, 1.442695
    %v2339 = vpow.pop %v2338
    %v2340 = vmul.f32 %v2337, 1.442695
    %v2341 = vpow.pop %v2340
    %v2342 = vsel %vm289, %v2339, 0.0
    %2343 = vadd.xlane.f32.xlu0 %v2342
    %v2344 = vpop.xlane.xlu0 %2343
    %v2345 = vsel %vm289, %v2341, 0.0
    %2346 = vadd.xlane.f32.xlu0 %v2345
    %v2347 = vpop.xlane.xlu0 %2346
    %v2348 = vrcp.pop %v2344
    %v2349 = vrcp.pop %v2347
    %v2350 = vmul.f32 %v2339, %v2348
    %v2351 = vmul.f32 %v2341, %v2349
    %2352 = vrot.lane.b32.xlu0 %v1830, 56
    %v2353 = vpop.permute.xlu0 %2352
    %v2356 = vsel %vm289, %v2350, 0
    %2358 = vmatprep.subr.mxu0 0.0
    %2359 = vmatpush1.msra.mxu0 0.0
    %2360 = vmatprep.subr.mxu0 0.0
    %2361 = vmatpush1.msra.mxu0 0.0
    %2362 = vmatprep.subr.mxu0 0.0
    %2363 = vmatpush1.msra.mxu0 0.0
    %2364 = vmatprep.subr.mxu0 0.0
    %2365 = vmatpush1.msra.mxu0 0.0
    %2366 = vmatprep.subr.mxu0 0.0
    %2367 = vmatpush1.msra.mxu0 0.0
    %2368 = vmatprep.subr.mxu0 0.0
    %2369 = vmatpush1.msra.mxu0 0.0
    %2370 = vmatprep.subr.mxu0 0.0
    %2371 = vmatpush1.msra.mxu0 0.0
    %2372 = vmatprep.subr.mxu0 0.0
    %2373 = vmatpush1.msra.mxu0 0.0
    %2374 = vmatprep.subr.mxu0 0.0
    %2375 = vmatpush1.msra.mxu0 0.0
    %2376 = vmatprep.subr.mxu0 0.0
    %2377 = vmatpush1.msra.mxu0 0.0
    %2378 = vmatprep.subr.mxu0 0.0
    %2379 = vmatpush1.msra.mxu0 0.0
    %2380 = vmatprep.subr.mxu0 0.0
    %2381 = vmatpush1.msra.mxu0 0.0
    %2382 = vmatprep.subr.mxu0 0.0
    %2383 = vmatpush1.msra.mxu0 0.0
    %2384 = vmatprep.subr.mxu0 0.0
    %2385 = vmatpush1.msra.mxu0 0.0
    %2386 = vmatprep.subr.mxu0 0.0
    %2387 = vmatpush1.msra.mxu0 0.0
    %2388 = vmatprep.subr.mxu0 0.0
    %2389 = vmatpush1.msra.mxu0 %v2353
    %2390 = vmatprep.subr.mxu0 0.0
    %2391 = vmatpush2.msra.mxu0 0.0
    %2392 = vmatprep.subr.mxu0 0.0
    %2393 = vmatpush2.msra.mxu0 0.0
    %2394 = vmatprep.subr.mxu0 0.0
    %2395 = vmatpush2.msra.mxu0 0.0
    %2396 = vmatprep.subr.mxu0 0.0
    %2397 = vmatpush2.msra.mxu0 0.0
    %2398 = vmatprep.subr.mxu0 0.0
    %2399 = vmatpush2.msra.mxu0 0.0
    %2400 = vmatprep.subr.mxu0 0.0
    %2401 = vmatpush2.msra.mxu0 0.0
    %2402 = vmatprep.subr.mxu0 0.0
    %2403 = vmatpush2.msra.mxu0 0.0
    %2404 = vmatprep.subr.mxu0 0.0
    %2405 = vmatpush2.msra.mxu0 0.0
    %2406 = vmatprep.subr.mxu0 0.0
    %2407 = vmatpush2.msra.mxu0 0.0
    %2408 = vmatprep.subr.mxu0 0.0
    %2409 = vmatpush2.msra.mxu0 0.0
    %2410 = vmatprep.subr.mxu0 0.0
    %2411 = vmatpush2.msra.mxu0 0.0
    %2412 = vmatprep.subr.mxu0 0.0
    %2413 = vmatpush2.msra.mxu0 0.0
    %2414 = vmatprep.subr.mxu0 0.0
    %2415 = vmatpush2.msra.mxu0 0.0
    %2416 = vmatprep.subr.mxu0 0.0
    %2417 = vmatpush2.msra.mxu0 0.0
    %2418 = vmatprep.subr.mxu0 0.0
    %2419 = vmatpush2.msra.mxu0 0.0
    %2420 = vmatprep.subr.mxu0 0.0
    %2421 = vmatpush2.msra.mxu0 0.0
    %2422 = vmatprep.mubr.f32.mxu0 0.0
    %2423 = vmatmul.mubr.f32.gmra.mxu0 %v2356
    %v2424 = vpop.f32.mrf.mxu0
    %v2425 = vadd.f32 0.0, %v2424
    %v2426 = vpop.f32.mrf.mxu0
    %2427 = vdwg.mxu0
    %2428 = vrot.lane.b32.xlu0 %v1835, 56
    %v2429 = vpop.permute.xlu0 %2428
    %v2432 = vsel %vm289, %v2351, 0
    %2434 = vmatprep.subr.mxu0 0.0
    %2435 = vmatpush1.msra.mxu0 0.0
    %2436 = vmatprep.subr.mxu0 0.0
    %2437 = vmatpush1.msra.mxu0 0.0
    %2438 = vmatprep.subr.mxu0 0.0
    %2439 = vmatpush1.msra.mxu0 0.0
    %2440 = vmatprep.subr.mxu0 0.0
    %2441 = vmatpush1.msra.mxu0 0.0
    %2442 = vmatprep.subr.mxu0 0.0
    %2443 = vmatpush1.msra.mxu0 0.0
    %2444 = vmatprep.subr.mxu0 0.0
    %2445 = vmatpush1.msra.mxu0 0.0
    %2446 = vmatprep.subr.mxu0 0.0
    %2447 = vmatpush1.msra.mxu0 0.0
    %2448 = vmatprep.subr.mxu0 0.0
    %2449 = vmatpush1.msra.mxu0 0.0
    %2450 = vmatprep.subr.mxu0 0.0
    %2451 = vmatpush1.msra.mxu0 0.0
    %2452 = vmatprep.subr.mxu0 0.0
    %2453 = vmatpush1.msra.mxu0 0.0
    %2454 = vmatprep.subr.mxu0 0.0
    %2455 = vmatpush1.msra.mxu0 0.0
    %2456 = vmatprep.subr.mxu0 0.0
    %2457 = vmatpush1.msra.mxu0 0.0
    %2458 = vmatprep.subr.mxu0 0.0
    %2459 = vmatpush1.msra.mxu0 0.0
    %2460 = vmatprep.subr.mxu0 0.0
    %2461 = vmatpush1.msra.mxu0 0.0
    %2462 = vmatprep.subr.mxu0 0.0
    %2463 = vmatpush1.msra.mxu0 0.0
    %2464 = vmatprep.subr.mxu0 0.0
    %2465 = vmatpush1.msra.mxu0 %v2429
    %2466 = vmatprep.subr.mxu0 0.0
    %2467 = vmatpush2.msra.mxu0 0.0
    %2468 = vmatprep.subr.mxu0 0.0
    %2469 = vmatpush2.msra.mxu0 0.0
    %2470 = vmatprep.subr.mxu0 0.0
    %2471 = vmatpush2.msra.mxu0 0.0
    %2472 = vmatprep.subr.mxu0 0.0
    %2473 = vmatpush2.msra.mxu0 0.0
    %2474 = vmatprep.subr.mxu0 0.0
    %2475 = vmatpush2.msra.mxu0 0.0
    %2476 = vmatprep.subr.mxu0 0.0
    %2477 = vmatpush2.msra.mxu0 0.0
    %2478 = vmatprep.subr.mxu0 0.0
    %2479 = vmatpush2.msra.mxu0 0.0
    %2480 = vmatprep.subr.mxu0 0.0
    %2481 = vmatpush2.msra.mxu0 0.0
    %2482 = vmatprep.subr.mxu0 0.0
    %2483 = vmatpush2.msra.mxu0 0.0
    %2484 = vmatprep.subr.mxu0 0.0
    %2485 = vmatpush2.msra.mxu0 0.0
    %2486 = vmatprep.subr.mxu0 0.0
    %2487 = vmatpush2.msra.mxu0 0.0
    %2488 = vmatprep.subr.mxu0 0.0
    %2489 = vmatpush2.msra.mxu0 0.0
    %2490 = vmatprep.subr.mxu0 0.0
    %2491 = vmatpush2.msra.mxu0 0.0
    %2492 = vmatprep.subr.mxu0 0.0
    %2493 = vmatpush2.msra.mxu0 0.0
    %2494 = vmatprep.subr.mxu0 0.0
    %2495 = vmatpush2.msra.mxu0 0.0
    %2496 = vmatprep.subr.mxu0 0.0
    %2497 = vmatpush2.msra.mxu0 0.0
    %2498 = vmatprep.mubr.f32.mxu0 0.0
    %2499 = vmatmul.mubr.f32.gmra.mxu0 %v2432
    %v2500 = vpop.f32.mrf.mxu0
    %v2501 = vadd.f32 0.0, %v2500
    %v2502 = vpop.f32.mrf.mxu0
    %2503 = vdwg.mxu0
    %2504 = vrot.lane.b32.xlu0 %v1830, 112
    %v2505 = vpop.permute.xlu0 %2504
    %2506 = vrot.lane.b32.xlu0 %v1830, 80
    %v2507 = vpop.permute.xlu0 %2506
    %v2508 = vsel %vm289, %v2505, 0
    %v2510 = vsel %vm289, %v2507, 0
    %2512 = vmatprep.subr.mxu0 0.0
    %2513 = vmatpush1.xpose.msra.mxu0 0.0
    %2514 = vmatprep.subr.mxu0 0.0
    %2515 = vmatpush1.xpose.msra.mxu0 0.0
    %2516 = vmatprep.subr.mxu0 0.0
    %2517 = vmatpush1.xpose.msra.mxu0 0.0
    %2518 = vmatprep.subr.mxu0 0.0
    %2519 = vmatpush1.xpose.msra.mxu0 0.0
    %2520 = vmatprep.subr.mxu0 0.0
    %2521 = vmatpush1.xpose.msra.mxu0 0.0
    %2522 = vmatprep.subr.mxu0 0.0
    %2523 = vmatpush1.xpose.msra.mxu0 0.0
    %2524 = vmatprep.subr.mxu0 0.0
    %2525 = vmatpush1.xpose.msra.mxu0 0.0
    %2526 = vmatprep.subr.mxu0 0.0
    %2527 = vmatpush1.xpose.msra.mxu0 0.0
    %2528 = vmatprep.subr.mxu0 0.0
    %2529 = vmatpush1.xpose.msra.mxu0 0.0
    %2530 = vmatprep.subr.mxu0 0.0
    %2531 = vmatpush1.xpose.msra.mxu0 0.0
    %2532 = vmatprep.subr.mxu0 0.0
    %2533 = vmatpush1.xpose.msra.mxu0 0.0
    %2534 = vmatprep.subr.mxu0 0.0
    %2535 = vmatpush1.xpose.msra.mxu0 0.0
    %2536 = vmatprep.subr.mxu0 0.0
    %2537 = vmatpush1.xpose.msra.mxu0 0.0
    %2538 = vmatprep.subr.mxu0 0.0
    %2539 = vmatpush1.xpose.msra.mxu0 0.0
    %2540 = vmatprep.subr.mxu0 0.0
    %2541 = vmatpush1.xpose.msra.mxu0 0.0
    %2542 = vmatprep.subr.mxu0 0.0
    %2543 = vmatpush1.xpose.msra.mxu0 %v2510
    %2544 = vmatprep.subr.mxu0 0.0
    %2545 = vmatpush2.xpose.msra.mxu0 0.0
    %2546 = vmatprep.subr.mxu0 0.0
    %2547 = vmatpush2.xpose.msra.mxu0 0.0
    %2548 = vmatprep.subr.mxu0 0.0
    %2549 = vmatpush2.xpose.msra.mxu0 0.0
    %2550 = vmatprep.subr.mxu0 0.0
    %2551 = vmatpush2.xpose.msra.mxu0 0.0
    %2552 = vmatprep.subr.mxu0 0.0
    %2553 = vmatpush2.xpose.msra.mxu0 0.0
    %2554 = vmatprep.subr.mxu0 0.0
    %2555 = vmatpush2.xpose.msra.mxu0 0.0
    %2556 = vmatprep.subr.mxu0 0.0
    %2557 = vmatpush2.xpose.msra.mxu0 0.0
    %2558 = vmatprep.subr.mxu0 0.0
    %2559 = vmatpush2.xpose.msra.mxu0 0.0
    %2560 = vmatprep.subr.mxu0 0.0
    %2561 = vmatpush2.xpose.msra.mxu0 0.0
    %2562 = vmatprep.subr.mxu0 0.0
    %2563 = vmatpush2.xpose.msra.mxu0 0.0
    %2564 = vmatprep.subr.mxu0 0.0
    %2565 = vmatpush2.xpose.msra.mxu0 0.0
    %2566 = vmatprep.subr.mxu0 0.0
    %2567 = vmatpush2.xpose.msra.mxu0 0.0
    %2568 = vmatprep.subr.mxu0 0.0
    %2569 = vmatpush2.xpose.msra.mxu0 0.0
    %2570 = vmatprep.subr.mxu0 0.0
    %2571 = vmatpush2.xpose.msra.mxu0 0.0
    %2572 = vmatprep.subr.mxu0 0.0
    %2573 = vmatpush2.xpose.msra.mxu0 0.0
    %2574 = vmatprep.subr.mxu0 0.0
    %2575 = vmatpush2.xpose.msra.mxu0 0.0
    %2576 = vmatprep.mubr.f32.mxu0 0.0
    %2577 = vmatmul.mubr.f32.gmra.mxu0 %v2508
    %v2578 = vpop.f32.mrf.mxu0
    %v2579 = vadd.f32 0.0, %v2578
    %v2580 = vpop.f32.mrf.mxu0
    %2581 = vdwg.mxu0
    %2582 = vrot.lane.b32.xlu0 %v1835, 112
    %v2583 = vpop.permute.xlu0 %2582
    %2584 = vrot.lane.b32.xlu0 %v1835, 80
    %v2585 = vpop.permute.xlu0 %2584
    %v2586 = vsel %vm289, %v2583, 0
    %v2588 = vsel %vm289, %v2585, 0
    %2590 = vmatprep.subr.mxu0 0.0
    %2591 = vmatpush1.xpose.msra.mxu0 0.0
    %2592 = vmatprep.subr.mxu0 0.0
    %2593 = vmatpush1.xpose.msra.mxu0 0.0
    %2594 = vmatprep.subr.mxu0 0.0
    %2595 = vmatpush1.xpose.msra.mxu0 0.0
    %2596 = vmatprep.subr.mxu0 0.0
    %2597 = vmatpush1.xpose.msra.mxu0 0.0
    %2598 = vmatprep.subr.mxu0 0.0
    %2599 = vmatpush1.xpose.msra.mxu0 0.0
    %2600 = vmatprep.subr.mxu0 0.0
    %2601 = vmatpush1.xpose.msra.mxu0 0.0
    %2602 = vmatprep.subr.mxu0 0.0
    %2603 = vmatpush1.xpose.msra.mxu0 0.0
    %2604 = vmatprep.subr.mxu0 0.0
    %2605 = vmatpush1.xpose.msra.mxu0 0.0
    %2606 = vmatprep.subr.mxu0 0.0
    %2607 = vmatpush1.xpose.msra.mxu0 0.0
    %2608 = vmatprep.subr.mxu0 0.0
    %2609 = vmatpush1.xpose.msra.mxu0 0.0
    %2610 = vmatprep.subr.mxu0 0.0
    %2611 = vmatpush1.xpose.msra.mxu0 0.0
    %2612 = vmatprep.subr.mxu0 0.0
    %2613 = vmatpush1.xpose.msra.mxu0 0.0
    %2614 = vmatprep.subr.mxu0 0.0
    %2615 = vmatpush1.xpose.msra.mxu0 0.0
    %2616 = vmatprep.subr.mxu0 0.0
    %2617 = vmatpush1.xpose.msra.mxu0 0.0
    %2618 = vmatprep.subr.mxu0 0.0
    %2619 = vmatpush1.xpose.msra.mxu0 0.0
    %2620 = vmatprep.subr.mxu0 0.0
    %2621 = vmatpush1.xpose.msra.mxu0 %v2588
    %2622 = vmatprep.subr.mxu0 0.0
    %2623 = vmatpush2.xpose.msra.mxu0 0.0
    %2624 = vmatprep.subr.mxu0 0.0
    %2625 = vmatpush2.xpose.msra.mxu0 0.0
    %2626 = vmatprep.subr.mxu0 0.0
    %2627 = vmatpush2.xpose.msra.mxu0 0.0
    %2628 = vmatprep.subr.mxu0 0.0
    %2629 = vmatpush2.xpose.msra.mxu0 0.0
    %2630 = vmatprep.subr.mxu0 0.0
    %2631 = vmatpush2.xpose.msra.mxu0 0.0
    %2632 = vmatprep.subr.mxu0 0.0
    %2633 = vmatpush2.xpose.msra.mxu0 0.0
    %2634 = vmatprep.subr.mxu0 0.0
    %2635 = vmatpush2.xpose.msra.mxu0 0.0
    %2636 = vmatprep.subr.mxu0 0.0
    %2637 = vmatpush2.xpose.msra.mxu0 0.0
    %2638 = vmatprep.subr.mxu0 0.0
    %2639 = vmatpush2.xpose.msra.mxu0 0.0
    %2640 = vmatprep.subr.mxu0 0.0
    %2641 = vmatpush2.xpose.msra.mxu0 0.0
    %2642 = vmatprep.subr.mxu0 0.0
    %2643 = vmatpush2.xpose.msra.mxu0 0.0
    %2644 = vmatprep.subr.mxu0 0.0
    %2645 = vmatpush2.xpose.msra.mxu0 0.0
    %2646 = vmatprep.subr.mxu0 0.0
    %2647 = vmatpush2.xpose.msra.mxu0 0.0
    %2648 = vmatprep.subr.mxu0 0.0
    %2649 = vmatpush2.xpose.msra.mxu0 0.0
    %2650 = vmatprep.subr.mxu0 0.0
    %2651 = vmatpush2.xpose.msra.mxu0 0.0
    %2652 = vmatprep.subr.mxu0 0.0
    %2653 = vmatpush2.xpose.msra.mxu0 0.0
    %2654 = vmatprep.mubr.f32.mxu0 0.0
    %2655 = vmatmul.mubr.f32.gmra.mxu0 %v2586
    %v2656 = vpop.f32.mrf.mxu0
    %v2657 = vadd.f32 0.0, %v2656
    %v2658 = vpop.f32.mrf.mxu0
    %2659 = vdwg.mxu0
    %v2660 = vmul.f32 %v2579, 0.35355338
    %v2661 = vmul.f32 %v2657, 0.35355338
    %v2662 = vsel %vm98, %v2660, -1e+09
    %v2663 = vsel %vm99, %v2661, -1e+09
    %v2664 = vsel %vm289, %v2662, -inf
    %2665 = vmax.xlane.f32.xlu0 %v2664
    %v2666 = vpop.xlane.xlu0 %2665
    %v2667 = vsel %vm289, %v2663, -inf
    %2668 = vmax.xlane.f32.xlu0 %v2667
    %v2669 = vpop.xlane.xlu0 %2668
    %v2670 = vsub.f32 %v2662, %v2666
    %v2671 = vsub.f32 %v2663, %v2669
    %v2672 = vmul.f32 %v2670, 1.442695
    %v2673 = vpow.pop %v2672
    %v2674 = vmul.f32 %v2671, 1.442695
    %v2675 = vpow.pop %v2674
    %v2676 = vsel %vm289, %v2673, 0.0
    %2677 = vadd.xlane.f32.xlu0 %v2676
    %v2678 = vpop.xlane.xlu0 %2677
    %v2679 = vsel %vm289, %v2675, 0.0
    %2680 = vadd.xlane.f32.xlu0 %v2679
    %v2681 = vpop.xlane.xlu0 %2680
    %v2682 = vrcp.pop %v2678
    %v2683 = vrcp.pop %v2681
    %v2684 = vmul.f32 %v2673, %v2682
    %v2685 = vmul.f32 %v2675, %v2683
    %2686 = vrot.lane.b32.xlu0 %v1830, 48
    %v2687 = vpop.permute.xlu0 %2686
    %v2690 = vsel %vm289, %v2684, 0
    %2692 = vmatprep.subr.mxu0 0.0
    %2693 = vmatpush1.msra.mxu0 0.0
    %2694 = vmatprep.subr.mxu0 0.0
    %2695 = vmatpush1.msra.mxu0 0.0
    %2696 = vmatprep.subr.mxu0 0.0
    %2697 = vmatpush1.msra.mxu0 0.0
    %2698 = vmatprep.subr.mxu0 0.0
    %2699 = vmatpush1.msra.mxu0 0.0
    %2700 = vmatprep.subr.mxu0 0.0
    %2701 = vmatpush1.msra.mxu0 0.0
    %2702 = vmatprep.subr.mxu0 0.0
    %2703 = vmatpush1.msra.mxu0 0.0
    %2704 = vmatprep.subr.mxu0 0.0
    %2705 = vmatpush1.msra.mxu0 0.0
    %2706 = vmatprep.subr.mxu0 0.0
    %2707 = vmatpush1.msra.mxu0 0.0
    %2708 = vmatprep.subr.mxu0 0.0
    %2709 = vmatpush1.msra.mxu0 0.0
    %2710 = vmatprep.subr.mxu0 0.0
    %2711 = vmatpush1.msra.mxu0 0.0
    %2712 = vmatprep.subr.mxu0 0.0
    %2713 = vmatpush1.msra.mxu0 0.0
    %2714 = vmatprep.subr.mxu0 0.0
    %2715 = vmatpush1.msra.mxu0 0.0
    %2716 = vmatprep.subr.mxu0 0.0
    %2717 = vmatpush1.msra.mxu0 0.0
    %2718 = vmatprep.subr.mxu0 0.0
    %2719 = vmatpush1.msra.mxu0 0.0
    %2720 = vmatprep.subr.mxu0 0.0
    %2721 = vmatpush1.msra.mxu0 0.0
    %2722 = vmatprep.subr.mxu0 0.0
    %2723 = vmatpush1.msra.mxu0 %v2687
    %2724 = vmatprep.subr.mxu0 0.0
    %2725 = vmatpush2.msra.mxu0 0.0
    %2726 = vmatprep.subr.mxu0 0.0
    %2727 = vmatpush2.msra.mxu0 0.0
    %2728 = vmatprep.subr.mxu0 0.0
    %2729 = vmatpush2.msra.mxu0 0.0
    %2730 = vmatprep.subr.mxu0 0.0
    %2731 = vmatpush2.msra.mxu0 0.0
    %2732 = vmatprep.subr.mxu0 0.0
    %2733 = vmatpush2.msra.mxu0 0.0
    %2734 = vmatprep.subr.mxu0 0.0
    %2735 = vmatpush2.msra.mxu0 0.0
    %2736 = vmatprep.subr.mxu0 0.0
    %2737 = vmatpush2.msra.mxu0 0.0
    %2738 = vmatprep.subr.mxu0 0.0
    %2739 = vmatpush2.msra.mxu0 0.0
    %2740 = vmatprep.subr.mxu0 0.0
    %2741 = vmatpush2.msra.mxu0 0.0
    %2742 = vmatprep.subr.mxu0 0.0
    %2743 = vmatpush2.msra.mxu0 0.0
    %2744 = vmatprep.subr.mxu0 0.0
    %2745 = vmatpush2.msra.mxu0 0.0
    %2746 = vmatprep.subr.mxu0 0.0
    %2747 = vmatpush2.msra.mxu0 0.0
    %2748 = vmatprep.subr.mxu0 0.0
    %2749 = vmatpush2.msra.mxu0 0.0
    %2750 = vmatprep.subr.mxu0 0.0
    %2751 = vmatpush2.msra.mxu0 0.0
    %2752 = vmatprep.subr.mxu0 0.0
    %2753 = vmatpush2.msra.mxu0 0.0
    %2754 = vmatprep.subr.mxu0 0.0
    %2755 = vmatpush2.msra.mxu0 0.0
    %2756 = vmatprep.mubr.f32.mxu0 0.0
    %2757 = vmatmul.mubr.f32.gmra.mxu0 %v2690
    %v2758 = vpop.f32.mrf.mxu0
    %v2759 = vadd.f32 0.0, %v2758
    %v2760 = vpop.f32.mrf.mxu0
    %2761 = vdwg.mxu0
    %2762 = vrot.lane.b32.xlu0 %v1835, 48
    %v2763 = vpop.permute.xlu0 %2762
    %v2766 = vsel %vm289, %v2685, 0
    %2768 = vmatprep.subr.mxu0 0.0
    %2769 = vmatpush1.msra.mxu0 0.0
    %2770 = vmatprep.subr.mxu0 0.0
    %2771 = vmatpush1.msra.mxu0 0.0
    %2772 = vmatprep.subr.mxu0 0.0
    %2773 = vmatpush1.msra.mxu0 0.0
    %2774 = vmatprep.subr.mxu0 0.0
    %2775 = vmatpush1.msra.mxu0 0.0
    %2776 = vmatprep.subr.mxu0 0.0
    %2777 = vmatpush1.msra.mxu0 0.0
    %2778 = vmatprep.subr.mxu0 0.0
    %2779 = vmatpush1.msra.mxu0 0.0
    %2780 = vmatprep.subr.mxu0 0.0
    %2781 = vmatpush1.msra.mxu0 0.0
    %2782 = vmatprep.subr.mxu0 0.0
    %2783 = vmatpush1.msra.mxu0 0.0
    %2784 = vmatprep.subr.mxu0 0.0
    %2785 = vmatpush1.msra.mxu0 0.0
    %2786 = vmatprep.subr.mxu0 0.0
    %2787 = vmatpush1.msra.mxu0 0.0
    %2788 = vmatprep.subr.mxu0 0.0
    %2789 = vmatpush1.msra.mxu0 0.0
    %2790 = vmatprep.subr.mxu0 0.0
    %2791 = vmatpush1.msra.mxu0 0.0
    %2792 = vmatprep.subr.mxu0 0.0
    %2793 = vmatpush1.msra.mxu0 0.0
    %2794 = vmatprep.subr.mxu0 0.0
    %2795 = vmatpush1.msra.mxu0 0.0
    %2796 = vmatprep.subr.mxu0 0.0
    %2797 = vmatpush1.msra.mxu0 0.0
    %2798 = vmatprep.subr.mxu0 0.0
    %2799 = vmatpush1.msra.mxu0 %v2763
    %2800 = vmatprep.subr.mxu0 0.0
    %2801 = vmatpush2.msra.mxu0 0.0
    %2802 = vmatprep.subr.mxu0 0.0
    %2803 = vmatpush2.msra.mxu0 0.0
    %2804 = vmatprep.subr.mxu0 0.0
    %2805 = vmatpush2.msra.mxu0 0.0
    %2806 = vmatprep.subr.mxu0 0.0
    %2807 = vmatpush2.msra.mxu0 0.0
    %2808 = vmatprep.subr.mxu0 0.0
    %2809 = vmatpush2.msra.mxu0 0.0
    %2810 = vmatprep.subr.mxu0 0.0
    %2811 = vmatpush2.msra.mxu0 0.0
    %2812 = vmatprep.subr.mxu0 0.0
    %2813 = vmatpush2.msra.mxu0 0.0
    %2814 = vmatprep.subr.mxu0 0.0
    %2815 = vmatpush2.msra.mxu0 0.0
    %2816 = vmatprep.subr.mxu0 0.0
    %2817 = vmatpush2.msra.mxu0 0.0
    %2818 = vmatprep.subr.mxu0 0.0
    %2819 = vmatpush2.msra.mxu0 0.0
    %2820 = vmatprep.subr.mxu0 0.0
    %2821 = vmatpush2.msra.mxu0 0.0
    %2822 = vmatprep.subr.mxu0 0.0
    %2823 = vmatpush2.msra.mxu0 0.0
    %2824 = vmatprep.subr.mxu0 0.0
    %2825 = vmatpush2.msra.mxu0 0.0
    %2826 = vmatprep.subr.mxu0 0.0
    %2827 = vmatpush2.msra.mxu0 0.0
    %2828 = vmatprep.subr.mxu0 0.0
    %2829 = vmatpush2.msra.mxu0 0.0
    %2830 = vmatprep.subr.mxu0 0.0
    %2831 = vmatpush2.msra.mxu0 0.0
    %2832 = vmatprep.mubr.f32.mxu0 0.0
    %2833 = vmatmul.mubr.f32.gmra.mxu0 %v2766
    %v2834 = vpop.f32.mrf.mxu0
    %v2835 = vadd.f32 0.0, %v2834
    %v2836 = vpop.f32.mrf.mxu0
    %2837 = vdwg.mxu0
    %2838 = vrot.lane.b32.xlu0 %v1830, 104
    %v2839 = vpop.permute.xlu0 %2838
    %2840 = vrot.lane.b32.xlu0 %v1830, 72
    %v2841 = vpop.permute.xlu0 %2840
    %v2842 = vsel %vm289, %v2839, 0
    %v2844 = vsel %vm289, %v2841, 0
    %2846 = vmatprep.subr.mxu0 0.0
    %2847 = vmatpush1.xpose.msra.mxu0 0.0
    %2848 = vmatprep.subr.mxu0 0.0
    %2849 = vmatpush1.xpose.msra.mxu0 0.0
    %2850 = vmatprep.subr.mxu0 0.0
    %2851 = vmatpush1.xpose.msra.mxu0 0.0
    %2852 = vmatprep.subr.mxu0 0.0
    %2853 = vmatpush1.xpose.msra.mxu0 0.0
    %2854 = vmatprep.subr.mxu0 0.0
    %2855 = vmatpush1.xpose.msra.mxu0 0.0
    %2856 = vmatprep.subr.mxu0 0.0
    %2857 = vmatpush1.xpose.msra.mxu0 0.0
    %2858 = vmatprep.subr.mxu0 0.0
    %2859 = vmatpush1.xpose.msra.mxu0 0.0
    %2860 = vmatprep.subr.mxu0 0.0
    %2861 = vmatpush1.xpose.msra.mxu0 0.0
    %2862 = vmatprep.subr.mxu0 0.0
    %2863 = vmatpush1.xpose.msra.mxu0 0.0
    %2864 = vmatprep.subr.mxu0 0.0
    %2865 = vmatpush1.xpose.msra.mxu0 0.0
    %2866 = vmatprep.subr.mxu0 0.0
    %2867 = vmatpush1.xpose.msra.mxu0 0.0
    %2868 = vmatprep.subr.mxu0 0.0
    %2869 = vmatpush1.xpose.msra.mxu0 0.0
    %2870 = vmatprep.subr.mxu0 0.0
    %2871 = vmatpush1.xpose.msra.mxu0 0.0
    %2872 = vmatprep.subr.mxu0 0.0
    %2873 = vmatpush1.xpose.msra.mxu0 0.0
    %2874 = vmatprep.subr.mxu0 0.0
    %2875 = vmatpush1.xpose.msra.mxu0 0.0
    %2876 = vmatprep.subr.mxu0 0.0
    %2877 = vmatpush1.xpose.msra.mxu0 %v2844
    %2878 = vmatprep.subr.mxu0 0.0
    %2879 = vmatpush2.xpose.msra.mxu0 0.0
    %2880 = vmatprep.subr.mxu0 0.0
    %2881 = vmatpush2.xpose.msra.mxu0 0.0
    %2882 = vmatprep.subr.mxu0 0.0
    %2883 = vmatpush2.xpose.msra.mxu0 0.0
    %2884 = vmatprep.subr.mxu0 0.0
    %2885 = vmatpush2.xpose.msra.mxu0 0.0
    %2886 = vmatprep.subr.mxu0 0.0
    %2887 = vmatpush2.xpose.msra.mxu0 0.0
    %2888 = vmatprep.subr.mxu0 0.0
    %2889 = vmatpush2.xpose.msra.mxu0 0.0
    %2890 = vmatprep.subr.mxu0 0.0
    %2891 = vmatpush2.xpose.msra.mxu0 0.0
    %2892 = vmatprep.subr.mxu0 0.0
    %2893 = vmatpush2.xpose.msra.mxu0 0.0
    %2894 = vmatprep.subr.mxu0 0.0
    %2895 = vmatpush2.xpose.msra.mxu0 0.0
    %2896 = vmatprep.subr.mxu0 0.0
    %2897 = vmatpush2.xpose.msra.mxu0 0.0
    %2898 = vmatprep.subr.mxu0 0.0
    %2899 = vmatpush2.xpose.msra.mxu0 0.0
    %2900 = vmatprep.subr.mxu0 0.0
    %2901 = vmatpush2.xpose.msra.mxu0 0.0
    %2902 = vmatprep.subr.mxu0 0.0
    %2903 = vmatpush2.xpose.msra.mxu0 0.0
    %2904 = vmatprep.subr.mxu0 0.0
    %2905 = vmatpush2.xpose.msra.mxu0 0.0
    %2906 = vmatprep.subr.mxu0 0.0
    %2907 = vmatpush2.xpose.msra.mxu0 0.0
    %2908 = vmatprep.subr.mxu0 0.0
    %2909 = vmatpush2.xpose.msra.mxu0 0.0
    %2910 = vmatprep.mubr.f32.mxu0 0.0
    %2911 = vmatmul.mubr.f32.gmra.mxu0 %v2842
    %v2912 = vpop.f32.mrf.mxu0
    %v2913 = vadd.f32 0.0, %v2912
    %v2914 = vpop.f32.mrf.mxu0
    %2915 = vdwg.mxu0
    %2916 = vrot.lane.b32.xlu0 %v1835, 104
    %v2917 = vpop.permute.xlu0 %2916
    %2918 = vrot.lane.b32.xlu0 %v1835, 72
    %v2919 = vpop.permute.xlu0 %2918
    %v2920 = vsel %vm289, %v2917, 0
    %v2922 = vsel %vm289, %v2919, 0
    %2924 = vmatprep.subr.mxu0 0.0
    %2925 = vmatpush1.xpose.msra.mxu0 0.0
    %2926 = vmatprep.subr.mxu0 0.0
    %2927 = vmatpush1.xpose.msra.mxu0 0.0
    %2928 = vmatprep.subr.mxu0 0.0
    %2929 = vmatpush1.xpose.msra.mxu0 0.0
    %2930 = vmatprep.subr.mxu0 0.0
    %2931 = vmatpush1.xpose.msra.mxu0 0.0
    %2932 = vmatprep.subr.mxu0 0.0
    %2933 = vmatpush1.xpose.msra.mxu0 0.0
    %2934 = vmatprep.subr.mxu0 0.0
    %2935 = vmatpush1.xpose.msra.mxu0 0.0
    %2936 = vmatprep.subr.mxu0 0.0
    %2937 = vmatpush1.xpose.msra.mxu0 0.0
    %2938 = vmatprep.subr.mxu0 0.0
    %2939 = vmatpush1.xpose.msra.mxu0 0.0
    %2940 = vmatprep.subr.mxu0 0.0
    %2941 = vmatpush1.xpose.msra.mxu0 0.0
    %2942 = vmatprep.subr.mxu0 0.0
    %2943 = vmatpush1.xpose.msra.mxu0 0.0
    %2944 = vmatprep.subr.mxu0 0.0
    %2945 = vmatpush1.xpose.msra.mxu0 0.0
    %2946 = vmatprep.subr.mxu0 0.0
    %2947 = vmatpush1.xpose.msra.mxu0 0.0
    %2948 = vmatprep.subr.mxu0 0.0
    %2949 = vmatpush1.xpose.msra.mxu0 0.0
    %2950 = vmatprep.subr.mxu0 0.0
    %2951 = vmatpush1.xpose.msra.mxu0 0.0
    %2952 = vmatprep.subr.mxu0 0.0
    %2953 = vmatpush1.xpose.msra.mxu0 0.0
    %2954 = vmatprep.subr.mxu0 0.0
    %2955 = vmatpush1.xpose.msra.mxu0 %v2922
    %2956 = vmatprep.subr.mxu0 0.0
    %2957 = vmatpush2.xpose.msra.mxu0 0.0
    %2958 = vmatprep.subr.mxu0 0.0
    %2959 = vmatpush2.xpose.msra.mxu0 0.0
    %2960 = vmatprep.subr.mxu0 0.0
    %2961 = vmatpush2.xpose.msra.mxu0 0.0
    %2962 = vmatprep.subr.mxu0 0.0
    %2963 = vmatpush2.xpose.msra.mxu0 0.0
    %2964 = vmatprep.subr.mxu0 0.0
    %2965 = vmatpush2.xpose.msra.mxu0 0.0
    %2966 = vmatprep.subr.mxu0 0.0
    %2967 = vmatpush2.xpose.msra.mxu0 0.0
    %2968 = vmatprep.subr.mxu0 0.0
    %2969 = vmatpush2.xpose.msra.mxu0 0.0
    %2970 = vmatprep.subr.mxu0 0.0
    %2971 = vmatpush2.xpose.msra.mxu0 0.0
    %2972 = vmatprep.subr.mxu0 0.0
    %2973 = vmatpush2.xpose.msra.mxu0 0.0
    %2974 = vmatprep.subr.mxu0 0.0
    %2975 = vmatpush2.xpose.msra.mxu0 0.0
    %2976 = vmatprep.subr.mxu0 0.0
    %2977 = vmatpush2.xpose.msra.mxu0 0.0
    %2978 = vmatprep.subr.mxu0 0.0
    %2979 = vmatpush2.xpose.msra.mxu0 0.0
    %2980 = vmatprep.subr.mxu0 0.0
    %2981 = vmatpush2.xpose.msra.mxu0 0.0
    %2982 = vmatprep.subr.mxu0 0.0
    %2983 = vmatpush2.xpose.msra.mxu0 0.0
    %2984 = vmatprep.subr.mxu0 0.0
    %2985 = vmatpush2.xpose.msra.mxu0 0.0
    %2986 = vmatprep.subr.mxu0 0.0
    %2987 = vmatpush2.xpose.msra.mxu0 0.0
    %2988 = vmatprep.mubr.f32.mxu0 0.0
    %2989 = vmatmul.mubr.f32.gmra.mxu0 %v2920
    %v2990 = vpop.f32.mrf.mxu0
    %v2991 = vadd.f32 0.0, %v2990
    %v2992 = vpop.f32.mrf.mxu0
    %2993 = vdwg.mxu0
    %v2994 = vmul.f32 %v2913, 0.35355338
    %v2995 = vmul.f32 %v2991, 0.35355338
    %v2996 = vsel %vm98, %v2994, -1e+09
    %v2997 = vsel %vm99, %v2995, -1e+09
    %v2998 = vsel %vm289, %v2996, -inf
    %2999 = vmax.xlane.f32.xlu0 %v2998
    %v3000 = vpop.xlane.xlu0 %2999
    %v3001 = vsel %vm289, %v2997, -inf
    %3002 = vmax.xlane.f32.xlu0 %v3001
    %v3003 = vpop.xlane.xlu0 %3002
    %v3004 = vsub.f32 %v2996, %v3000
    %v3005 = vsub.f32 %v2997, %v3003
    %v3006 = vmul.f32 %v3004, 1.442695
    %v3007 = vpow.pop %v3006
    %v3008 = vmul.f32 %v3005, 1.442695
    %v3009 = vpow.pop %v3008
    %v3010 = vsel %vm289, %v3007, 0.0
    %3011 = vadd.xlane.f32.xlu0 %v3010
    %v3012 = vpop.xlane.xlu0 %3011
    %v3013 = vsel %vm289, %v3009, 0.0
    %3014 = vadd.xlane.f32.xlu0 %v3013
    %v3015 = vpop.xlane.xlu0 %3014
    %v3016 = vrcp.pop %v3012
    %v3017 = vrcp.pop %v3015
    %v3018 = vmul.f32 %v3007, %v3016
    %v3019 = vmul.f32 %v3009, %v3017
    %3020 = vrot.lane.b32.xlu0 %v1830, 40
    %v3021 = vpop.permute.xlu0 %3020
    %v3024 = vsel %vm289, %v3018, 0
    %3026 = vmatprep.subr.mxu0 0.0
    %3027 = vmatpush1.msra.mxu0 0.0
    %3028 = vmatprep.subr.mxu0 0.0
    %3029 = vmatpush1.msra.mxu0 0.0
    %3030 = vmatprep.subr.mxu0 0.0
    %3031 = vmatpush1.msra.mxu0 0.0
    %3032 = vmatprep.subr.mxu0 0.0
    %3033 = vmatpush1.msra.mxu0 0.0
    %3034 = vmatprep.subr.mxu0 0.0
    %3035 = vmatpush1.msra.mxu0 0.0
    %3036 = vmatprep.subr.mxu0 0.0
    %3037 = vmatpush1.msra.mxu0 0.0
    %3038 = vmatprep.subr.mxu0 0.0
    %3039 = vmatpush1.msra.mxu0 0.0
    %3040 = vmatprep.subr.mxu0 0.0
    %3041 = vmatpush1.msra.mxu0 0.0
    %3042 = vmatprep.subr.mxu0 0.0
    %3043 = vmatpush1.msra.mxu0 0.0
    %3044 = vmatprep.subr.mxu0 0.0
    %3045 = vmatpush1.msra.mxu0 0.0
    %3046 = vmatprep.subr.mxu0 0.0
    %3047 = vmatpush1.msra.mxu0 0.0
    %3048 = vmatprep.subr.mxu0 0.0
    %3049 = vmatpush1.msra.mxu0 0.0
    %3050 = vmatprep.subr.mxu0 0.0
    %3051 = vmatpush1.msra.mxu0 0.0
    %3052 = vmatprep.subr.mxu0 0.0
    %3053 = vmatpush1.msra.mxu0 0.0
    %3054 = vmatprep.subr.mxu0 0.0
    %3055 = vmatpush1.msra.mxu0 0.0
    %3056 = vmatprep.subr.mxu0 0.0
    %3057 = vmatpush1.msra.mxu0 %v3021
    %3058 = vmatprep.subr.mxu0 0.0
    %3059 = vmatpush2.msra.mxu0 0.0
    %3060 = vmatprep.subr.mxu0 0.0
    %3061 = vmatpush2.msra.mxu0 0.0
    %3062 = vmatprep.subr.mxu0 0.0
    %3063 = vmatpush2.msra.mxu0 0.0
    %3064 = vmatprep.subr.mxu0 0.0
    %3065 = vmatpush2.msra.mxu0 0.0
    %3066 = vmatprep.subr.mxu0 0.0
    %3067 = vmatpush2.msra.mxu0 0.0
    %3068 = vmatprep.subr.mxu0 0.0
    %3069 = vmatpush2.msra.mxu0 0.0
    %3070 = vmatprep.subr.mxu0 0.0
    %3071 = vmatpush2.msra.mxu0 0.0
    %3072 = vmatprep.subr.mxu0 0.0
    %3073 = vmatpush2.msra.mxu0 0.0
    %3074 = vmatprep.subr.mxu0 0.0
    %3075 = vmatpush2.msra.mxu0 0.0
    %3076 = vmatprep.subr.mxu0 0.0
    %3077 = vmatpush2.msra.mxu0 0.0
    %3078 = vmatprep.subr.mxu0 0.0
    %3079 = vmatpush2.msra.mxu0 0.0
    %3080 = vmatprep.subr.mxu0 0.0
    %3081 = vmatpush2.msra.mxu0 0.0
    %3082 = vmatprep.subr.mxu0 0.0
    %3083 = vmatpush2.msra.mxu0 0.0
    %3084 = vmatprep.subr.mxu0 0.0
    %3085 = vmatpush2.msra.mxu0 0.0
    %3086 = vmatprep.subr.mxu0 0.0
    %3087 = vmatpush2.msra.mxu0 0.0
    %3088 = vmatprep.subr.mxu0 0.0
    %3089 = vmatpush2.msra.mxu0 0.0
    %3090 = vmatprep.mubr.f32.mxu0 0.0
    %3091 = vmatmul.mubr.f32.gmra.mxu0 %v3024
    %v3092 = vpop.f32.mrf.mxu0
    %v3093 = vadd.f32 0.0, %v3092
    %v3094 = vpop.f32.mrf.mxu0
    %3095 = vdwg.mxu0
    %3096 = vrot.lane.b32.xlu0 %v1835, 40
    %v3097 = vpop.permute.xlu0 %3096
    %v3100 = vsel %vm289, %v3019, 0
    %3102 = vmatprep.subr.mxu0 0.0
    %3103 = vmatpush1.msra.mxu0 0.0
    %3104 = vmatprep.subr.mxu0 0.0
    %3105 = vmatpush1.msra.mxu0 0.0
    %3106 = vmatprep.subr.mxu0 0.0
    %3107 = vmatpush1.msra.mxu0 0.0
    %3108 = vmatprep.subr.mxu0 0.0
    %3109 = vmatpush1.msra.mxu0 0.0
    %3110 = vmatprep.subr.mxu0 0.0
    %3111 = vmatpush1.msra.mxu0 0.0
    %3112 = vmatprep.subr.mxu0 0.0
    %3113 = vmatpush1.msra.mxu0 0.0
    %3114 = vmatprep.subr.mxu0 0.0
    %3115 = vmatpush1.msra.mxu0 0.0
    %3116 = vmatprep.subr.mxu0 0.0
    %3117 = vmatpush1.msra.mxu0 0.0
    %3118 = vmatprep.subr.mxu0 0.0
    %3119 = vmatpush1.msra.mxu0 0.0
    %3120 = vmatprep.subr.mxu0 0.0
    %3121 = vmatpush1.msra.mxu0 0.0
    %3122 = vmatprep.subr.mxu0 0.0
    %3123 = vmatpush1.msra.mxu0 0.0
    %3124 = vmatprep.subr.mxu0 0.0
    %3125 = vmatpush1.msra.mxu0 0.0
    %3126 = vmatprep.subr.mxu0 0.0
    %3127 = vmatpush1.msra.mxu0 0.0
    %3128 = vmatprep.subr.mxu0 0.0
    %3129 = vmatpush1.msra.mxu0 0.0
    %3130 = vmatprep.subr.mxu0 0.0
    %3131 = vmatpush1.msra.mxu0 0.0
    %3132 = vmatprep.subr.mxu0 0.0
    %3133 = vmatpush1.msra.mxu0 %v3097
    %3134 = vmatprep.subr.mxu0 0.0
    %3135 = vmatpush2.msra.mxu0 0.0
    %3136 = vmatprep.subr.mxu0 0.0
    %3137 = vmatpush2.msra.mxu0 0.0
    %3138 = vmatprep.subr.mxu0 0.0
    %3139 = vmatpush2.msra.mxu0 0.0
    %3140 = vmatprep.subr.mxu0 0.0
    %3141 = vmatpush2.msra.mxu0 0.0
    %3142 = vmatprep.subr.mxu0 0.0
    %3143 = vmatpush2.msra.mxu0 0.0
    %3144 = vmatprep.subr.mxu0 0.0
    %3145 = vmatpush2.msra.mxu0 0.0
    %3146 = vmatprep.subr.mxu0 0.0
    %3147 = vmatpush2.msra.mxu0 0.0
    %3148 = vmatprep.subr.mxu0 0.0
    %3149 = vmatpush2.msra.mxu0 0.0
    %3150 = vmatprep.subr.mxu0 0.0
    %3151 = vmatpush2.msra.mxu0 0.0
    %3152 = vmatprep.subr.mxu0 0.0
    %3153 = vmatpush2.msra.mxu0 0.0
    %3154 = vmatprep.subr.mxu0 0.0
    %3155 = vmatpush2.msra.mxu0 0.0
    %3156 = vmatprep.subr.mxu0 0.0
    %3157 = vmatpush2.msra.mxu0 0.0
    %3158 = vmatprep.subr.mxu0 0.0
    %3159 = vmatpush2.msra.mxu0 0.0
    %3160 = vmatprep.subr.mxu0 0.0
    %3161 = vmatpush2.msra.mxu0 0.0
    %3162 = vmatprep.subr.mxu0 0.0
    %3163 = vmatpush2.msra.mxu0 0.0
    %3164 = vmatprep.subr.mxu0 0.0
    %3165 = vmatpush2.msra.mxu0 0.0
    %3166 = vmatprep.mubr.f32.mxu0 0.0
    %3167 = vmatmul.mubr.f32.gmra.mxu0 %v3100
    %v3168 = vpop.f32.mrf.mxu0
    %v3169 = vadd.f32 0.0, %v3168
    %v3170 = vpop.f32.mrf.mxu0
    %3171 = vdwg.mxu0
    %3174 = vrot.lane.b32.xlu0 %v2425, 8
    %v3175 = vpop.permute.xlu0 %3174
    %3176 = vrot.lane.b32.xlu0 %v2501, 8
    %v3177 = vpop.permute.xlu0 %3176
    %3182 = vrot.lane.b32.xlu0 %v2759, 16
    %v3183 = vpop.permute.xlu0 %3182
    %3184 = vrot.lane.b32.xlu0 %v2835, 16
    %v3185 = vpop.permute.xlu0 %3184
    %3190 = vrot.lane.b32.xlu0 %v3093, 24
    %v3191 = vpop.permute.xlu0 %3190
    %3192 = vrot.lane.b32.xlu0 %v3169, 24
    %v3193 = vpop.permute.xlu0 %3192
    %v3196 = vsel %vm289, %v2091, %v3175
    %v3197 = vsel %vm289, %v2167, %v3177
    %v3198 = vsel %vm109, %v3196, %v3183
    %v3199 = vsel %vm109, %v3197, %v3185
    %v3200 = vsel %vm1649, %v3198, %v3191
    %v3201 = vsel %vm1649, %v3199, %v3193
    %v3202 = vld [vmem:[#allocation10 + $0x18] sm:$0xff]
    %v3203 = vld [vmem:[#allocation10 + $0x50] sm:$0xff]
    %v3204 = vld [vmem:[#allocation10 + $0x88] sm:$0xff]
    %v3205 = vld [vmem:[#allocation10 + $0xc0] sm:$0xff]
    %v3206 = vld [vmem:[%s5 + $0x4] sm:$0x1]
    %v3208 = vlaneseq
    %v3209 = vshrl.u32 %v3208, 7
    %v3210 = vsub.s32 0, %v3209
    %v3211 = vrot.slane %v3206, %v3210
    %v3214 = vsel %vm204, %v3200, 0
    %v3217 = vsel %vm204, %v3201, 0
    %3219 = vmatprep.subr.mxu0 0.0
    %3220 = vmatpush1.msra.mxu0 0.0
    %3221 = vmatprep.subr.mxu0 0.0
    %3222 = vmatpush1.msra.mxu0 0.0
    %3223 = vmatprep.subr.mxu0 0.0
    %3224 = vmatpush1.msra.mxu0 0.0
    %3225 = vmatprep.subr.mxu0 0.0
    %3226 = vmatpush1.msra.mxu0 0.0
    %3227 = vmatprep.subr.mxu0 0.0
    %3228 = vmatpush1.msra.mxu0 0.0
    %3229 = vmatprep.subr.mxu0 0.0
    %3230 = vmatpush1.msra.mxu0 0.0
    %3231 = vmatprep.subr.mxu0 0.0
    %3232 = vmatpush1.msra.mxu0 0.0
    %3233 = vmatprep.subr.mxu0 0.0
    %3234 = vmatpush1.msra.mxu0 0.0
    %3235 = vmatprep.subr.mxu0 0.0
    %3236 = vmatpush1.msra.mxu0 0.0
    %3237 = vmatprep.subr.mxu0 0.0
    %3238 = vmatpush1.msra.mxu0 0.0
    %3239 = vmatprep.subr.mxu0 0.0
    %3240 = vmatpush1.msra.mxu0 0.0
    %3241 = vmatprep.subr.mxu0 0.0
    %3242 = vmatpush1.msra.mxu0 0.0
    %3243 = vmatprep.subr.mxu0 0.0
    %3244 = vmatpush1.msra.mxu0 %v3205
    %3245 = vmatprep.subr.mxu0 0.0
    %3246 = vmatpush1.msra.mxu0 %v3204
    %3247 = vmatprep.subr.mxu0 0.0
    %3248 = vmatpush1.msra.mxu0 %v3203
    %3249 = vmatprep.subr.mxu0 0.0
    %3250 = vmatpush1.msra.mxu0 %v3202
    %3251 = vmatprep.subr.mxu0 0.0
    %3252 = vmatpush2.msra.mxu0 0.0
    %3253 = vmatprep.subr.mxu0 0.0
    %3254 = vmatpush2.msra.mxu0 0.0
    %3255 = vmatprep.subr.mxu0 0.0
    %3256 = vmatpush2.msra.mxu0 0.0
    %3257 = vmatprep.subr.mxu0 0.0
    %3258 = vmatpush2.msra.mxu0 0.0
    %3259 = vmatprep.subr.mxu0 0.0
    %3260 = vmatpush2.msra.mxu0 0.0
    %3261 = vmatprep.subr.mxu0 0.0
    %3262 = vmatpush2.msra.mxu0 0.0
    %3263 = vmatprep.subr.mxu0 0.0
    %3264 = vmatpush2.msra.mxu0 0.0
    %3265 = vmatprep.subr.mxu0 0.0
    %3266 = vmatpush2.msra.mxu0 0.0
    %3267 = vmatprep.subr.mxu0 0.0
    %3268 = vmatpush2.msra.mxu0 0.0
    %3269 = vmatprep.subr.mxu0 0.0
    %3270 = vmatpush2.msra.mxu0 0.0
    %3271 = vmatprep.subr.mxu0 0.0
    %3272 = vmatpush2.msra.mxu0 0.0
    %3273 = vmatprep.subr.mxu0 0.0
    %3274 = vmatpush2.msra.mxu0 0.0
    %3275 = vmatprep.subr.mxu0 0.0
    %3276 = vmatpush2.msra.mxu0 0.0
    %3277 = vmatprep.subr.mxu0 0.0
    %3278 = vmatpush2.msra.mxu0 0.0
    %3279 = vmatprep.subr.mxu0 0.0
    %3280 = vmatpush2.msra.mxu0 0.0
    %3281 = vmatprep.subr.mxu0 0.0
    %3282 = vmatpush2.msra.mxu0 0.0
    %3283 = vmatprep.mubr.f32.mxu0 0.0
    %3284 = vmatmul.mubr.f32.gmra.mxu0 %v3214
    %v3285 = vpop.f32.mrf.mxu0
    %v3286 = vadd.f32 %v3211, %v3285
    %v3287 = vpop.f32.mrf.mxu0
    %3288 = vmatprep.mubr.f32.mxu0 0.0
    %3289 = vmatmul.mubr.f32.gmra.mxu0 %v3217
    %v3290 = vpop.f32.mrf.mxu0
    %v3291 = vadd.f32 %v3211, %v3290
    %v3292 = vpop.f32.mrf.mxu0
    %3293 = vdwg.mxu0
    %v3294 = vmax.f32 %v3286, 0.0
    %v3295 = vmax.f32 %v3291, 0.0
    %v3296 = vld [vmem:[#allocation10 + $0x20] sm:$0xff]
    %v3297 = vld [vmem:[#allocation10 + $0x58] sm:$0xff]
    %v3298 = vld [vmem:[#allocation10 + $0x90] sm:$0xff]
    %v3299 = vld [vmem:[#allocation10 + $0xc8] sm:$0xff]
    %v3300 = vld [vmem:[%s5 + $0x5] sm:$0x1]
    %v3302 = vlaneseq
    %v3303 = vshrl.u32 %v3302, 7
    %v3304 = vsub.s32 0, %v3303
    %v3305 = vrot.slane %v3300, %v3304
    %v3308 = vsel %vm204, %v3294, 0
    %v3311 = vsel %vm204, %v3295, 0
    %3313 = vmatprep.subr.mxu0 0.0
    %3314 = vmatpush1.msra.mxu0 0.0
    %3315 = vmatprep.subr.mxu0 0.0
    %3316 = vmatpush1.msra.mxu0 0.0
    %3317 = vmatprep.subr.mxu0 0.0
    %3318 = vmatpush1.msra.mxu0 0.0
    %3319 = vmatprep.subr.mxu0 0.0
    %3320 = vmatpush1.msra.mxu0 0.0
    %3321 = vmatprep.subr.mxu0 0.0
    %3322 = vmatpush1.msra.mxu0 0.0
    %3323 = vmatprep.subr.mxu0 0.0
    %3324 = vmatpush1.msra.mxu0 0.0
    %3325 = vmatprep.subr.mxu0 0.0
    %3326 = vmatpush1.msra.mxu0 0.0
    %3327 = vmatprep.subr.mxu0 0.0
    %3328 = vmatpush1.msra.mxu0 0.0
    %3329 = vmatprep.subr.mxu0 0.0
    %3330 = vmatpush1.msra.mxu0 0.0
    %3331 = vmatprep.subr.mxu0 0.0
    %3332 = vmatpush1.msra.mxu0 0.0
    %3333 = vmatprep.subr.mxu0 0.0
    %3334 = vmatpush1.msra.mxu0 0.0
    %3335 = vmatprep.subr.mxu0 0.0
    %3336 = vmatpush1.msra.mxu0 0.0
    %3337 = vmatprep.subr.mxu0 0.0
    %3338 = vmatpush1.msra.mxu0 %v3299
    %3339 = vmatprep.subr.mxu0 0.0
    %3340 = vmatpush1.msra.mxu0 %v3298
    %3341 = vmatprep.subr.mxu0 0.0
    %3342 = vmatpush1.msra.mxu0 %v3297
    %3343 = vmatprep.subr.mxu0 0.0
    %3344 = vmatpush1.msra.mxu0 %v3296
    %3345 = vmatprep.subr.mxu0 0.0
    %3346 = vmatpush2.msra.mxu0 0.0
    %3347 = vmatprep.subr.mxu0 0.0
    %3348 = vmatpush2.msra.mxu0 0.0
    %3349 = vmatprep.subr.mxu0 0.0
    %3350 = vmatpush2.msra.mxu0 0.0
    %3351 = vmatprep.subr.mxu0 0.0
    %3352 = vmatpush2.msra.mxu0 0.0
    %3353 = vmatprep.subr.mxu0 0.0
    %3354 = vmatpush2.msra.mxu0 0.0
    %3355 = vmatprep.subr.mxu0 0.0
    %3356 = vmatpush2.msra.mxu0 0.0
    %3357 = vmatprep.subr.mxu0 0.0
    %3358 = vmatpush2.msra.mxu0 0.0
    %3359 = vmatprep.subr.mxu0 0.0
    %3360 = vmatpush2.msra.mxu0 0.0
    %3361 = vmatprep.subr.mxu0 0.0
    %3362 = vmatpush2.msra.mxu0 0.0
    %3363 = vmatprep.subr.mxu0 0.0
    %3364 = vmatpush2.msra.mxu0 0.0
    %3365 = vmatprep.subr.mxu0 0.0
    %3366 = vmatpush2.msra.mxu0 0.0
    %3367 = vmatprep.subr.mxu0 0.0
    %3368 = vmatpush2.msra.mxu0 0.0
    %3369 = vmatprep.subr.mxu0 0.0
    %3370 = vmatpush2.msra.mxu0 0.0
    %3371 = vmatprep.subr.mxu0 0.0
    %3372 = vmatpush2.msra.mxu0 0.0
    %3373 = vmatprep.subr.mxu0 0.0
    %3374 = vmatpush2.msra.mxu0 0.0
    %3375 = vmatprep.subr.mxu0 0.0
    %3376 = vmatpush2.msra.mxu0 0.0
    %3377 = vmatprep.mubr.f32.mxu0 0.0
    %3378 = vmatmul.mubr.f32.gmra.mxu0 %v3308
    %v3379 = vpop.f32.mrf.mxu0
    %v3380 = vadd.f32 %v3305, %v3379
    %v3381 = vpop.f32.mrf.mxu0
    %3382 = vmatprep.mubr.f32.mxu0 0.0
    %3383 = vmatmul.mubr.f32.gmra.mxu0 %v3311
    %v3384 = vpop.f32.mrf.mxu0
    %v3385 = vadd.f32 %v3305, %v3384
    %v3386 = vpop.f32.mrf.mxu0
    %3387 = vdwg.mxu0
    %v3388 = vld [vmem:[#allocation10 + $0x28] sm:$0xff]
    %v3389 = vld [vmem:[#allocation10 + $0x60] sm:$0xff]
    %v3390 = vld [vmem:[#allocation10 + $0x98] sm:$0xff]
    %v3391 = vld [vmem:[#allocation10 + $0xd0] sm:$0xff]
    %v3392 = vld [vmem:[%s5 + $0x6] sm:$0x1]
    %v3394 = vlaneseq
    %v3395 = vshrl.u32 %v3394, 7
    %v3396 = vsub.s32 0, %v3395
    %v3397 = vrot.slane %v3392, %v3396
    %v3400 = vsel %vm204, %v94, 0
    %v3403 = vsel %vm204, %v95, 0
    %3405 = vmatprep.subr.mxu0 0.0
    %3406 = vmatpush1.msra.mxu0 0.0
    %3407 = vmatprep.subr.mxu0 0.0
    %3408 = vmatpush1.msra.mxu0 0.0
    %3409 = vmatprep.subr.mxu0 0.0
    %3410 = vmatpush1.msra.mxu0 0.0
    %3411 = vmatprep.subr.mxu0 0.0
    %3412 = vmatpush1.msra.mxu0 0.0
    %3413 = vmatprep.subr.mxu0 0.0
    %3414 = vmatpush1.msra.mxu0 0.0
    %3415 = vmatprep.subr.mxu0 0.0
    %3416 = vmatpush1.msra.mxu0 0.0
    %3417 = vmatprep.subr.mxu0 0.0
    %3418 = vmatpush1.msra.mxu0 0.0
    %3419 = vmatprep.subr.mxu0 0.0
    %3420 = vmatpush1.msra.mxu0 0.0
    %3421 = vmatprep.subr.mxu0 0.0
    %3422 = vmatpush1.msra.mxu0 0.0
    %3423 = vmatprep.subr.mxu0 0.0
    %3424 = vmatpush1.msra.mxu0 0.0
    %3425 = vmatprep.subr.mxu0 0.0
    %3426 = vmatpush1.msra.mxu0 0.0
    %3427 = vmatprep.subr.mxu0 0.0
    %3428 = vmatpush1.msra.mxu0 0.0
    %3429 = vmatprep.subr.mxu0 0.0
    %3430 = vmatpush1.msra.mxu0 %v3391
    %3431 = vmatprep.subr.mxu0 0.0
    %3432 = vmatpush1.msra.mxu0 %v3390
    %3433 = vmatprep.subr.mxu0 0.0
    %3434 = vmatpush1.msra.mxu0 %v3389
    %3435 = vmatprep.subr.mxu0 0.0
    %3436 = vmatpush1.msra.mxu0 %v3388
    %3437 = vmatprep.subr.mxu0 0.0
    %3438 = vmatpush2.msra.mxu0 0.0
    %3439 = vmatprep.subr.mxu0 0.0
    %3440 = vmatpush2.msra.mxu0 0.0
    %3441 = vmatprep.subr.mxu0 0.0
    %3442 = vmatpush2.msra.mxu0 0.0
    %3443 = vmatprep.subr.mxu0 0.0
    %3444 = vmatpush2.msra.mxu0 0.0
    %3445 = vmatprep.subr.mxu0 0.0
    %3446 = vmatpush2.msra.mxu0 0.0
    %3447 = vmatprep.subr.mxu0 0.0
    %3448 = vmatpush2.msra.mxu0 0.0
    %3449 = vmatprep.subr.mxu0 0.0
    %3450 = vmatpush2.msra.mxu0 0.0
    %3451 = vmatprep.subr.mxu0 0.0
    %3452 = vmatpush2.msra.mxu0 0.0
    %3453 = vmatprep.subr.mxu0 0.0
    %3454 = vmatpush2.msra.mxu0 0.0
    %3455 = vmatprep.subr.mxu0 0.0
    %3456 = vmatpush2.msra.mxu0 0.0
    %3457 = vmatprep.subr.mxu0 0.0
    %3458 = vmatpush2.msra.mxu0 0.0
    %3459 = vmatprep.subr.mxu0 0.0
    %3460 = vmatpush2.msra.mxu0 0.0
    %3461 = vmatprep.subr.mxu0 0.0
    %3462 = vmatpush2.msra.mxu0 0.0
    %3463 = vmatprep.subr.mxu0 0.0
    %3464 = vmatpush2.msra.mxu0 0.0
    %3465 = vmatprep.subr.mxu0 0.0
    %3466 = vmatpush2.msra.mxu0 0.0
    %3467 = vmatprep.subr.mxu0 0.0
    %3468 = vmatpush2.msra.mxu0 0.0
    %3469 = vmatprep.mubr.f32.mxu0 0.0
    %3470 = vmatmul.mubr.f32.gmra.mxu0 %v3400
    %v3471 = vpop.f32.mrf.mxu0
    %v3472 = vadd.f32 %v3397, %v3471
    %v3473 = vpop.f32.mrf.mxu0
    %3474 = vmatprep.mubr.f32.mxu0 0.0
    %3475 = vmatmul.mubr.f32.gmra.mxu0 %v3403
    %v3476 = vpop.f32.mrf.mxu0
    %v3477 = vadd.f32 %v3397, %v3476
    %v3478 = vpop.f32.mrf.mxu0
    %3479 = vdwg.mxu0
    %v3480 = vadd.f32 %v3380, %v3472
    %v3481 = vadd.f32 %v3385, %v3477
    %v3482 = vxor.u32 %v3480, 2147483648
    %v3483 = vxor.u32 %v3481, 2147483648
    %v3484 = vmul.f32 %v3482, 1.442695
    %v3485 = vpow.pop %v3484
    %v3486 = vmul.f32 %v3483, 1.442695
    %v3487 = vpow.pop %v3486
    %v3488 = vadd.f32 %v3485, 1.0
    %v3489 = vadd.f32 %v3487, 1.0
    %v3490 = vrcp.pop %v3488
    %v3491 = vmul.f32 1.0, %v3490
    %v3492 = vrcp.pop %v3489
    %v3493 = vmul.f32 1.0, %v3492
    %3496 = vrot.lane.b32.xlu0 %v3472, 64
    %v3497 = vpop.permute.xlu0 %3496
    %3498 = vrot.lane.b32.xlu0 %v3477, 64
    %v3499 = vpop.permute.xlu0 %3498
    %v3502 = vmul.f32 %v3491, %v3497
    %v3503 = vmul.f32 %v3493, %v3499
    %3506 = vrot.lane.b32.xlu0 %v3502, 64
    %v3507 = vpop.permute.xlu0 %3506
    %3508 = vrot.lane.b32.xlu0 %v3503, 64
    %v3509 = vpop.permute.xlu0 %3508
    %v3512 = vadd.f32 %v3380, %v3507
    %v3513 = vadd.f32 %v3385, %v3509
    %v3514 = vtanh.pop %v3512
    %v3515 = vtanh.pop %v3513
    %v3516 = vsub.f32 1.0, %v3491
    %v3517 = vsub.f32 1.0, %v3493
    %3520 = vrot.lane.b32.xlu0 %v3514, 96
    %v3521 = vpop.permute.xlu0 %3520
    %3522 = vrot.lane.b32.xlu0 %v3515, 96
    %v3523 = vpop.permute.xlu0 %3522
    %v3526 = vmul.f32 %v3516, %v3521
    %v3527 = vmul.f32 %v3517, %v3523
    %3528 = vrot.lane.b32.xlu0 %v94, 32
    %v3529 = vpop.permute.xlu0 %3528
    %3530 = vrot.lane.b32.xlu0 %v95, 32
    %v3531 = vpop.permute.xlu0 %3530
    %v3534 = vmul.f32 %v3491, %v3529
    %v3535 = vmul.f32 %v3493, %v3531
    %v3536 = vadd.f32 %v3526, %v3534
    %v3537 = vadd.f32 %v3527, %v3535
    %v3538 = vld [vmem:[#allocation10 + $0x30] sm:$0xff]
    %v3539 = vld [vmem:[#allocation10 + $0x68] sm:$0xff]
    %v3540 = vld [vmem:[#allocation10 + $0xa0] sm:$0xff]
    %v3541 = vld [vmem:[#allocation10 + $0xd8] sm:$0xff]
    %v3542 = vld [vmem:[%s5 + $0x7] sm:$0x1]
    %v3544 = vlaneseq
    %v3545 = vshrl.u32 %v3544, 7
    %v3546 = vsub.s32 0, %v3545
    %v3547 = vrot.slane %v3542, %v3546
    %3551 = vrot.lane.b32.xlu0 %v3536, 96
    %v3552 = vpop.permute.xlu0 %3551
    %3553 = vrot.lane.b32.xlu0 %v3537, 96
    %v3554 = vpop.permute.xlu0 %3553
    %v3555 = vsel %vm204, %v3552, 0
    %v3557 = vsel %vm204, %v3554, 0
    %3559 = vmatprep.subr.mxu0 0.0
    %3560 = vmatpush1.msra.mxu0 0.0
    %3561 = vmatprep.subr.mxu0 0.0
    %3562 = vmatpush1.msra.mxu0 0.0
    %3563 = vmatprep.subr.mxu0 0.0
    %3564 = vmatpush1.msra.mxu0 0.0
    %3565 = vmatprep.subr.mxu0 0.0
    %3566 = vmatpush1.msra.mxu0 0.0
    %3567 = vmatprep.subr.mxu0 0.0
    %3568 = vmatpush1.msra.mxu0 0.0
    %3569 = vmatprep.subr.mxu0 0.0
    %3570 = vmatpush1.msra.mxu0 0.0
    %3571 = vmatprep.subr.mxu0 0.0
    %3572 = vmatpush1.msra.mxu0 0.0
    %3573 = vmatprep.subr.mxu0 0.0
    %3574 = vmatpush1.msra.mxu0 0.0
    %3575 = vmatprep.subr.mxu0 0.0
    %3576 = vmatpush1.msra.mxu0 0.0
    %3577 = vmatprep.subr.mxu0 0.0
    %3578 = vmatpush1.msra.mxu0 0.0
    %3579 = vmatprep.subr.mxu0 0.0
    %3580 = vmatpush1.msra.mxu0 0.0
    %3581 = vmatprep.subr.mxu0 0.0
    %3582 = vmatpush1.msra.mxu0 0.0
    %3583 = vmatprep.subr.mxu0 0.0
    %3584 = vmatpush1.msra.mxu0 %v3541
    %3585 = vmatprep.subr.mxu0 0.0
    %3586 = vmatpush1.msra.mxu0 %v3540
    %3587 = vmatprep.subr.mxu0 0.0
    %3588 = vmatpush1.msra.mxu0 %v3539
    %3589 = vmatprep.subr.mxu0 0.0
    %3590 = vmatpush1.msra.mxu0 %v3538
    %3591 = vmatprep.subr.mxu0 0.0
    %3592 = vmatpush2.msra.mxu0 0.0
    %3593 = vmatprep.subr.mxu0 0.0
    %3594 = vmatpush2.msra.mxu0 0.0
    %3595 = vmatprep.subr.mxu0 0.0
    %3596 = vmatpush2.msra.mxu0 0.0
    %3597 = vmatprep.subr.mxu0 0.0
    %3598 = vmatpush2.msra.mxu0 0.0
    %3599 = vmatprep.subr.mxu0 0.0
    %3600 = vmatpush2.msra.mxu0 0.0
    %3601 = vmatprep.subr.mxu0 0.0
    %3602 = vmatpush2.msra.mxu0 0.0
    %3603 = vmatprep.subr.mxu0 0.0
    %3604 = vmatpush2.msra.mxu0 0.0
    %3605 = vmatprep.subr.mxu0 0.0
    %3606 = vmatpush2.msra.mxu0 0.0
    %3607 = vmatprep.subr.mxu0 0.0
    %3608 = vmatpush2.msra.mxu0 0.0
    %3609 = vmatprep.subr.mxu0 0.0
    %3610 = vmatpush2.msra.mxu0 0.0
    %3611 = vmatprep.subr.mxu0 0.0
    %3612 = vmatpush2.msra.mxu0 0.0
    %3613 = vmatprep.subr.mxu0 0.0
    %3614 = vmatpush2.msra.mxu0 0.0
    %3615 = vmatprep.subr.mxu0 0.0
    %3616 = vmatpush2.msra.mxu0 0.0
    %3617 = vmatprep.subr.mxu0 0.0
    %3618 = vmatpush2.msra.mxu0 0.0
    %3619 = vmatprep.subr.mxu0 0.0
    %3620 = vmatpush2.msra.mxu0 0.0
    %3621 = vmatprep.subr.mxu0 0.0
    %3622 = vmatpush2.msra.mxu0 0.0
    %3623 = vmatprep.mubr.f32.mxu0 0.0
    %3624 = vmatmul.mubr.f32.gmra.mxu0 %v3555
    %v3625 = vpop.f32.mrf.mxu0
    %v3626 = vadd.f32 %v3547, %v3625
    %v3627 = vpop.f32.mrf.mxu0
    %3628 = vmatprep.mubr.f32.mxu0 0.0
    %3629 = vmatmul.mubr.f32.gmra.mxu0 %v3557
    %v3630 = vpop.f32.mrf.mxu0
    %v3631 = vadd.f32 %v3547, %v3630
    %v3632 = vpop.f32.mrf.mxu0
    %3633 = vdwg.mxu0
    %3634 = vrot.lane.b32.xlu0 %v3536, 104
    %v3635 = vpop.permute.xlu0 %3634
    %3636 = vrot.lane.b32.xlu0 %v3537, 104
    %v3637 = vpop.permute.xlu0 %3636
    %v3640 = vsel %vm289, %v3626, %v3635
    %v3641 = vsel %vm289, %v3631, %v3637
    %vm3642 = vcmask 326656
    %v3643 = vsel %vm3642, %v3640, 0.0
    %v3644 = vsel %vm3642, %v3641, 0.0
    %3645 = vst [vmem:[#allocation11] sm:$0xff] %v3643
    %3646 = vst [vmem:[#allocation11 + $0x8] sm:$0xff] %v3644
    // Predicated region
    $region46: #{tpu_custom_call.1} parent=1 // pred_check
      _
    $region47: #{tpu_custom_call.1} parent=1 // pred_check_branch
      %3648 = sbr.rel (0) target = $region49
    $region48: #{tpu_custom_call.1} parent=1 // pred_region
      %s3650 = ssub.s32 256, 256
      %3651 = vsyncadd [#allocation4], %s3650
      %s3652 = sshll.u32 [#allocation11], 4
      %s3653 = int_to_ptr.vmem [resolvable:$true] %s3652
      %3658 = dma.vmem_to_hbm [thread:$0]  %s3653, 256, %s6, [#allocation4], 128, 128, 8
    $region49: #{tpu_custom_call.1} parent=1 // pred_fallthru
      _
    // Predicated region
    $region50: #{tpu_custom_call.1} parent=1 // pred_check
      _
    $region51: #{tpu_custom_call.1} parent=1 // pred_check_branch
      %3660 = sbr.rel (0) target = $region53
    $region52: #{tpu_custom_call.1} parent=1 // pred_region
      %3661 = dma.done [#allocation4], 256
    $region53: #{tpu_custom_call.1} parent=1 // pred_fallthru
      _
    %3662 = vsyncpa [#allocation3], 1
    %3663 = vsyncpa [#allocation6], 1
    %3664 = vsyncpa [#allocation9], 1
    %3665 = vsyncpa [#allocation4], 1

</llo_original>
